<compile_context>
chip_gen: v7x
topology: tpu7x:2x2x1
jax: 0.10.0
libtpu: 0.0.40
codegen_flags: <defaults>
</compile_context>

<pallas_src>
import jax
import jax.numpy as jnp
from jax.experimental import pallas as pl
from jax.experimental.pallas import tpu as pltpu


# ------------------------------ small host helpers ---------------------------

def _interp_matrix(out_size, in_size):
    """(out_size, in_size) matrix for 1-D bilinear resampling, align_corners=False.
    out = M @ in ; bilinear 2-D resampling is separable, so rows/cols use two of these."""
    scale = in_size / out_size
    coord = (jnp.arange(out_size, dtype=jnp.float32) + 0.5) * scale - 0.5
    coord = jnp.maximum(coord, 0.0)
    i0 = jnp.clip(jnp.floor(coord).astype(jnp.int32), 0, in_size - 1)
    i1 = jnp.clip(i0 + 1, 0, in_size - 1)
    frac = coord - i0.astype(jnp.float32)
    return (jax.nn.one_hot(i0, in_size, dtype=jnp.float32) * (1.0 - frac)[:, None]
            + jax.nn.one_hot(i1, in_size, dtype=jnp.float32) * frac[:, None])


def _row_tile(nrows):
    # Small fixed tile for the toy shapes; production kernels should grow this until a
    # block is a few MB of VMEM (and re-derive against 64 MiB on v7x).
    return 8 if nrows % 8 == 0 else nrows


# --------------------------------- Pallas kernels ----------------------------

def _attn_coeff_kernel(x_ref, g_ref, sdec_ref, wt_ref, wphi_ref, bphi_ref,
                       ahg_ref, bwg_ref, wpsi_ref, bpsi_ref, o_ref):
    """sig = sigmoid(psi(relu(theta(x) + upsample(phi(g)))))  for one (batch, row-tile)
    of the coarse (H/2, W/2) grid.  All intermediates stay in VMEM/vregs."""
    Cin, THc, _, W = x_ref.shape
    Wo = o_ref.shape[2]
    inter = wphi_ref.shape[0]

    xb = x_ref[...]                                             # (Cin, THc, 2, W)

    # ---- theta: 2x2 / stride-2 conv, assembled in-kernel (no HBM patches) ----
    theta = jnp.zeros((inter, THc, Wo), jnp.float32)
    for kh in range(2):
        x_kh = xb[:, :, kh, :].reshape(Cin * THc, W)            # row tap kh
        for kw in range(2):
            xd = jnp.dot(x_kh, sdec_ref[kw],                    # column tap kw (0/1 matrix)
                         preferred_element_type=jnp.float32)    # (Cin*THc, Wo)
            xd = xd.reshape(Cin, THc, Wo)
            w_kk = wt_ref[pl.ds((kh * 2 + kw) * inter, inter)]  # (inter, Cin, 1, 1)
            # VPU channel contraction (Cin/inter tiny -> MXU would be ~all padding).
            theta = theta + jnp.sum(w_kk * xd[None], axis=1)    # (inter, THc, Wo)

    # ---- phi: 1x1 conv on the tiny gating signal, fused with its bilinear upsample ----
    gb = g_ref[...]                                             # (Cg, Hg, Wg)
    pg = jnp.sum(wphi_ref[...] * gb[None], axis=1) + bphi_ref[...]   # (inter, Hg, Wg)
    ahg = ahg_ref[...]                                          # (THc, Hg)
    bwg = bwg_ref[...]                                          # (Wg, Wo)

    # ---- psi (1x1 -> 1 channel) + sigmoid: VPU multiply + cross-vreg reduce + EUP ----
    s = jnp.zeros((THc, Wo), jnp.float32)
    for o in range(inter):
        phi_o = jnp.dot(jnp.dot(ahg, pg[o], preferred_element_type=jnp.float32),
                        bwg, preferred_element_type=jnp.float32)     # (THc, Wo)
        f_o = jnp.maximum(theta[o] + phi_o, 0.0)                     # relu
        s = s + wpsi_ref[o] * f_o                                    # wpsi_ref[o]: (1,1)
    o_ref[0] = jax.nn.sigmoid(s + bpsi_ref[...])


def _gated_Wconv_tile(x_ref, sig_ref, ah_ref, bw_ref, w_ref, b_ref):
    """z = Wconv1x1(upsample2x(sig) * x) + b for one (batch, fine-row-tile).
    The 2x bilinear upsample of sig is done in-kernel via two separable matmuls."""
    xb = x_ref[...]                                              # (Cin, THf, W)
    sig_c = sig_ref[0]                                           # (Ho, Wo) coarse map
    rows = jnp.dot(ah_ref[...], sig_c, preferred_element_type=jnp.float32)   # (THf, Wo)
    sig_up = jnp.dot(rows, bw_ref[...], preferred_element_type=jnp.float32)  # (THf, W)
    y = sig_up[None] * xb                                        # gate (broadcast over C)
    # 1x1 conv: VPU contraction over the tiny channel axis (see TODO(synk) above).
    z = jnp.sum(w_ref[...] * y[None], axis=1) + b_ref[...]       # (Cout, THf, W)
    return z


def _bn_stats_kernel(x_ref, sig_ref, ah_ref, bw_ref, w_ref, b_ref, st_ref):
    """Accumulate per-channel sum / sum^2 of z across the row-tile ("arbitrary") axis."""
    z = _gated_Wconv_tile(x_ref, sig_ref, ah_ref, bw_ref, w_ref, b_ref)
    s1 = jnp.sum(jnp.sum(z, axis=2), axis=1, keepdims=True)      # (Cout, 1)
    s2 = jnp.sum(jnp.sum(z * z, axis=2), axis=1, keepdims=True)  # (Cout, 1)
    part = jnp.concatenate([s1, s2], axis=1)                     # (Cout, 2)

    @pl.when(pl.program_id(1) == 0)
    def _init():
        st_ref[...] = jnp.zeros_like(st_ref)

    st_ref[...] += part[None]


def _gate_out_kernel(x_ref, sig_ref, ah_ref, bw_ref, w_ref, b_ref, o_ref):
    """Final pass: gate + 1x1 conv with the BatchNorm affine folded into (w, b)."""
    o_ref[...] = _gated_Wconv_tile(x_ref, sig_ref, ah_ref, bw_ref, w_ref, b_ref)


# ----------------------------------- forward ---------------------------------

def attention_block_forward(x_nchw, g_nchw, p):
    N, Cin, H, W = x_nchw.shape
    _, Cg, Hg, Wg = g_nchw.shape
    inter = p['theta_w'].shape[0]
    assert H % 2 == 0 and W % 2 == 0, "2x2/stride-2 theta conv expects even H, W"
    Ho, Wo = H // 2, W // 2
    THc = _row_tile(Ho)        # coarse-row tile (stage 1)
    THf = _row_tile(H)         # fine-row tile   (stages 2 & 3)
    f32 = jnp.float32

    x = x_nchw.astype(f32)
    g = g_nchw.astype(f32)

    # ---- tiny host-side parameter packing (reshapes only, no data-sized copies) ----
    wt = jnp.transpose(p['theta_w'], (2, 3, 0, 1)).reshape(4 * inter, Cin)
    wt = wt[:, :, None, None]                                   # (4*inter, Cin, 1, 1)
    wphi = p['phi_w'][:, :, 0, 0][:, :, None, None]             # (inter, Cg, 1, 1)
    bphi = p['phi_b'][:, None, None]                            # (inter, 1, 1)
    wpsi = p['psi_w'][0, :, 0, 0][:, None, None]                # (inter, 1, 1)
    bpsi = p['psi_b'].reshape(1, 1)                             # (1, 1)
    w_mat = p['W_w'][:, :, 0, 0]                                # (Cin, Cin)

    # 0/1 selection matrices: the two column taps of the stride-2 theta conv.
    w_idx = jnp.arange(W)[:, None]
    wo_idx = jnp.arange(Wo)[None, :]
    sdec = jnp.stack([(w_idx == 2 * wo_idx).astype(f32),
                      (w_idx == 2 * wo_idx + 1).astype(f32)], axis=0)   # (2, W, Wo)

    # Separable bilinear-resampling matrices (align_corners=False).
    ahg = _interp_matrix(Ho, Hg)          # phi rows: Hg -> Ho
    bwg = _interp_matrix(Wo, Wg).T        # phi cols: Wg -> Wo
    ah = _interp_matrix(H, Ho)            # sig rows: Ho -> H
    bw = _interp_matrix(W, Wo).T          # sig cols: Wo -> W

    # ---- stage 1: fused theta + phi + relu + psi + sigmoid (coarse grid) -----------
    x5 = x.reshape(N * Cin, Ho, 2, W)     # pure view: x5[n*Cin+c, ho, kh, w] = x[n,c,2ho+kh,w]
    g3 = g.reshape(N * Cg, Hg, Wg)
    sig = pl.pallas_call(
        _attn_coeff_kernel,
        out_shape=jax.ShapeDtypeStruct((N, Ho, Wo), f32),
        grid=(N, Ho // THc),
        in_specs=[
            pl.BlockSpec((Cin, THc, 2, W), lambda n, i: (n, i, 0, 0)),
            pl.BlockSpec((Cg, Hg, Wg), lambda n, i: (n, 0, 0)),
            pl.BlockSpec((2, W, Wo), lambda n, i: (0, 0, 0)),
            pl.BlockSpec((4 * inter, Cin, 1, 1), lambda n, i: (0, 0, 0, 0)),
            pl.BlockSpec((inter, Cg, 1, 1), lambda n, i: (0, 0, 0, 0)),
            pl.BlockSpec((inter, 1, 1), lambda n, i: (0, 0, 0)),
            pl.BlockSpec((THc, Hg), lambda n, i: (i, 0)),
            pl.BlockSpec((Wg, Wo), lambda n, i: (0, 0)),
            pl.BlockSpec((inter, 1, 1), lambda n, i: (0, 0, 0)),
            pl.BlockSpec((1, 1), lambda n, i: (0, 0)),
        ],
        out_specs=pl.BlockSpec((1, THc, Wo), lambda n, i: (n, i, 0)),
        compiler_params=pltpu.CompilerParams(
            dimension_semantics=("parallel", "parallel")),
    )(x5, g3, sdec, wt, wphi, bphi, ahg, bwg, wpsi, bpsi)

    # ---- stage 2: BatchNorm statistics of z = W(sig_up * x) + b (reduction pass) ----
    x3 = x.reshape(N * Cin, H, W)
    wW = w_mat[:, :, None, None]
    bW = p['W_b'][:, None, None]
    fine_specs = [
        pl.BlockSpec((Cin, THf, W), lambda n, i: (n, i, 0)),
        pl.BlockSpec((1, Ho, Wo), lambda n, i: (n, 0, 0)),      # whole coarse sig / batch
        pl.BlockSpec((THf, Ho), lambda n, i: (i, 0)),
        pl.BlockSpec((Wo, W), lambda n, i: (0, 0)),
        pl.BlockSpec((Cin, Cin, 1, 1), lambda n, i: (0, 0, 0, 0)),
        pl.BlockSpec((Cin, 1, 1), lambda n, i: (0, 0, 0)),
    ]
    stats = pl.pallas_call(
        _bn_stats_kernel,
        out_shape=jax.ShapeDtypeStruct((N, Cin, 2), f32),
        grid=(N, H // THf),
        in_specs=fine_specs,
        out_specs=pl.BlockSpec((1, Cin, 2), lambda n, i: (n, 0, 0)),
        compiler_params=pltpu.CompilerParams(
            dimension_semantics=("parallel", "arbitrary")),
    )(x3, sig, ah, bw, wW, bW)

    tot = jnp.sum(stats, axis=0)                      # finish tiny reduction over batch
    cnt = float(N * H * W)
    mean = tot[:, 0] / cnt
    var = tot[:, 1] / cnt - mean * mean               # biased variance (train-mode BN)
    a = p['bn_gamma'] * jax.lax.rsqrt(var + 1e-5)
    w_fold = (a[:, None] * w_mat)[:, :, None, None]   # BN affine folded into the 1x1 conv
    b_fold = (a * p['W_b'] + p['bn_beta'] - a * mean)[:, None, None]

    # ---- stage 3: gate + 1x1 W conv + (folded) BN, tiled & pipelined ----------------
    out = pl.pallas_call(
        _gate_out_kernel,
        out_shape=jax.ShapeDtypeStruct((N * Cin, H, W), f32),
        grid=(N, H // THf),
        in_specs=fine_specs,
        out_specs=pl.BlockSpec((Cin, THf, W), lambda n, i: (n, i, 0)),
        compiler_params=pltpu.CompilerParams(
            dimension_semantics=("parallel", "parallel")),
    )(x3, sig, ah, bw, w_fold, b_fold)

    return out.reshape(N, Cin, H, W)                  # already NCHW, no transpose needed


# ------------------------------ pure-JAX reference ----------------------------

def bilinear_upsample_nhwc(x, out_h, out_w):
    """PyTorch F.interpolate(mode='bilinear', align_corners=False) on NHWC (gather form)."""
    n, h, w, c = x.shape

    def src_coords(out_size, in_size):
        scale = in_size / out_size
        coord = (jnp.arange(out_size, dtype=jnp.float32) + 0.5) * scale - 0.5
        coord = jnp.maximum(coord, 0.0)
        i0 = jnp.clip(jnp.floor(coord).astype(jnp.int32), 0, in_size - 1)
        i1 = jnp.clip(i0 + 1, 0, in_size - 1)
        frac = coord - i0.astype(jnp.float32)
        return i0, i1, frac

    h0, h1, fh = src_coords(out_h, h)
    w0, w1, fw = src_coords(out_w, w)
    fw_ = fw[None, None, :, None]
    fh_ = fh[None, :, None, None]

    row0 = x[:, h0]
    row1 = x[:, h1]
    top = row0[:, :, w0] * (1.0 - fw_) + row0[:, :, w1] * fw_
    bot = row1[:, :, w0] * (1.0 - fw_) + row1[:, :, w1] * fw_
    return top * (1.0 - fh_) + bot * fh_


def attention_block_reference(x_nchw, g_nchw, p):
    N, Cin, H, W = x_nchw.shape
    _, Cg, Hg, Wg = g_nchw.shape
    inter = p['theta_w'].shape[0]
    x = jnp.transpose(x_nchw, (0, 2, 3, 1))
    g = jnp.transpose(g_nchw, (0, 2, 3, 1))
    Ho, Wo = H // 2, W // 2
    patches = (x.reshape(N, Ho, 2, Wo, 2, Cin)
                 .transpose(0, 1, 3, 5, 2, 4).reshape(-1, Cin * 4))
    theta = patches @ jnp.transpose(p['theta_w'], (1, 2, 3, 0)).reshape(Cin * 4, inter)
    phi = g.reshape(-1, Cg) @ p['phi_w'][:, :, 0, 0].T + p['phi_b']
    phi_up = bilinear_upsample_nhwc(
        phi.reshape(N, Hg, Wg, inter), Ho, Wo).reshape(-1, inter)
    f = jnp.maximum(theta + phi_up, 0.0)
    sig = jax.nn.sigmoid(f @ p['psi_w'][:, :, 0, 0].T + p['psi_b'])
    sig_up = bilinear_upsample_nhwc(sig.reshape(N, Ho, Wo, 1), H, W).reshape(-1, 1)
    y = sig_up * x.reshape(-1, Cin)
    z = y @ p['W_w'][:, :, 0, 0].T + p['W_b']
    mean = z.mean(0, keepdims=True)
    var = ((z - mean) ** 2).mean(0, keepdims=True)
    out = (z - mean) * jax.lax.rsqrt(var + 1e-5) * p['bn_gamma'] + p['bn_beta']
    return jnp.transpose(out.reshape(N, H, W, Cin), (0, 3, 1, 2))


# -------------------------------------- main ----------------------------------

if __name__ == "__main__":
    # small shapes consistent with the module (gating signal is coarser than x)
    N, Cin, H, W = 2, 4, 16, 16
    Cg, Hg, Wg = 8, 4, 4
    inter = 6

    key = jax.random.PRNGKey(0)
    keys = jax.random.split(key, 8)

    params = {
        'theta_w': 0.1 * jax.random.normal(keys[0], (inter, Cin, 2, 2), jnp.float32),
        'phi_w':   0.1 * jax.random.normal(keys[1], (inter, Cg, 1, 1), jnp.float32),
        'phi_b':   0.1 * jax.random.normal(keys[2], (inter,), jnp.float32),
        'psi_w':   0.1 * jax.random.normal(keys[3], (1, inter, 1, 1), jnp.float32),
        'psi_b':   0.1 * jax.random.normal(keys[4], (1,), jnp.float32),
        'W_w':     0.1 * jax.random.normal(keys[5], (Cin, Cin, 1, 1), jnp.float32),
        'W_b':     0.1 * jax.random.normal(keys[6], (Cin,), jnp.float32),
        'bn_gamma': jnp.ones((Cin,), jnp.float32),   # PyTorch BN default init
        'bn_beta':  jnp.zeros((Cin,), jnp.float32),
    }

    x = jax.random.normal(keys[7], (N, Cin, H, W), jnp.float32)
    g = jax.random.normal(jax.random.PRNGKey(1), (N, Cg, Hg, Wg), jnp.float32)

    out = jax.jit(attention_block_forward)(x, g, params)
    out = jax.block_until_ready(out)

    ref = attention_block_reference(x, g, params)
    assert out.shape == (N, Cin, H, W)
    assert bool(jnp.all(jnp.isfinite(out)))
    assert bool(jnp.allclose(out, ref, atol=2e-3, rtol=2e-3))

    print("KERNEL_OK")
</pallas_src>

<mosaic_0001>
module attributes {stable_mosaic.version = 11 : i64} {
  func.func @_attn_coeff_kernel(%arg0: i32, %arg1: i32, %arg2: memref<4x8x2x16xf32, #tpu.memory_space<vmem>>, %arg3: memref<8x4x4xf32, #tpu.memory_space<vmem>>, %arg4: memref<2x16x8xf32, #tpu.memory_space<vmem>>, %arg5: memref<24x4x1x1xf32, #tpu.memory_space<vmem>>, %arg6: memref<6x8x1x1xf32, #tpu.memory_space<vmem>>, %arg7: memref<6x1x1xf32, #tpu.memory_space<vmem>>, %arg8: memref<8x4xf32, #tpu.memory_space<vmem>>, %arg9: memref<4x8xf32, #tpu.memory_space<vmem>>, %arg10: memref<6x1x1xf32, #tpu.memory_space<vmem>>, %arg11: memref<1x1xf32, #tpu.memory_space<vmem>>, %arg12: memref<1x8x8xf32, #tpu.memory_space<vmem>>) attributes {dimension_semantics = [#tpu.dimension_semantics<parallel>, #tpu.dimension_semantics<parallel>], iteration_bounds = array<i64: 2, 1>, scalar_prefetch = 0 : i64, scratch_operands = 0 : i64, tpu.core_type = #tpu.core_type<tc>, window_params = [{transform_indices = @transform_0, window_bounds = array<i64: 4, 8, 2, 16>}, {transform_indices = @transform_1, window_bounds = array<i64: 8, 4, 4>}, {pipeline_mode = #tpu.pipeline_mode<synchronous>, transform_indices = @transform_2, window_bounds = array<i64: 2, 16, 8>}, {pipeline_mode = #tpu.pipeline_mode<synchronous>, transform_indices = @transform_3, window_bounds = array<i64: 24, 4, 1, 1>}, {pipeline_mode = #tpu.pipeline_mode<synchronous>, transform_indices = @transform_4, window_bounds = array<i64: 6, 8, 1, 1>}, {pipeline_mode = #tpu.pipeline_mode<synchronous>, transform_indices = @transform_5, window_bounds = array<i64: 6, 1, 1>}, {transform_indices = @transform_6, window_bounds = array<i64: 8, 4>}, {pipeline_mode = #tpu.pipeline_mode<synchronous>, transform_indices = @transform_7, window_bounds = array<i64: 4, 8>}, {pipeline_mode = #tpu.pipeline_mode<synchronous>, transform_indices = @transform_8, window_bounds = array<i64: 6, 1, 1>}, {pipeline_mode = #tpu.pipeline_mode<synchronous>, transform_indices = @transform_9, window_bounds = array<i64: 1, 1>}, {transform_indices = @transform_10, window_bounds = array<i64: 1, 8, 8>}]} {
    %c0 = arith.constant 0 : index
    %c0_0 = arith.constant 0 : index
    %c0_1 = arith.constant 0 : index
    %c0_2 = arith.constant 0 : index
    %0 = vector.load %arg2[%c0, %c0_0, %c0_1, %c0_2] : memref<4x8x2x16xf32, #tpu.memory_space<vmem>>, vector<4x8x2x16xf32>
    %cst = arith.constant 0.000000e+00 : f32
    %1 = vector.broadcast %cst : f32 to vector<6x8x8xf32>
    %2 = vector.extract_strided_slice %0 {offsets = [0, 0, 0, 0], sizes = [4, 8, 1, 16], strides = [1, 1, 1, 1]} : vector<4x8x2x16xf32> to vector<4x8x1x16xf32>
    %3 = vector.shape_cast %2 : vector<4x8x1x16xf32> to vector<4x8x16xf32>
    %4 = vector.shape_cast %3 : vector<4x8x16xf32> to vector<32x16xf32>
    %c0_3 = arith.constant 0 : index
    %c0_4 = arith.constant 0 : index
    %c0_5 = arith.constant 0 : index
    %5 = vector.load %arg4[%c0_3, %c0_4, %c0_5] : memref<2x16x8xf32, #tpu.memory_space<vmem>>, vector<1x16x8xf32>
    %6 = vector.shape_cast %5 : vector<1x16x8xf32> to vector<16x8xf32>
    %cst_6 = arith.constant dense<0.000000e+00> : vector<32x8xf32>
    %7 = tpu.matmul %4, %6, %cst_6 {dimension_numbers = #tpu.dot_dimension_numbers<[1], [0], [0], [1], [0, 0, 1, 1], [], []>} : vector<32x16xf32>, vector<16x8xf32>, vector<32x8xf32> -> vector<32x8xf32>
    %8 = vector.shape_cast %7 : vector<32x8xf32> to vector<4x8x8xf32>
    %c0_7 = arith.constant 0 : index
    %c0_8 = arith.constant 0 : index
    %c0_9 = arith.constant 0 : index
    %c0_10 = arith.constant 0 : index
    %9 = vector.load %arg5[%c0_7, %c0_8, %c0_9, %c0_10] : memref<24x4x1x1xf32, #tpu.memory_space<vmem>>, vector<6x4x1x1xf32>
    %10 = vector.shape_cast %8 : vector<4x8x8xf32> to vector<1x4x8x8xf32>
    %11 = vector.broadcast %9 : vector<6x4x1x1xf32> to vector<6x4x8x8xf32>
    %12 = vector.broadcast %10 : vector<1x4x8x8xf32> to vector<6x4x8x8xf32>
    %13 = arith.mulf %11, %12 : vector<6x4x8x8xf32>
    %cst_11 = arith.constant dense<0.000000e+00> : vector<6x8x8xf32>
    %14 = vector.multi_reduction <add>, %13, %cst_11 [1] : vector<6x4x8x8xf32> to vector<6x8x8xf32>
    %15 = arith.addf %1, %14 : vector<6x8x8xf32>
    %c1 = arith.constant 1 : index
    %c0_12 = arith.constant 0 : index
    %c0_13 = arith.constant 0 : index
    %16 = vector.load %arg4[%c1, %c0_12, %c0_13] : memref<2x16x8xf32, #tpu.memory_space<vmem>>, vector<1x16x8xf32>
    %17 = vector.shape_cast %16 : vector<1x16x8xf32> to vector<16x8xf32>
    %cst_14 = arith.constant dense<0.000000e+00> : vector<32x8xf32>
    %18 = tpu.matmul %4, %17, %cst_14 {dimension_numbers = #tpu.dot_dimension_numbers<[1], [0], [0], [1], [0, 0, 1, 1], [], []>} : vector<32x16xf32>, vector<16x8xf32>, vector<32x8xf32> -> vector<32x8xf32>
    %19 = vector.shape_cast %18 : vector<32x8xf32> to vector<4x8x8xf32>
    %c6 = arith.constant 6 : index
    %c0_15 = arith.constant 0 : index
    %c0_16 = arith.constant 0 : index
    %c0_17 = arith.constant 0 : index
    %20 = vector.load %arg5[%c6, %c0_15, %c0_16, %c0_17] : memref<24x4x1x1xf32, #tpu.memory_space<vmem>>, vector<6x4x1x1xf32>
    %21 = vector.shape_cast %19 : vector<4x8x8xf32> to vector<1x4x8x8xf32>
    %22 = vector.broadcast %20 : vector<6x4x1x1xf32> to vector<6x4x8x8xf32>
    %23 = vector.broadcast %21 : vector<1x4x8x8xf32> to vector<6x4x8x8xf32>
    %24 = arith.mulf %22, %23 : vector<6x4x8x8xf32>
    %cst_18 = arith.constant dense<0.000000e+00> : vector<6x8x8xf32>
    %25 = vector.multi_reduction <add>, %24, %cst_18 [1] : vector<6x4x8x8xf32> to vector<6x8x8xf32>
    %26 = arith.addf %15, %25 : vector<6x8x8xf32>
    %27 = vector.extract_strided_slice %0 {offsets = [0, 0, 1, 0], sizes = [4, 8, 1, 16], strides = [1, 1, 1, 1]} : vector<4x8x2x16xf32> to vector<4x8x1x16xf32>
    %28 = vector.shape_cast %27 : vector<4x8x1x16xf32> to vector<4x8x16xf32>
    %29 = vector.shape_cast %28 : vector<4x8x16xf32> to vector<32x16xf32>
    %c0_19 = arith.constant 0 : index
    %c0_20 = arith.constant 0 : index
    %c0_21 = arith.constant 0 : index
    %30 = vector.load %arg4[%c0_19, %c0_20, %c0_21] : memref<2x16x8xf32, #tpu.memory_space<vmem>>, vector<1x16x8xf32>
    %31 = vector.shape_cast %30 : vector<1x16x8xf32> to vector<16x8xf32>
    %cst_22 = arith.constant dense<0.000000e+00> : vector<32x8xf32>
    %32 = tpu.matmul %29, %31, %cst_22 {dimension_numbers = #tpu.dot_dimension_numbers<[1], [0], [0], [1], [0, 0, 1, 1], [], []>} : vector<32x16xf32>, vector<16x8xf32>, vector<32x8xf32> -> vector<32x8xf32>
    %33 = vector.shape_cast %32 : vector<32x8xf32> to vector<4x8x8xf32>
    %c12 = arith.constant 12 : index
    %c0_23 = arith.constant 0 : index
    %c0_24 = arith.constant 0 : index
    %c0_25 = arith.constant 0 : index
    %34 = vector.load %arg5[%c12, %c0_23, %c0_24, %c0_25] : memref<24x4x1x1xf32, #tpu.memory_space<vmem>>, vector<6x4x1x1xf32>
    %35 = vector.shape_cast %33 : vector<4x8x8xf32> to vector<1x4x8x8xf32>
    %36 = vector.broadcast %34 : vector<6x4x1x1xf32> to vector<6x4x8x8xf32>
    %37 = vector.broadcast %35 : vector<1x4x8x8xf32> to vector<6x4x8x8xf32>
    %38 = arith.mulf %36, %37 : vector<6x4x8x8xf32>
    %cst_26 = arith.constant dense<0.000000e+00> : vector<6x8x8xf32>
    %39 = vector.multi_reduction <add>, %38, %cst_26 [1] : vector<6x4x8x8xf32> to vector<6x8x8xf32>
    %40 = arith.addf %26, %39 : vector<6x8x8xf32>
    %c1_27 = arith.constant 1 : index
    %c0_28 = arith.constant 0 : index
    %c0_29 = arith.constant 0 : index
    %41 = vector.load %arg4[%c1_27, %c0_28, %c0_29] : memref<2x16x8xf32, #tpu.memory_space<vmem>>, vector<1x16x8xf32>
    %42 = vector.shape_cast %41 : vector<1x16x8xf32> to vector<16x8xf32>
    %cst_30 = arith.constant dense<0.000000e+00> : vector<32x8xf32>
    %43 = tpu.matmul %29, %42, %cst_30 {dimension_numbers = #tpu.dot_dimension_numbers<[1], [0], [0], [1], [0, 0, 1, 1], [], []>} : vector<32x16xf32>, vector<16x8xf32>, vector<32x8xf32> -> vector<32x8xf32>
    %44 = vector.shape_cast %43 : vector<32x8xf32> to vector<4x8x8xf32>
    %c18 = arith.constant 18 : index
    %c0_31 = arith.constant 0 : index
    %c0_32 = arith.constant 0 : index
    %c0_33 = arith.constant 0 : index
    %45 = vector.load %arg5[%c18, %c0_31, %c0_32, %c0_33] : memref<24x4x1x1xf32, #tpu.memory_space<vmem>>, vector<6x4x1x1xf32>
    %46 = vector.shape_cast %44 : vector<4x8x8xf32> to vector<1x4x8x8xf32>
    %47 = vector.broadcast %45 : vector<6x4x1x1xf32> to vector<6x4x8x8xf32>
    %48 = vector.broadcast %46 : vector<1x4x8x8xf32> to vector<6x4x8x8xf32>
    %49 = arith.mulf %47, %48 : vector<6x4x8x8xf32>
    %cst_34 = arith.constant dense<0.000000e+00> : vector<6x8x8xf32>
    %50 = vector.multi_reduction <add>, %49, %cst_34 [1] : vector<6x4x8x8xf32> to vector<6x8x8xf32>
    %51 = arith.addf %40, %50 : vector<6x8x8xf32>
    %c0_35 = arith.constant 0 : index
    %c0_36 = arith.constant 0 : index
    %c0_37 = arith.constant 0 : index
    %52 = vector.load %arg3[%c0_35, %c0_36, %c0_37] : memref<8x4x4xf32, #tpu.memory_space<vmem>>, vector<8x4x4xf32>
    %c0_38 = arith.constant 0 : index
    %c0_39 = arith.constant 0 : index
    %c0_40 = arith.constant 0 : index
    %c0_41 = arith.constant 0 : index
    %53 = vector.load %arg6[%c0_38, %c0_39, %c0_40, %c0_41] : memref<6x8x1x1xf32, #tpu.memory_space<vmem>>, vector<6x8x1x1xf32>
    %54 = vector.shape_cast %52 : vector<8x4x4xf32> to vector<1x8x4x4xf32>
    %55 = vector.broadcast %53 : vector<6x8x1x1xf32> to vector<6x8x4x4xf32>
    %56 = vector.broadcast %54 : vector<1x8x4x4xf32> to vector<6x8x4x4xf32>
    %57 = arith.mulf %55, %56 : vector<6x8x4x4xf32>
    %cst_42 = arith.constant dense<0.000000e+00> : vector<6x4x4xf32>
    %58 = vector.multi_reduction <add>, %57, %cst_42 [1] : vector<6x8x4x4xf32> to vector<6x4x4xf32>
    %c0_43 = arith.constant 0 : index
    %c0_44 = arith.constant 0 : index
    %c0_45 = arith.constant 0 : index
    %59 = vector.load %arg7[%c0_43, %c0_44, %c0_45] : memref<6x1x1xf32, #tpu.memory_space<vmem>>, vector<6x1x1xf32>
    %60 = vector.broadcast %59 : vector<6x1x1xf32> to vector<6x4x4xf32>
    %61 = arith.addf %58, %60 : vector<6x4x4xf32>
    %c0_46 = arith.constant 0 : index
    %c0_47 = arith.constant 0 : index
    %62 = vector.load %arg8[%c0_46, %c0_47] : memref<8x4xf32, #tpu.memory_space<vmem>>, vector<8x4xf32>
    %c0_48 = arith.constant 0 : index
    %c0_49 = arith.constant 0 : index
    %63 = vector.load %arg9[%c0_48, %c0_49] : memref<4x8xf32, #tpu.memory_space<vmem>>, vector<4x8xf32>
    %cst_50 = arith.constant 0.000000e+00 : f32
    %64 = vector.broadcast %cst_50 : f32 to vector<8x8xf32>
    %65 = vector.extract_strided_slice %61 {offsets = [0, 0, 0], sizes = [1, 4, 4], strides = [1, 1, 1]} : vector<6x4x4xf32> to vector<1x4x4xf32>
    %66 = vector.shape_cast %65 : vector<1x4x4xf32> to vector<4x4xf32>
    %cst_51 = arith.constant dense<0.000000e+00> : vector<8x4xf32>
    %67 = tpu.matmul %62, %66, %cst_51 {dimension_numbers = #tpu.dot_dimension_numbers<[1], [0], [0], [1], [0, 0, 1, 1], [], []>} : vector<8x4xf32>, vector<4x4xf32>, vector<8x4xf32> -> vector<8x4xf32>
    %cst_52 = arith.constant dense<0.000000e+00> : vector<8x8xf32>
    %68 = tpu.matmul %67, %63, %cst_52 {dimension_numbers = #tpu.dot_dimension_numbers<[1], [0], [0], [1], [0, 0, 1, 1], [], []>} : vector<8x4xf32>, vector<4x8xf32>, vector<8x8xf32> -> vector<8x8xf32>
    %69 = vector.extract_strided_slice %51 {offsets = [0, 0, 0], sizes = [1, 8, 8], strides = [1, 1, 1]} : vector<6x8x8xf32> to vector<1x8x8xf32>
    %70 = vector.shape_cast %69 : vector<1x8x8xf32> to vector<8x8xf32>
    %71 = arith.addf %70, %68 : vector<8x8xf32>
    %cst_53 = arith.constant 0.000000e+00 : f32
    %72 = vector.broadcast %cst_53 : f32 to vector<8x8xf32>
    %73 = arith.maximumf %71, %72 : vector<8x8xf32>
    %c0_54 = arith.constant 0 : index
    %c0_55 = arith.constant 0 : index
    %c0_56 = arith.constant 0 : index
    %74 = vector.load %arg10[%c0_54, %c0_55, %c0_56] : memref<6x1x1xf32, #tpu.memory_space<vmem>>, vector<1x1x1xf32>
    %75 = vector.shape_cast %74 : vector<1x1x1xf32> to vector<1x1xf32>
    %76 = vector.broadcast %75 : vector<1x1xf32> to vector<8x8xf32>
    %77 = arith.mulf %76, %73 : vector<8x8xf32>
    %78 = arith.addf %64, %77 : vector<8x8xf32>
    %79 = vector.extract_strided_slice %61 {offsets = [1, 0, 0], sizes = [1, 4, 4], strides = [1, 1, 1]} : vector<6x4x4xf32> to vector<1x4x4xf32>
    %80 = vector.shape_cast %79 : vector<1x4x4xf32> to vector<4x4xf32>
    %cst_57 = arith.constant dense<0.000000e+00> : vector<8x4xf32>
    %81 = tpu.matmul %62, %80, %cst_57 {dimension_numbers = #tpu.dot_dimension_numbers<[1], [0], [0], [1], [0, 0, 1, 1], [], []>} : vector<8x4xf32>, vector<4x4xf32>, vector<8x4xf32> -> vector<8x4xf32>
    %cst_58 = arith.constant dense<0.000000e+00> : vector<8x8xf32>
    %82 = tpu.matmul %81, %63, %cst_58 {dimension_numbers = #tpu.dot_dimension_numbers<[1], [0], [0], [1], [0, 0, 1, 1], [], []>} : vector<8x4xf32>, vector<4x8xf32>, vector<8x8xf32> -> vector<8x8xf32>
    %83 = vector.extract_strided_slice %51 {offsets = [1, 0, 0], sizes = [1, 8, 8], strides = [1, 1, 1]} : vector<6x8x8xf32> to vector<1x8x8xf32>
    %84 = vector.shape_cast %83 : vector<1x8x8xf32> to vector<8x8xf32>
    %85 = arith.addf %84, %82 : vector<8x8xf32>
    %cst_59 = arith.constant 0.000000e+00 : f32
    %86 = vector.broadcast %cst_59 : f32 to vector<8x8xf32>
    %87 = arith.maximumf %85, %86 : vector<8x8xf32>
    %c1_60 = arith.constant 1 : index
    %c0_61 = arith.constant 0 : index
    %c0_62 = arith.constant 0 : index
    %88 = vector.load %arg10[%c1_60, %c0_61, %c0_62] : memref<6x1x1xf32, #tpu.memory_space<vmem>>, vector<1x1x1xf32>
    %89 = vector.shape_cast %88 : vector<1x1x1xf32> to vector<1x1xf32>
    %90 = vector.broadcast %89 : vector<1x1xf32> to vector<8x8xf32>
    %91 = arith.mulf %90, %87 : vector<8x8xf32>
    %92 = arith.addf %78, %91 : vector<8x8xf32>
    %93 = vector.extract_strided_slice %61 {offsets = [2, 0, 0], sizes = [1, 4, 4], strides = [1, 1, 1]} : vector<6x4x4xf32> to vector<1x4x4xf32>
    %94 = vector.shape_cast %93 : vector<1x4x4xf32> to vector<4x4xf32>
    %cst_63 = arith.constant dense<0.000000e+00> : vector<8x4xf32>
    %95 = tpu.matmul %62, %94, %cst_63 {dimension_numbers = #tpu.dot_dimension_numbers<[1], [0], [0], [1], [0, 0, 1, 1], [], []>} : vector<8x4xf32>, vector<4x4xf32>, vector<8x4xf32> -> vector<8x4xf32>
    %cst_64 = arith.constant dense<0.000000e+00> : vector<8x8xf32>
    %96 = tpu.matmul %95, %63, %cst_64 {dimension_numbers = #tpu.dot_dimension_numbers<[1], [0], [0], [1], [0, 0, 1, 1], [], []>} : vector<8x4xf32>, vector<4x8xf32>, vector<8x8xf32> -> vector<8x8xf32>
    %97 = vector.extract_strided_slice %51 {offsets = [2, 0, 0], sizes = [1, 8, 8], strides = [1, 1, 1]} : vector<6x8x8xf32> to vector<1x8x8xf32>
    %98 = vector.shape_cast %97 : vector<1x8x8xf32> to vector<8x8xf32>
    %99 = arith.addf %98, %96 : vector<8x8xf32>
    %cst_65 = arith.constant 0.000000e+00 : f32
    %100 = vector.broadcast %cst_65 : f32 to vector<8x8xf32>
    %101 = arith.maximumf %99, %100 : vector<8x8xf32>
    %c2 = arith.constant 2 : index
    %c0_66 = arith.constant 0 : index
    %c0_67 = arith.constant 0 : index
    %102 = vector.load %arg10[%c2, %c0_66, %c0_67] : memref<6x1x1xf32, #tpu.memory_space<vmem>>, vector<1x1x1xf32>
    %103 = vector.shape_cast %102 : vector<1x1x1xf32> to vector<1x1xf32>
    %104 = vector.broadcast %103 : vector<1x1xf32> to vector<8x8xf32>
    %105 = arith.mulf %104, %101 : vector<8x8xf32>
    %106 = arith.addf %92, %105 : vector<8x8xf32>
    %107 = vector.extract_strided_slice %61 {offsets = [3, 0, 0], sizes = [1, 4, 4], strides = [1, 1, 1]} : vector<6x4x4xf32> to vector<1x4x4xf32>
    %108 = vector.shape_cast %107 : vector<1x4x4xf32> to vector<4x4xf32>
    %cst_68 = arith.constant dense<0.000000e+00> : vector<8x4xf32>
    %109 = tpu.matmul %62, %108, %cst_68 {dimension_numbers = #tpu.dot_dimension_numbers<[1], [0], [0], [1], [0, 0, 1, 1], [], []>} : vector<8x4xf32>, vector<4x4xf32>, vector<8x4xf32> -> vector<8x4xf32>
    %cst_69 = arith.constant dense<0.000000e+00> : vector<8x8xf32>
    %110 = tpu.matmul %109, %63, %cst_69 {dimension_numbers = #tpu.dot_dimension_numbers<[1], [0], [0], [1], [0, 0, 1, 1], [], []>} : vector<8x4xf32>, vector<4x8xf32>, vector<8x8xf32> -> vector<8x8xf32>
    %111 = vector.extract_strided_slice %51 {offsets = [3, 0, 0], sizes = [1, 8, 8], strides = [1, 1, 1]} : vector<6x8x8xf32> to vector<1x8x8xf32>
    %112 = vector.shape_cast %111 : vector<1x8x8xf32> to vector<8x8xf32>
    %113 = arith.addf %112, %110 : vector<8x8xf32>
    %cst_70 = arith.constant 0.000000e+00 : f32
    %114 = vector.broadcast %cst_70 : f32 to vector<8x8xf32>
    %115 = arith.maximumf %113, %114 : vector<8x8xf32>
    %c3 = arith.constant 3 : index
    %c0_71 = arith.constant 0 : index
    %c0_72 = arith.constant 0 : index
    %116 = vector.load %arg10[%c3, %c0_71, %c0_72] : memref<6x1x1xf32, #tpu.memory_space<vmem>>, vector<1x1x1xf32>
    %117 = vector.shape_cast %116 : vector<1x1x1xf32> to vector<1x1xf32>
    %118 = vector.broadcast %117 : vector<1x1xf32> to vector<8x8xf32>
    %119 = arith.mulf %118, %115 : vector<8x8xf32>
    %120 = arith.addf %106, %119 : vector<8x8xf32>
    %121 = vector.extract_strided_slice %61 {offsets = [4, 0, 0], sizes = [1, 4, 4], strides = [1, 1, 1]} : vector<6x4x4xf32> to vector<1x4x4xf32>
    %122 = vector.shape_cast %121 : vector<1x4x4xf32> to vector<4x4xf32>
    %cst_73 = arith.constant dense<0.000000e+00> : vector<8x4xf32>
    %123 = tpu.matmul %62, %122, %cst_73 {dimension_numbers = #tpu.dot_dimension_numbers<[1], [0], [0], [1], [0, 0, 1, 1], [], []>} : vector<8x4xf32>, vector<4x4xf32>, vector<8x4xf32> -> vector<8x4xf32>
    %cst_74 = arith.constant dense<0.000000e+00> : vector<8x8xf32>
    %124 = tpu.matmul %123, %63, %cst_74 {dimension_numbers = #tpu.dot_dimension_numbers<[1], [0], [0], [1], [0, 0, 1, 1], [], []>} : vector<8x4xf32>, vector<4x8xf32>, vector<8x8xf32> -> vector<8x8xf32>
    %125 = vector.extract_strided_slice %51 {offsets = [4, 0, 0], sizes = [1, 8, 8], strides = [1, 1, 1]} : vector<6x8x8xf32> to vector<1x8x8xf32>
    %126 = vector.shape_cast %125 : vector<1x8x8xf32> to vector<8x8xf32>
    %127 = arith.addf %126, %124 : vector<8x8xf32>
    %cst_75 = arith.constant 0.000000e+00 : f32
    %128 = vector.broadcast %cst_75 : f32 to vector<8x8xf32>
    %129 = arith.maximumf %127, %128 : vector<8x8xf32>
    %c4 = arith.constant 4 : index
    %c0_76 = arith.constant 0 : index
    %c0_77 = arith.constant 0 : index
    %130 = vector.load %arg10[%c4, %c0_76, %c0_77] : memref<6x1x1xf32, #tpu.memory_space<vmem>>, vector<1x1x1xf32>
    %131 = vector.shape_cast %130 : vector<1x1x1xf32> to vector<1x1xf32>
    %132 = vector.broadcast %131 : vector<1x1xf32> to vector<8x8xf32>
    %133 = arith.mulf %132, %129 : vector<8x8xf32>
    %134 = arith.addf %120, %133 : vector<8x8xf32>
    %135 = vector.extract_strided_slice %61 {offsets = [5, 0, 0], sizes = [1, 4, 4], strides = [1, 1, 1]} : vector<6x4x4xf32> to vector<1x4x4xf32>
    %136 = vector.shape_cast %135 : vector<1x4x4xf32> to vector<4x4xf32>
    %cst_78 = arith.constant dense<0.000000e+00> : vector<8x4xf32>
    %137 = tpu.matmul %62, %136, %cst_78 {dimension_numbers = #tpu.dot_dimension_numbers<[1], [0], [0], [1], [0, 0, 1, 1], [], []>} : vector<8x4xf32>, vector<4x4xf32>, vector<8x4xf32> -> vector<8x4xf32>
    %cst_79 = arith.constant dense<0.000000e+00> : vector<8x8xf32>
    %138 = tpu.matmul %137, %63, %cst_79 {dimension_numbers = #tpu.dot_dimension_numbers<[1], [0], [0], [1], [0, 0, 1, 1], [], []>} : vector<8x4xf32>, vector<4x8xf32>, vector<8x8xf32> -> vector<8x8xf32>
    %139 = vector.extract_strided_slice %51 {offsets = [5, 0, 0], sizes = [1, 8, 8], strides = [1, 1, 1]} : vector<6x8x8xf32> to vector<1x8x8xf32>
    %140 = vector.shape_cast %139 : vector<1x8x8xf32> to vector<8x8xf32>
    %141 = arith.addf %140, %138 : vector<8x8xf32>
    %cst_80 = arith.constant 0.000000e+00 : f32
    %142 = vector.broadcast %cst_80 : f32 to vector<8x8xf32>
    %143 = arith.maximumf %141, %142 : vector<8x8xf32>
    %c5 = arith.constant 5 : index
    %c0_81 = arith.constant 0 : index
    %c0_82 = arith.constant 0 : index
    %144 = vector.load %arg10[%c5, %c0_81, %c0_82] : memref<6x1x1xf32, #tpu.memory_space<vmem>>, vector<1x1x1xf32>
    %145 = vector.shape_cast %144 : vector<1x1x1xf32> to vector<1x1xf32>
    %146 = vector.broadcast %145 : vector<1x1xf32> to vector<8x8xf32>
    %147 = arith.mulf %146, %143 : vector<8x8xf32>
    %148 = arith.addf %134, %147 : vector<8x8xf32>
    %c0_83 = arith.constant 0 : index
    %c0_84 = arith.constant 0 : index
    %149 = vector.load %arg11[%c0_83, %c0_84] : memref<1x1xf32, #tpu.memory_space<vmem>>, vector<1x1xf32>
    %150 = vector.broadcast %149 : vector<1x1xf32> to vector<8x8xf32>
    %151 = arith.addf %148, %150 : vector<8x8xf32>
    %152 = arith.negf %151 : vector<8x8xf32>
    %153 = math.exp %152 : vector<8x8xf32>
    %cst_85 = arith.constant 1.000000e+00 : f32
    %154 = vector.broadcast %cst_85 : f32 to vector<8x8xf32>
    %155 = arith.addf %154, %153 : vector<8x8xf32>
    %156 = arith.divf %154, %155 : vector<8x8xf32>
    %c0_86 = arith.constant 0 : index
    %c0_87 = arith.constant 0 : index
    %c0_88 = arith.constant 0 : index
    %157 = vector.load %arg12[%c0_86, %c0_87, %c0_88] : memref<1x8x8xf32, #tpu.memory_space<vmem>>, vector<1x8x8xf32>
    %158 = vector.shape_cast %157 : vector<1x8x8xf32> to vector<8x8xf32>
    %159 = vector.shape_cast %156 : vector<8x8xf32> to vector<1x8x8xf32>
    tpu.vector_store %arg12[%c0_86, %c0_87, %c0_88], %159 {strides = array<i32>} : memref<1x8x8xf32, #tpu.memory_space<vmem>>, vector<1x8x8xf32>,
    return
  }
  func.func @transform_0(%arg0: i32, %arg1: i32) -> (i32, i32, i32, i32) {
    %c0_i32 = arith.constant 0 : i32
    %c0_i32_0 = arith.constant 0 : i32
    %c0_i32_1 = arith.constant 0 : i32
    return %arg0, %arg1, %c0_i32, %c0_i32_0 : i32, i32, i32, i32
  }
  func.func @transform_1(%arg0: i32, %arg1: i32) -> (i32, i32, i32) {
    %c0_i32 = arith.constant 0 : i32
    %c0_i32_0 = arith.constant 0 : i32
    %c0_i32_1 = arith.constant 0 : i32
    return %arg0, %c0_i32, %c0_i32_0 : i32, i32, i32
  }
  func.func @transform_2(%arg0: i32, %arg1: i32) -> (i32, i32, i32) {
    %c0_i32 = arith.constant 0 : i32
    %c0_i32_0 = arith.constant 0 : i32
    %c0_i32_1 = arith.constant 0 : i32
    %c0_i32_2 = arith.constant 0 : i32
    return %c0_i32, %c0_i32_0, %c0_i32_1 : i32, i32, i32
  }
  func.func @transform_3(%arg0: i32, %arg1: i32) -> (i32, i32, i32, i32) {
    %c0_i32 = arith.constant 0 : i32
    %c0_i32_0 = arith.constant 0 : i32
    %c0_i32_1 = arith.constant 0 : i32
    %c0_i32_2 = arith.constant 0 : i32
    %c0_i32_3 = arith.constant 0 : i32
    return %c0_i32, %c0_i32_0, %c0_i32_1, %c0_i32_2 : i32, i32, i32, i32
  }
  func.func @transform_4(%arg0: i32, %arg1: i32) -> (i32, i32, i32, i32) {
    %c0_i32 = arith.constant 0 : i32
    %c0_i32_0 = arith.constant 0 : i32
    %c0_i32_1 = arith.constant 0 : i32
    %c0_i32_2 = arith.constant 0 : i32
    %c0_i32_3 = arith.constant 0 : i32
    return %c0_i32, %c0_i32_0, %c0_i32_1, %c0_i32_2 : i32, i32, i32, i32
  }
  func.func @transform_5(%arg0: i32, %arg1: i32) -> (i32, i32, i32) {
    %c0_i32 = arith.constant 0 : i32
    %c0_i32_0 = arith.constant 0 : i32
    %c0_i32_1 = arith.constant 0 : i32
    %c0_i32_2 = arith.constant 0 : i32
    return %c0_i32, %c0_i32_0, %c0_i32_1 : i32, i32, i32
  }
  func.func @transform_6(%arg0: i32, %arg1: i32) -> (i32, i32) {
    %c0_i32 = arith.constant 0 : i32
    %c0_i32_0 = arith.constant 0 : i32
    return %arg1, %c0_i32 : i32, i32
  }
  func.func @transform_7(%arg0: i32, %arg1: i32) -> (i32, i32) {
    %c0_i32 = arith.constant 0 : i32
    %c0_i32_0 = arith.constant 0 : i32
    %c0_i32_1 = arith.constant 0 : i32
    return %c0_i32, %c0_i32_0 : i32, i32
  }
  func.func @transform_8(%arg0: i32, %arg1: i32) -> (i32, i32, i32) {
    %c0_i32 = arith.constant 0 : i32
    %c0_i32_0 = arith.constant 0 : i32
    %c0_i32_1 = arith.constant 0 : i32
    %c0_i32_2 = arith.constant 0 : i32
    return %c0_i32, %c0_i32_0, %c0_i32_1 : i32, i32, i32
  }
  func.func @transform_9(%arg0: i32, %arg1: i32) -> (i32, i32) {
    %c0_i32 = arith.constant 0 : i32
    %c0_i32_0 = arith.constant 0 : i32
    %c0_i32_1 = arith.constant 0 : i32
    return %c0_i32, %c0_i32_0 : i32, i32
  }
  func.func @transform_10(%arg0: i32, %arg1: i32) -> (i32, i32, i32) {
    %c0_i32 = arith.constant 0 : i32
    %c0_i32_0 = arith.constant 0 : i32
    return %arg0, %arg1, %c0_i32 : i32, i32, i32
  }
}

module attributes {stable_mosaic.version = 11 : i64} {
  func.func @_bn_stats_kernel(%arg0: i32, %arg1: i32, %arg2: memref<4x8x16xf32, #tpu.memory_space<vmem>>, %arg3: memref<1x8x8xf32, #tpu.memory_space<vmem>>, %arg4: memref<8x8xf32, #tpu.memory_space<vmem>>, %arg5: memref<8x16xf32, #tpu.memory_space<vmem>>, %arg6: memref<4x4x1x1xf32, #tpu.memory_space<vmem>>, %arg7: memref<4x1x1xf32, #tpu.memory_space<vmem>>, %arg8: memref<1x4x2xf32, #tpu.memory_space<vmem>>) attributes {dimension_semantics = [#tpu.dimension_semantics<parallel>, #tpu.dimension_semantics<arbitrary>], iteration_bounds = array<i64: 2, 2>, scalar_prefetch = 0 : i64, scratch_operands = 0 : i64, tpu.core_type = #tpu.core_type<tc>, window_params = [{transform_indices = @transform_0, window_bounds = array<i64: 4, 8, 16>}, {transform_indices = @transform_1, window_bounds = array<i64: 1, 8, 8>}, {transform_indices = @transform_2, window_bounds = array<i64: 8, 8>}, {pipeline_mode = #tpu.pipeline_mode<synchronous>, transform_indices = @transform_3, window_bounds = array<i64: 8, 16>}, {pipeline_mode = #tpu.pipeline_mode<synchronous>, transform_indices = @transform_4, window_bounds = array<i64: 4, 4, 1, 1>}, {pipeline_mode = #tpu.pipeline_mode<synchronous>, transform_indices = @transform_5, window_bounds = array<i64: 4, 1, 1>}, {transform_indices = @transform_6, window_bounds = array<i64: 1, 4, 2>}]} {
    %c0 = arith.constant 0 : index
    %c0_0 = arith.constant 0 : index
    %c0_1 = arith.constant 0 : index
    %0 = vector.load %arg2[%c0, %c0_0, %c0_1] : memref<4x8x16xf32, #tpu.memory_space<vmem>>, vector<4x8x16xf32>
    %c0_2 = arith.constant 0 : index
    %c0_3 = arith.constant 0 : index
    %c0_4 = arith.constant 0 : index
    %1 = vector.load %arg3[%c0_2, %c0_3, %c0_4] : memref<1x8x8xf32, #tpu.memory_space<vmem>>, vector<1x8x8xf32>
    %2 = vector.shape_cast %1 : vector<1x8x8xf32> to vector<8x8xf32>
    %c0_5 = arith.constant 0 : index
    %c0_6 = arith.constant 0 : index
    %3 = vector.load %arg4[%c0_5, %c0_6] : memref<8x8xf32, #tpu.memory_space<vmem>>, vector<8x8xf32>
    %cst = arith.constant dense<0.000000e+00> : vector<8x8xf32>
    %4 = tpu.matmul %3, %2, %cst {dimension_numbers = #tpu.dot_dimension_numbers<[1], [0], [0], [1], [0, 0, 1, 1], [], []>} : vector<8x8xf32>, vector<8x8xf32>, vector<8x8xf32> -> vector<8x8xf32>
    %c0_7 = arith.constant 0 : index
    %c0_8 = arith.constant 0 : index
    %5 = vector.load %arg5[%c0_7, %c0_8] : memref<8x16xf32, #tpu.memory_space<vmem>>, vector<8x16xf32>
    %cst_9 = arith.constant dense<0.000000e+00> : vector<8x16xf32>
    %6 = tpu.matmul %4, %5, %cst_9 {dimension_numbers = #tpu.dot_dimension_numbers<[1], [0], [0], [1], [0, 0, 1, 1], [], []>} : vector<8x8xf32>, vector<8x16xf32>, vector<8x16xf32> -> vector<8x16xf32>
    %7 = vector.shape_cast %6 : vector<8x16xf32> to vector<1x8x16xf32>
    %8 = vector.broadcast %7 : vector<1x8x16xf32> to vector<4x8x16xf32>
    %9 = arith.mulf %8, %0 : vector<4x8x16xf32>
    %c0_10 = arith.constant 0 : index
    %c0_11 = arith.constant 0 : index
    %c0_12 = arith.constant 0 : index
    %c0_13 = arith.constant 0 : index
    %10 = vector.load %arg6[%c0_10, %c0_11, %c0_12, %c0_13] : memref<4x4x1x1xf32, #tpu.memory_space<vmem>>, vector<4x4x1x1xf32>
    %11 = vector.shape_cast %9 : vector<4x8x16xf32> to vector<1x4x8x16xf32>
    %12 = vector.broadcast %10 : vector<4x4x1x1xf32> to vector<4x4x8x16xf32>
    %13 = vector.broadcast %11 : vector<1x4x8x16xf32> to vector<4x4x8x16xf32>
    %14 = arith.mulf %12, %13 : vector<4x4x8x16xf32>
    %cst_14 = arith.constant dense<0.000000e+00> : vector<4x8x16xf32>
    %15 = vector.multi_reduction <add>, %14, %cst_14 [1] : vector<4x4x8x16xf32> to vector<4x8x16xf32>
    %c0_15 = arith.constant 0 : index
    %c0_16 = arith.constant 0 : index
    %c0_17 = arith.constant 0 : index
    %16 = vector.load %arg7[%c0_15, %c0_16, %c0_17] : memref<4x1x1xf32, #tpu.memory_space<vmem>>, vector<4x1x1xf32>
    %17 = vector.broadcast %16 : vector<4x1x1xf32> to vector<4x8x16xf32>
    %18 = arith.addf %15, %17 : vector<4x8x16xf32>
    %cst_18 = arith.constant dense<0.000000e+00> : vector<4x8xf32>
    %19 = vector.multi_reduction <add>, %18, %cst_18 [2] : vector<4x8x16xf32> to vector<4x8xf32>
    %cst_19 = arith.constant dense<0.000000e+00> : vector<4xf32>
    %20 = vector.multi_reduction <add>, %19, %cst_19 [1] : vector<4x8xf32> to vector<4xf32>
    %21 = vector.shape_cast %20 : vector<4xf32> to vector<4x1xf32>
    %22 = arith.mulf %18, %18 : vector<4x8x16xf32>
    %cst_20 = arith.constant dense<0.000000e+00> : vector<4x8xf32>
    %23 = vector.multi_reduction <add>, %22, %cst_20 [2] : vector<4x8x16xf32> to vector<4x8xf32>
    %cst_21 = arith.constant dense<0.000000e+00> : vector<4xf32>
    %24 = vector.multi_reduction <add>, %23, %cst_21 [1] : vector<4x8xf32> to vector<4xf32>
    %25 = vector.shape_cast %24 : vector<4xf32> to vector<4x1xf32>
    %26 = tpu.concatenate %21, %25 in 1 : vector<4x1xf32>, vector<4x1xf32> -> vector<4x2xf32>
    %c0_i32 = arith.constant 0 : i32
    %27 = arith.cmpi eq, %arg1, %c0_i32 : i32
    %28 = arith.extui %27 : i1 to i32
    %c0_i32_22 = arith.constant 0 : i32
    %29 = arith.cmpi ne, %28, %c0_i32_22 : i32
    scf.if %29 {
      %cst_29 = arith.constant 0.000000e+00 : f32
      %34 = vector.broadcast %cst_29 : f32 to vector<1x4x2xf32>
      %c0_30 = arith.constant 0 : index
      %c0_31 = arith.constant 0 : index
      %c0_32 = arith.constant 0 : index
      %35 = vector.load %arg8[%c0_30, %c0_31, %c0_32] : memref<1x4x2xf32, #tpu.memory_space<vmem>>, vector<1x4x2xf32>
      tpu.vector_store %arg8[%c0_30, %c0_31, %c0_32], %34 {strides = array<i32>} : memref<1x4x2xf32, #tpu.memory_space<vmem>>, vector<1x4x2xf32>,
    } else {
    }
    %c0_23 = arith.constant 0 : index
    %c0_24 = arith.constant 0 : index
    %c0_25 = arith.constant 0 : index
    %30 = vector.load %arg8[%c0_23, %c0_24, %c0_25] : memref<1x4x2xf32, #tpu.memory_space<vmem>>, vector<1x4x2xf32>
    %31 = vector.shape_cast %26 : vector<4x2xf32> to vector<1x4x2xf32>
    %32 = arith.addf %30, %31 : vector<1x4x2xf32>
    %c0_26 = arith.constant 0 : index
    %c0_27 = arith.constant 0 : index
    %c0_28 = arith.constant 0 : index
    %33 = vector.load %arg8[%c0_26, %c0_27, %c0_28] : memref<1x4x2xf32, #tpu.memory_space<vmem>>, vector<1x4x2xf32>
    tpu.vector_store %arg8[%c0_26, %c0_27, %c0_28], %32 {strides = array<i32>} : memref<1x4x2xf32, #tpu.memory_space<vmem>>, vector<1x4x2xf32>,
    return
  }
  func.func @transform_0(%arg0: i32, %arg1: i32) -> (i32, i32, i32) {
    %c0_i32 = arith.constant 0 : i32
    %c0_i32_0 = arith.constant 0 : i32
    return %arg0, %arg1, %c0_i32 : i32, i32, i32
  }
  func.func @transform_1(%arg0: i32, %arg1: i32) -> (i32, i32, i32) {
    %c0_i32 = arith.constant 0 : i32
    %c0_i32_0 = arith.constant 0 : i32
    %c0_i32_1 = arith.constant 0 : i32
    return %arg0, %c0_i32, %c0_i32_0 : i32, i32, i32
  }
  func.func @transform_2(%arg0: i32, %arg1: i32) -> (i32, i32) {
    %c0_i32 = arith.constant 0 : i32
    %c0_i32_0 = arith.constant 0 : i32
    return %arg1, %c0_i32 : i32, i32
  }
  func.func @transform_3(%arg0: i32, %arg1: i32) -> (i32, i32) {
    %c0_i32 = arith.constant 0 : i32
    %c0_i32_0 = arith.constant 0 : i32
    %c0_i32_1 = arith.constant 0 : i32
    return %c0_i32, %c0_i32_0 : i32, i32
  }
  func.func @transform_4(%arg0: i32, %arg1: i32) -> (i32, i32, i32, i32) {
    %c0_i32 = arith.constant 0 : i32
    %c0_i32_0 = arith.constant 0 : i32
    %c0_i32_1 = arith.constant 0 : i32
    %c0_i32_2 = arith.constant 0 : i32
    %c0_i32_3 = arith.constant 0 : i32
    return %c0_i32, %c0_i32_0, %c0_i32_1, %c0_i32_2 : i32, i32, i32, i32
  }
  func.func @transform_5(%arg0: i32, %arg1: i32) -> (i32, i32, i32) {
    %c0_i32 = arith.constant 0 : i32
    %c0_i32_0 = arith.constant 0 : i32
    %c0_i32_1 = arith.constant 0 : i32
    %c0_i32_2 = arith.constant 0 : i32
    return %c0_i32, %c0_i32_0, %c0_i32_1 : i32, i32, i32
  }
  func.func @transform_6(%arg0: i32, %arg1: i32) -> (i32, i32, i32) {
    %c0_i32 = arith.constant 0 : i32
    %c0_i32_0 = arith.constant 0 : i32
    %c0_i32_1 = arith.constant 0 : i32
    return %arg0, %c0_i32, %c0_i32_0 : i32, i32, i32
  }
}

module attributes {stable_mosaic.version = 11 : i64} {
  func.func @_gate_out_kernel(%arg0: i32, %arg1: i32, %arg2: memref<4x8x16xf32, #tpu.memory_space<vmem>>, %arg3: memref<1x8x8xf32, #tpu.memory_space<vmem>>, %arg4: memref<8x8xf32, #tpu.memory_space<vmem>>, %arg5: memref<8x16xf32, #tpu.memory_space<vmem>>, %arg6: memref<4x4x1x1xf32, #tpu.memory_space<vmem>>, %arg7: memref<4x1x1xf32, #tpu.memory_space<vmem>>, %arg8: memref<4x8x16xf32, #tpu.memory_space<vmem>>) attributes {dimension_semantics = [#tpu.dimension_semantics<parallel>, #tpu.dimension_semantics<parallel>], iteration_bounds = array<i64: 2, 2>, scalar_prefetch = 0 : i64, scratch_operands = 0 : i64, tpu.core_type = #tpu.core_type<tc>, window_params = [{transform_indices = @transform_0, window_bounds = array<i64: 4, 8, 16>}, {transform_indices = @transform_1, window_bounds = array<i64: 1, 8, 8>}, {transform_indices = @transform_2, window_bounds = array<i64: 8, 8>}, {pipeline_mode = #tpu.pipeline_mode<synchronous>, transform_indices = @transform_3, window_bounds = array<i64: 8, 16>}, {pipeline_mode = #tpu.pipeline_mode<synchronous>, transform_indices = @transform_4, window_bounds = array<i64: 4, 4, 1, 1>}, {pipeline_mode = #tpu.pipeline_mode<synchronous>, transform_indices = @transform_5, window_bounds = array<i64: 4, 1, 1>}, {transform_indices = @transform_6, window_bounds = array<i64: 4, 8, 16>}]} {
    %c0 = arith.constant 0 : index
    %c0_0 = arith.constant 0 : index
    %c0_1 = arith.constant 0 : index
    %0 = vector.load %arg2[%c0, %c0_0, %c0_1] : memref<4x8x16xf32, #tpu.memory_space<vmem>>, vector<4x8x16xf32>
    %c0_2 = arith.constant 0 : index
    %c0_3 = arith.constant 0 : index
    %c0_4 = arith.constant 0 : index
    %1 = vector.load %arg3[%c0_2, %c0_3, %c0_4] : memref<1x8x8xf32, #tpu.memory_space<vmem>>, vector<1x8x8xf32>
    %2 = vector.shape_cast %1 : vector<1x8x8xf32> to vector<8x8xf32>
    %c0_5 = arith.constant 0 : index
    %c0_6 = arith.constant 0 : index
    %3 = vector.load %arg4[%c0_5, %c0_6] : memref<8x8xf32, #tpu.memory_space<vmem>>, vector<8x8xf32>
    %cst = arith.constant dense<0.000000e+00> : vector<8x8xf32>
    %4 = tpu.matmul %3, %2, %cst {dimension_numbers = #tpu.dot_dimension_numbers<[1], [0], [0], [1], [0, 0, 1, 1], [], []>} : vector<8x8xf32>, vector<8x8xf32>, vector<8x8xf32> -> vector<8x8xf32>
    %c0_7 = arith.constant 0 : index
    %c0_8 = arith.constant 0 : index
    %5 = vector.load %arg5[%c0_7, %c0_8] : memref<8x16xf32, #tpu.memory_space<vmem>>, vector<8x16xf32>
    %cst_9 = arith.constant dense<0.000000e+00> : vector<8x16xf32>
    %6 = tpu.matmul %4, %5, %cst_9 {dimension_numbers = #tpu.dot_dimension_numbers<[1], [0], [0], [1], [0, 0, 1, 1], [], []>} : vector<8x8xf32>, vector<8x16xf32>, vector<8x16xf32> -> vector<8x16xf32>
    %7 = vector.shape_cast %6 : vector<8x16xf32> to vector<1x8x16xf32>
    %8 = vector.broadcast %7 : vector<1x8x16xf32> to vector<4x8x16xf32>
    %9 = arith.mulf %8, %0 : vector<4x8x16xf32>
    %c0_10 = arith.constant 0 : index
    %c0_11 = arith.constant 0 : index
    %c0_12 = arith.constant 0 : index
    %c0_13 = arith.constant 0 : index
    %10 = vector.load %arg6[%c0_10, %c0_11, %c0_12, %c0_13] : memref<4x4x1x1xf32, #tpu.memory_space<vmem>>, vector<4x4x1x1xf32>
    %11 = vector.shape_cast %9 : vector<4x8x16xf32> to vector<1x4x8x16xf32>
    %12 = vector.broadcast %10 : vector<4x4x1x1xf32> to vector<4x4x8x16xf32>
    %13 = vector.broadcast %11 : vector<1x4x8x16xf32> to vector<4x4x8x16xf32>
    %14 = arith.mulf %12, %13 : vector<4x4x8x16xf32>
    %cst_14 = arith.constant dense<0.000000e+00> : vector<4x8x16xf32>
    %15 = vector.multi_reduction <add>, %14, %cst_14 [1] : vector<4x4x8x16xf32> to vector<4x8x16xf32>
    %c0_15 = arith.constant 0 : index
    %c0_16 = arith.constant 0 : index
    %c0_17 = arith.constant 0 : index
    %16 = vector.load %arg7[%c0_15, %c0_16, %c0_17] : memref<4x1x1xf32, #tpu.memory_space<vmem>>, vector<4x1x1xf32>
    %17 = vector.broadcast %16 : vector<4x1x1xf32> to vector<4x8x16xf32>
    %18 = arith.addf %15, %17 : vector<4x8x16xf32>
    %c0_18 = arith.constant 0 : index
    %c0_19 = arith.constant 0 : index
    %c0_20 = arith.constant 0 : index
    %19 = vector.load %arg8[%c0_18, %c0_19, %c0_20] : memref<4x8x16xf32, #tpu.memory_space<vmem>>, vector<4x8x16xf32>
    tpu.vector_store %arg8[%c0_18, %c0_19, %c0_20], %18 {strides = array<i32>} : memref<4x8x16xf32, #tpu.memory_space<vmem>>, vector<4x8x16xf32>,
    return
  }
  func.func @transform_0(%arg0: i32, %arg1: i32) -> (i32, i32, i32) {
    %c0_i32 = arith.constant 0 : i32
    %c0_i32_0 = arith.constant 0 : i32
    return %arg0, %arg1, %c0_i32 : i32, i32, i32
  }
  func.func @transform_1(%arg0: i32, %arg1: i32) -> (i32, i32, i32) {
    %c0_i32 = arith.constant 0 : i32
    %c0_i32_0 = arith.constant 0 : i32
    %c0_i32_1 = arith.constant 0 : i32
    return %arg0, %c0_i32, %c0_i32_0 : i32, i32, i32
  }
  func.func @transform_2(%arg0: i32, %arg1: i32) -> (i32, i32) {
    %c0_i32 = arith.constant 0 : i32
    %c0_i32_0 = arith.constant 0 : i32
    return %arg1, %c0_i32 : i32, i32
  }
  func.func @transform_3(%arg0: i32, %arg1: i32) -> (i32, i32) {
    %c0_i32 = arith.constant 0 : i32
    %c0_i32_0 = arith.constant 0 : i32
    %c0_i32_1 = arith.constant 0 : i32
    return %c0_i32, %c0_i32_0 : i32, i32
  }
  func.func @transform_4(%arg0: i32, %arg1: i32) -> (i32, i32, i32, i32) {
    %c0_i32 = arith.constant 0 : i32
    %c0_i32_0 = arith.constant 0 : i32
    %c0_i32_1 = arith.constant 0 : i32
    %c0_i32_2 = arith.constant 0 : i32
    %c0_i32_3 = arith.constant 0 : i32
    return %c0_i32, %c0_i32_0, %c0_i32_1, %c0_i32_2 : i32, i32, i32, i32
  }
  func.func @transform_5(%arg0: i32, %arg1: i32) -> (i32, i32, i32) {
    %c0_i32 = arith.constant 0 : i32
    %c0_i32_0 = arith.constant 0 : i32
    %c0_i32_1 = arith.constant 0 : i32
    %c0_i32_2 = arith.constant 0 : i32
    return %c0_i32, %c0_i32_0, %c0_i32_1 : i32, i32, i32
  }
  func.func @transform_6(%arg0: i32, %arg1: i32) -> (i32, i32, i32) {
    %c0_i32 = arith.constant 0 : i32
    %c0_i32_0 = arith.constant 0 : i32
    return %arg0, %arg1, %c0_i32 : i32, i32, i32
  }
}

</mosaic_0001>

<llo_original>
// kernel: attention_block_forward.5
$region0: #{attention_block_forward.5}
  #allocation0 [shape = 'u32[]', space=smem, size = 0x4, offset = 0x4, fixed_abs, tag = 'smem constant byte address 0x4 - core index']
  #allocation1 [shape = 'u32[144,128]{1,0:T(1,128)}', space=vmem, size = 0x12000, scoped, tag = 'internal scratch']
  %s0 = inlined_call_operand.vmem [shape: f32[8,16,16], index: 0, kind: input, shape index: {}]
  %s1 = inlined_call_operand.vmem [shape: f32[2,8,8], index: 1, kind: input, shape index: {}]
  %s2 = inlined_call_operand.vmem [shape: f32[16,8], index: 2, kind: input, shape index: {}]
  %s3 = inlined_call_operand.vmem [shape: f32[8,16], index: 3, kind: input, shape index: {}]
  %s4 = inlined_call_operand.vmem [shape: f32[4,4,1,1], index: 4, kind: input, shape index: {}]
  %s5 = inlined_call_operand.vmem [shape: f32[4,1,1], index: 5, kind: input, shape index: {}]
  %s6 = inlined_call_operand.hbm [shape: f32[8,16,16], index: 6, kind: output, shape index: {}]
  %s7 = sld [smem:[#allocation0]]
  $region95: #{attention_block_forward.5} parent=0
    _
  %s9 = ssub.s32 1, %s7
  %s10 = scalar_select 0, %s9, %s7
  $region1: #{attention_block_forward.5} parent=0
    #allocation2 [shape = 'u8[32768]{0}', space=vmem, size = 0x8000, scoped, tag = 'input window, operand 0']
    #allocation3 [shape = 'u8[32768]{0}', space=vmem, size = 0x8000, scoped, tag = 'output window, operand 0']
    #allocation4 [shape = 's32[2]{0}', space=sflag, size = 0x8, scoped, tag = 'scoped memory for attention_block_forward.5']
    %11 = vsyncpa [#allocation4], 0
    %s12 = scalar_lea.sflag [#allocation4], 1
    %13 = vsyncpa %s12, 0
    loop: start=0, step=1, limit=6
    $region2: #{attention_block_forward.5} parent=1 // loop_pre_header
      _
    $region3: #{attention_block_forward.5} parent=1 // loop_header
      %s15 = sphi 0, %s19
      %p16 = scmp.ge.s32.totalorder %s15, 6
      %s22 = sphi 0, %s34
      %s23 = sphi 0, %s30
      %s24 = sphi 0, %s22
      %s25 = sphi 0, %s23
      %s26 = sphi 0, %s24
      %s27 = sphi 0, %s25
      %s39 = sphi 0, %s41
      %s42 = sphi 0, %s39
      %s43 = sphi 0, %s42
      %s59 = sphi 0, %s43
      %s65 = sphi 0, %s67
      %s68 = sphi 0, %s65
      %s69 = sphi 0, %s68
      %s85 = sphi 0, %s69
      %s91 = sphi 0, %s93
      %s94 = sphi 0, %s91
      %s95 = sphi 0, %s94
      %s111 = sphi 0, %s95
      %s115 = sphi 0, %s115
      %s117 = sphi 0, %s115
      %s118 = sphi 0, %s117
      %s132 = sphi 0, %s118
      %s136 = sphi 0, %s136
      %s138 = sphi 0, %s136
      %s139 = sphi 0, %s138
      %s153 = sphi 0, %s139
      %s157 = sphi 0, %s157
      %s159 = sphi 0, %s157
      %s160 = sphi 0, %s159
      %s174 = sphi 0, %s160
      %s182 = sphi 0, %s184
      %s185 = sphi 0, %s182
      %s186 = sphi 0, %s185
      %s202 = sphi 0, %s186
    $region4: #{attention_block_forward.5} parent=1 // loop_header_branch
      %18 = sbr.rel (%p16) target = $region8
    $region5: #{attention_block_forward.5} parent=1 // loop_body
      %s20 = ssub.s32 %s15, 1
      %s21 = ssub.s32 %s15, 2
      %s28 = sadd.s32 1, %s23
      %p29 = scmp.ge.s32.totalorder %s28, 2
      %s30 = scalar_select %p29, 0, %s28
      %s31 = sadd.s32 1, %s22
      %s32 = scalar_select %p29, %s31, %s22
      %p33 = scmp.ge.s32.totalorder %s32, 2
      %s34 = scalar_select %p33, 0, %s32
      %s35 = ssub.s32 %s22, %s34
      %s36 = ssub.s32 %s23, %s30
      %s37 = sor.u32 %s35, %s36
      %p38 = scmp.eq.s32.totalorder %s37, 0
      %s40 = sadd.s32 %s39, 1
      %s41 = scalar_select %p38, %s39, %s40
      %p44 = pneg %p38
      %p45 = scmp.eq.s32.totalorder %s15, 3
      %p46 = por %p44, %p45
      %p47 = scmp.ne.s32.totalorder %s39, %s42
      %p48 = scmp.eq.s32.totalorder %s15, 0
      %p49 = por %p47, %p48
      %p50 = scmp.ne.s32.totalorder %s39, %s42
      %p51 = scmp.eq.s32.totalorder %s20, 3
      %p52 = por %p50, %p51
      %p53 = scmp.ne.s32.totalorder %s42, %s43
      %p54 = scmp.eq.s32.totalorder %s20, 0
      %p55 = por %p53, %p54
      %p56 = scmp.ne.s32.totalorder %s42, %s43
      %p57 = scmp.eq.s32.totalorder %s21, 3
      %p58 = por %p56, %p57
      %p60 = scmp.ne.s32.totalorder %s43, %s59
      %p61 = scmp.eq.s32.totalorder %s21, 0
      %p62 = por %p60, %p61
      %s63 = ssub.s32 %s22, %s34
      %p64 = scmp.eq.s32.totalorder %s63, 0
      %s66 = sadd.s32 %s65, 1
      %s67 = scalar_select %p64, %s65, %s66
      %p70 = pneg %p64
      %p71 = scmp.eq.s32.totalorder %s15, 3
      %p72 = por %p70, %p71
      %p73 = scmp.ne.s32.totalorder %s65, %s68
      %p74 = scmp.eq.s32.totalorder %s15, 0
      %p75 = por %p73, %p74
      %p76 = scmp.ne.s32.totalorder %s65, %s68
      %p77 = scmp.eq.s32.totalorder %s20, 3
      %p78 = por %p76, %p77
      %p79 = scmp.ne.s32.totalorder %s68, %s69
      %p80 = scmp.eq.s32.totalorder %s20, 0
      %p81 = por %p79, %p80
      %p82 = scmp.ne.s32.totalorder %s68, %s69
      %p83 = scmp.eq.s32.totalorder %s21, 3
      %p84 = por %p82, %p83
      %p86 = scmp.ne.s32.totalorder %s69, %s85
      %p87 = scmp.eq.s32.totalorder %s21, 0
      %p88 = por %p86, %p87
      %s89 = ssub.s32 %s23, %s30
      %p90 = scmp.eq.s32.totalorder %s89, 0
      %s92 = sadd.s32 %s91, 1
      %s93 = scalar_select %p90, %s91, %s92
      %p96 = pneg %p90
      %p97 = scmp.eq.s32.totalorder %s15, 3
      %p98 = por %p96, %p97
      %p99 = scmp.ne.s32.totalorder %s91, %s94
      %p100 = scmp.eq.s32.totalorder %s15, 0
      %p101 = por %p99, %p100
      %p102 = scmp.ne.s32.totalorder %s91, %s94
      %p103 = scmp.eq.s32.totalorder %s20, 3
      %p104 = por %p102, %p103
      %p105 = scmp.ne.s32.totalorder %s94, %s95
      %p106 = scmp.eq.s32.totalorder %s20, 0
      %p107 = por %p105, %p106
      %p108 = scmp.ne.s32.totalorder %s94, %s95
      %p109 = scmp.eq.s32.totalorder %s21, 3
      %p110 = por %p108, %p109
      %p112 = scmp.ne.s32.totalorder %s95, %s111
      %p113 = scmp.eq.s32.totalorder %s21, 0
      %p114 = por %p112, %p113
      %s116 = sadd.s32 %s115, 1
      %p119 = scmp.eq.s32.totalorder %s15, 3
      %p120 = scmp.ne.s32.totalorder %s115, %s117
      %p121 = scmp.eq.s32.totalorder %s15, 0
      %p122 = por %p120, %p121
      %p123 = scmp.ne.s32.totalorder %s115, %s117
      %p124 = scmp.eq.s32.totalorder %s20, 3
      %p125 = por %p123, %p124
      %p126 = scmp.ne.s32.totalorder %s117, %s118
      %p127 = scmp.eq.s32.totalorder %s20, 0
      %p128 = por %p126, %p127
      %p129 = scmp.ne.s32.totalorder %s117, %s118
      %p130 = scmp.eq.s32.totalorder %s21, 3
      %p131 = por %p129, %p130
      %p133 = scmp.ne.s32.totalorder %s118, %s132
      %p134 = scmp.eq.s32.totalorder %s21, 0
      %p135 = por %p133, %p134
      %s137 = sadd.s32 %s136, 1
      %p140 = scmp.eq.s32.totalorder %s15, 3
      %p141 = scmp.ne.s32.totalorder %s136, %s138
      %p142 = scmp.eq.s32.totalorder %s15, 0
      %p143 = por %p141, %p142
      %p144 = scmp.ne.s32.totalorder %s136, %s138
      %p145 = scmp.eq.s32.totalorder %s20, 3
      %p146 = por %p144, %p145
      %p147 = scmp.ne.s32.totalorder %s138, %s139
      %p148 = scmp.eq.s32.totalorder %s20, 0
      %p149 = por %p147, %p148
      %p150 = scmp.ne.s32.totalorder %s138, %s139
      %p151 = scmp.eq.s32.totalorder %s21, 3
      %p152 = por %p150, %p151
      %p154 = scmp.ne.s32.totalorder %s139, %s153
      %p155 = scmp.eq.s32.totalorder %s21, 0
      %p156 = por %p154, %p155
      %s158 = sadd.s32 %s157, 1
      %p161 = scmp.eq.s32.totalorder %s15, 3
      %p162 = scmp.ne.s32.totalorder %s157, %s159
      %p163 = scmp.eq.s32.totalorder %s15, 0
      %p164 = por %p162, %p163
      %p165 = scmp.ne.s32.totalorder %s157, %s159
      %p166 = scmp.eq.s32.totalorder %s20, 3
      %p167 = por %p165, %p166
      %p168 = scmp.ne.s32.totalorder %s159, %s160
      %p169 = scmp.eq.s32.totalorder %s20, 0
      %p170 = por %p168, %p169
      %p171 = scmp.ne.s32.totalorder %s159, %s160
      %p172 = scmp.eq.s32.totalorder %s21, 3
      %p173 = por %p171, %p172
      %p175 = scmp.ne.s32.totalorder %s160, %s174
      %p176 = scmp.eq.s32.totalorder %s21, 0
      %p177 = por %p175, %p176
      %s178 = ssub.s32 %s22, %s34
      %s179 = ssub.s32 %s23, %s30
      %s180 = sor.u32 %s178, %s179
      %p181 = scmp.eq.s32.totalorder %s180, 0
      %s183 = sadd.s32 %s182, 1
      %s184 = scalar_select %p181, %s182, %s183
      %p187 = pneg %p181
      %p188 = scmp.eq.s32.totalorder %s15, 3
      %p189 = por %p187, %p188
      %p190 = scmp.ne.s32.totalorder %s182, %s185
      %p191 = scmp.eq.s32.totalorder %s15, 0
      %p192 = por %p190, %p191
      %p193 = scmp.ne.s32.totalorder %s182, %s185
      %p194 = scmp.eq.s32.totalorder %s20, 3
      %p195 = por %p193, %p194
      %p196 = scmp.ne.s32.totalorder %s185, %s186
      %p197 = scmp.eq.s32.totalorder %s20, 0
      %p198 = por %p196, %p197
      %p199 = scmp.ne.s32.totalorder %s185, %s186
      %p200 = scmp.eq.s32.totalorder %s21, 3
      %p201 = por %p199, %p200
      %p203 = scmp.ne.s32.totalorder %s186, %s202
      %p204 = scmp.eq.s32.totalorder %s21, 0
      %p205 = por %p203, %p204
      %p206 = scmp.le.s32.totalorder 1, %s15
      %p207 = scmp.lt.s32.totalorder %s15, 5
      %p208 = pnand %p206, %p207
      %p209 = pneg %p208
      // Predicated region
      $region9: #{attention_block_forward.5} parent=5 // pred_check
        _
      $region10: #{attention_block_forward.5} parent=5 // pred_check_branch
        %211 = sbr.rel (%p208) target = $region12
      $region11: #{attention_block_forward.5} parent=5 // pred_region
        %s212 = ssub.s32 %s15, 1
        // Predicated region
        $region13: #{attention_block_forward.5} parent=11 // pred_check
          %p213 = pneg %p128
        $region14: #{attention_block_forward.5} parent=11 // pred_check_branch
          %215 = sbr.rel (%p213) target = $region16
        $region15: #{attention_block_forward.5} parent=11 // pred_region
          _
        $region16: #{attention_block_forward.5} parent=11 // pred_fallthru
          _
        // Predicated region
        $region17: #{attention_block_forward.5} parent=11 // pred_check
          %p216 = pneg %p149
        $region18: #{attention_block_forward.5} parent=11 // pred_check_branch
          %218 = sbr.rel (%p216) target = $region20
        $region19: #{attention_block_forward.5} parent=11 // pred_region
          _
        $region20: #{attention_block_forward.5} parent=11 // pred_fallthru
          _
        // Predicated region
        $region21: #{attention_block_forward.5} parent=11 // pred_check
          %p219 = pneg %p170
        $region22: #{attention_block_forward.5} parent=11 // pred_check_branch
          %221 = sbr.rel (%p219) target = $region24
        $region23: #{attention_block_forward.5} parent=11 // pred_region
          _
        $region24: #{attention_block_forward.5} parent=11 // pred_fallthru
          _
      $region12: #{attention_block_forward.5} parent=5 // pred_fallthru
        _
      %p222 = scmp.lt.s32.totalorder %s15, 4
      // Predicated region
      $region25: #{attention_block_forward.5} parent=5 // pred_check
        %p223 = pneg %p222
      $region26: #{attention_block_forward.5} parent=5 // pred_check_branch
        %225 = sbr.rel (%p223) target = $region28
      $region27: #{attention_block_forward.5} parent=5 // pred_region
        // Predicated region
        $region29: #{attention_block_forward.5} parent=27 // pred_check
          %p226 = pneg %p49
        $region30: #{attention_block_forward.5} parent=27 // pred_check_branch
          %228 = sbr.rel (%p226) target = $region32
        $region31: #{attention_block_forward.5} parent=27 // pred_region
          %s229 = sand.u32 %s39, 1
          %s230 = sand.u32 %s39, 1
          %s231 = smul.addr %s230, 32
          %s232 = scalar_lea.vmem [#allocation2], %s231
          %s233 = smul.u32 4, %s22
          %s234 = smul.addr %s233, 2
          %s235 = sadd.s32 %s23, %s234
          %s236 = smul.addr %s235, 8
          %s237 = scalar_lea.vmem %s0, %s236
          // Predicated region
          $region33: #{attention_block_forward.5} parent=31 // pred_check
            _
          $region34: #{attention_block_forward.5} parent=31 // pred_check_branch
            %239 = sbr.rel (0) target = $region36
          $region35: #{attention_block_forward.5} parent=31 // pred_region
            // Predicated region
            $region37: #{attention_block_forward.5} parent=35 // pred_check
              _
            $region38: #{attention_block_forward.5} parent=35 // pred_check_branch
              %241 = sbr.rel (0) target = $region40
            $region39: #{attention_block_forward.5} parent=35 // pred_region
              // Predicated region
              $region52: #{attention_block_forward.5} parent=39 // pred_check
                _
              $region53: #{attention_block_forward.5} parent=39 // pred_check_branch
                %262 = sbr.rel (0) target = $region55
              $region54: #{attention_block_forward.5} parent=39 // pred_region
                loop: start=0, step=1, limit=1
                $region56: #{attention_block_forward.5} parent=54 // loop_pre_header
                  _
                $region57: #{attention_block_forward.5} parent=54 // loop_header
                  %s264 = sphi 0, %s268
                  %p265 = scmp.ge.s32.totalorder %s264, 1
                  %s269 = sphi %s237, %s237
                  %s270 = sphi %s232, %s232
                $region58: #{attention_block_forward.5} parent=54 // loop_header_branch
                  %267 = sbr.rel (%p265) target = $region62
                $region59: #{attention_block_forward.5} parent=54 // loop_body
                  %v271 = vld [vmem:[%s269] sm:$0xff]
                  %272 = vst [vmem:[%s270] sm:$0xff] %v271
                  %v273 = vld [vmem:[%s269 + $0x10] sm:$0xff]
                  %274 = vst [vmem:[%s270 + $0x8] sm:$0xff] %v273
                  %v275 = vld [vmem:[%s269 + $0x20] sm:$0xff]
                  %276 = vst [vmem:[%s270 + $0x10] sm:$0xff] %v275
                  %v277 = vld [vmem:[%s269 + $0x30] sm:$0xff]
                  %278 = vst [vmem:[%s270 + $0x18] sm:$0xff] %v277
                $region60: #{attention_block_forward.5} parent=54 // loop_footer
                  %s268 = sadd.s32 1, %s264
                $region61: #{attention_block_forward.5} parent=54 // loop_footer_branch
                  %263 = sbr.rel target = $region57
                $region62: #{attention_block_forward.5} parent=54 // loop_exit
                  _
              $region55: #{attention_block_forward.5} parent=39 // pred_fallthru
                _
              // Predicated region
              $region63: #{attention_block_forward.5} parent=39 // pred_check
                _
              $region64: #{attention_block_forward.5} parent=39 // pred_check_branch
                %280 = sbr.rel target = $region66
              $region65: #{attention_block_forward.5} parent=39 // pred_region
                _
              $region66: #{attention_block_forward.5} parent=39 // pred_fallthru
                _
            $region40: #{attention_block_forward.5} parent=35 // pred_fallthru
              _
            // Predicated region
            $region41: #{attention_block_forward.5} parent=35 // pred_check
              _
            $region42: #{attention_block_forward.5} parent=35 // pred_check_branch
              %243 = sbr.rel target = $region44
            $region43: #{attention_block_forward.5} parent=35 // pred_region
              loop: start=0, step=1, limit=1
              $region45: #{attention_block_forward.5} parent=43 // loop_pre_header
                _
              $region46: #{attention_block_forward.5} parent=43 // loop_header
                %s246 = sphi 0, %s250
                %p247 = scmp.ge.s32.totalorder %s246, 1
                %s251 = sphi %s237, %s237
                %s252 = sphi %s232, %s232
              $region47: #{attention_block_forward.5} parent=43 // loop_header_branch
                %249 = sbr.rel (%p247) target = $region51
              $region48: #{attention_block_forward.5} parent=43 // loop_body
                %v253 = vld [vmem:[%s251] sm:$0xff]
                %254 = vst [vmem:[%s252] sm:$0xff] %v253
                %v255 = vld [vmem:[%s251 + $0x10] sm:$0xff]
                %256 = vst [vmem:[%s252 + $0x8] sm:$0xff] %v255
                %v257 = vld [vmem:[%s251 + $0x20] sm:$0xff]
                %258 = vst [vmem:[%s252 + $0x10] sm:$0xff] %v257
                %v259 = vld [vmem:[%s251 + $0x30] sm:$0xff]
                %260 = vst [vmem:[%s252 + $0x18] sm:$0xff] %v259
              $region49: #{attention_block_forward.5} parent=43 // loop_footer
                %s250 = sadd.s32 1, %s246
              $region50: #{attention_block_forward.5} parent=43 // loop_footer_branch
                %245 = sbr.rel target = $region46
              $region51: #{attention_block_forward.5} parent=43 // loop_exit
                _
            $region44: #{attention_block_forward.5} parent=35 // pred_fallthru
              _
          $region36: #{attention_block_forward.5} parent=31 // pred_fallthru
            _
          %281 = vnop
        $region32: #{attention_block_forward.5} parent=27 // pred_fallthru
          _
        // Predicated region
        $region67: #{attention_block_forward.5} parent=27 // pred_check
          %p282 = pneg %p75
        $region68: #{attention_block_forward.5} parent=27 // pred_check_branch
          %284 = sbr.rel (%p282) target = $region70
        $region69: #{attention_block_forward.5} parent=27 // pred_region
          %p285 = scmp.lt.s32.totalorder %s22, 1
          %s286 = scalar_select %p285, %s22, 1
          %s287 = smul.addr %s286, 8
          %s288 = scalar_lea.vmem %s1, %s287
        $region70: #{attention_block_forward.5} parent=27 // pred_fallthru
          _
        // Predicated region
        $region71: #{attention_block_forward.5} parent=27 // pred_check
          %p289 = pneg %p101
        $region72: #{attention_block_forward.5} parent=27 // pred_check_branch
          %291 = sbr.rel (%p289) target = $region74
        $region73: #{attention_block_forward.5} parent=27 // pred_region
          %p292 = scmp.lt.s32.totalorder %s23, 1
          %s293 = scalar_select %p292, %s23, 1
          %s294 = smul.addr %s293, 8
          %s295 = scalar_lea.vmem %s2, %s294
        $region74: #{attention_block_forward.5} parent=27 // pred_fallthru
          _
      $region28: #{attention_block_forward.5} parent=5 // pred_fallthru
        _
      %p296 = scmp.le.s32.totalorder 1, %s15
      %p297 = scmp.lt.s32.totalorder %s15, 5
      %p298 = pnand %p296, %p297
      %p299 = pneg %p298
      // Predicated region
      $region75: #{attention_block_forward.5} parent=5 // pred_check
        _
      $region76: #{attention_block_forward.5} parent=5 // pred_check_branch
        %301 = sbr.rel (%p298) target = $region78
      $region77: #{attention_block_forward.5} parent=5 // pred_region
        %s302 = ssub.s32 %s15, 1
        %s303 = sand.u32 %s42, 1
        %s304 = sand.u32 %s42, 1
        %s305 = smul.addr %s304, 32
        %s306 = scalar_lea.vmem [#allocation2], %s305
        // Predicated region
        $region79: #{attention_block_forward.5} parent=77 // pred_check
          %p307 = pneg %p55
        $region80: #{attention_block_forward.5} parent=77 // pred_check_branch
          %309 = sbr.rel (%p307) target = $region82
        $region81: #{attention_block_forward.5} parent=77 // pred_region
          _
        $region82: #{attention_block_forward.5} parent=77 // pred_fallthru
          _
        %s310 = sand.u32 %s42, 1
        %s311 = sand.u32 %s42, 1
        %s312 = smul.addr %s311, 32
        %s313 = scalar_lea.vmem [#allocation2], %s312
        %p314 = pneg %p55
        %p315 = pneg %p52
        %p316 = scmp.lt.s32.totalorder %s24, 1
        %s317 = scalar_select %p316, %s24, 1
        %s318 = smul.addr %s317, 8
        %s319 = scalar_lea.vmem %s1, %s318
        %p320 = pneg %p81
        %p321 = pneg %p78
        %p322 = scmp.lt.s32.totalorder %s25, 1
        %s323 = scalar_select %p322, %s25, 1
        %s324 = smul.addr %s323, 8
        %s325 = scalar_lea.vmem %s2, %s324
        %p326 = pneg %p107
        %p327 = pneg %p104
        %p328 = pneg %p128
        %p329 = pneg %p125
        %p330 = pneg %p149
        %p331 = pneg %p146
        %p332 = pneg %p170
        %p333 = pneg %p167
        %p334 = pneg %p198
        %p335 = pneg %p195
        %s336 = sand.u32 %s185, 1
        %s337 = scalar_lea.sflag [#allocation4], %s336
        %s338 = sand.u32 %s185, 1
        %s339 = smul.addr %s338, 32
        %s340 = scalar_lea.vmem [#allocation3], %s339
        %s341 = smul.u32 4, %s24
        %p342 = scmp.lt.s32.totalorder %s24, 1
        %s343 = scalar_select %p342, %s24, 1
        %s344 = smul.addr %s343, 8
        %s345 = scalar_lea.vmem %s1, %s344
        %p346 = scmp.lt.s32.totalorder %s25, 1
        %s347 = scalar_select %p346, %s25, 1
        %s348 = smul.addr %s347, 8
        %s349 = scalar_lea.vmem %s2, %s348
        %s350 = smul.u32 4, %s24
        %v351 = vld [vmem:[%s306] sm:$0xff]
        %v352 = vld [vmem:[%s306 + $0x8] sm:$0xff]
        %v353 = vld [vmem:[%s306 + $0x10] sm:$0xff]
        %v354 = vld [vmem:[%s306 + $0x18] sm:$0xff]
        %v355 = vld [vmem:[%s345] sm:$0xff]
        %v356 = vld [vmem:[%s349] sm:$0xff]
        %vm357 = vcmask 64512
        %v359 = vsel %vm357, %v356, 0
        %361 = vmatprep.subr.mxu0 0.0
        %362 = vmatpush1.msra.mxu0 %v355
        %363 = vmatprep.subr.mxu0 0.0
        %364 = vmatpush1.msra.mxu0 0.0
        %365 = vmatprep.subr.mxu0 0.0
        %366 = vmatpush1.msra.mxu0 0.0
        %367 = vmatprep.subr.mxu0 0.0
        %368 = vmatpush1.msra.mxu0 0.0
        %369 = vmatprep.subr.mxu0 0.0
        %370 = vmatpush1.msra.mxu0 0.0
        %371 = vmatprep.subr.mxu0 0.0
        %372 = vmatpush1.msra.mxu0 0.0
        %373 = vmatprep.subr.mxu0 0.0
        %374 = vmatpush1.msra.mxu0 0.0
        %375 = vmatprep.subr.mxu0 0.0
        %376 = vmatpush1.msra.mxu0 0.0
        %377 = vmatprep.subr.mxu0 0.0
        %378 = vmatpush1.msra.mxu0 0.0
        %379 = vmatprep.subr.mxu0 0.0
        %380 = vmatpush1.msra.mxu0 0.0
        %381 = vmatprep.subr.mxu0 0.0
        %382 = vmatpush1.msra.mxu0 0.0
        %383 = vmatprep.subr.mxu0 0.0
        %384 = vmatpush1.msra.mxu0 0.0
        %385 = vmatprep.subr.mxu0 0.0
        %386 = vmatpush1.msra.mxu0 0.0
        %387 = vmatprep.subr.mxu0 0.0
        %388 = vmatpush1.msra.mxu0 0.0
        %389 = vmatprep.subr.mxu0 0.0
        %390 = vmatpush1.msra.mxu0 0.0
        %391 = vmatprep.subr.mxu0 0.0
        %392 = vmatpush1.msra.mxu0 0.0
        %393 = vmatprep.subr.mxu0 0.0
        %394 = vmatpush1.msra.mxu0 0.0
        %395 = vmatprep.subr.mxu0 0.0
        %396 = vmatpush1.msra.mxu0 0.0
        %397 = vmatprep.subr.mxu0 0.0
        %398 = vmatpush1.msra.mxu0 0.0
        %399 = vmatprep.subr.mxu0 0.0
        %400 = vmatpush1.msra.mxu0 0.0
        %401 = vmatprep.subr.mxu0 0.0
        %402 = vmatpush1.msra.mxu0 0.0
        %403 = vmatprep.subr.mxu0 0.0
        %404 = vmatpush1.msra.mxu0 0.0
        %405 = vmatprep.subr.mxu0 0.0
        %406 = vmatpush1.msra.mxu0 0.0
        %407 = vmatprep.subr.mxu0 0.0
        %408 = vmatpush1.msra.mxu0 0.0
        %409 = vmatprep.subr.mxu0 0.0
        %410 = vmatpush1.msra.mxu0 0.0
        %411 = vmatprep.subr.mxu0 0.0
        %412 = vmatpush1.msra.mxu0 0.0
        %413 = vmatprep.subr.mxu0 0.0
        %414 = vmatpush1.msra.mxu0 0.0
        %415 = vmatprep.subr.mxu0 0.0
        %416 = vmatpush1.msra.mxu0 0.0
        %417 = vmatprep.subr.mxu0 0.0
        %418 = vmatpush1.msra.mxu0 0.0
        %419 = vmatprep.subr.mxu0 0.0
        %420 = vmatpush1.msra.mxu0 0.0
        %421 = vmatprep.subr.mxu0 0.0
        %422 = vmatpush1.msra.mxu0 0.0
        %423 = vmatprep.subr.mxu0 0.0
        %424 = vmatpush1.msra.mxu0 0.0
        %425 = vmatprep.mubr.f32.mxu0 0.0
        %426 = vmatmul.mubr.f32.gmra.mrb[0].mxu0 %v359
        %v427 = vpop.f32.mrb[0].mxu0
        %v428 = vadd.f32 0.0, %v427
        %v429 = vpop.f32.mrb[0].mxu0
        %430 = vdwg.mxu0
        %v431 = vld [vmem:[%s3] sm:$0xff]
        %v433 = vsel %vm357, %v428, 0
        %435 = vmatprep.subr.mxu0 0.0
        %436 = vmatpush1.msra.mxu0 %v431
        %437 = vmatprep.subr.mxu0 0.0
        %438 = vmatpush1.msra.mxu0 0.0
        %439 = vmatprep.subr.mxu0 0.0
        %440 = vmatpush1.msra.mxu0 0.0
        %441 = vmatprep.subr.mxu0 0.0
        %442 = vmatpush1.msra.mxu0 0.0
        %443 = vmatprep.subr.mxu0 0.0
        %444 = vmatpush1.msra.mxu0 0.0
        %445 = vmatprep.subr.mxu0 0.0
        %446 = vmatpush1.msra.mxu0 0.0
        %447 = vmatprep.subr.mxu0 0.0
        %448 = vmatpush1.msra.mxu0 0.0
        %449 = vmatprep.subr.mxu0 0.0
        %450 = vmatpush1.msra.mxu0 0.0
        %451 = vmatprep.subr.mxu0 0.0
        %452 = vmatpush1.msra.mxu0 0.0
        %453 = vmatprep.subr.mxu0 0.0
        %454 = vmatpush1.msra.mxu0 0.0
        %455 = vmatprep.subr.mxu0 0.0
        %456 = vmatpush1.msra.mxu0 0.0
        %457 = vmatprep.subr.mxu0 0.0
        %458 = vmatpush1.msra.mxu0 0.0
        %459 = vmatprep.subr.mxu0 0.0
        %460 = vmatpush1.msra.mxu0 0.0
        %461 = vmatprep.subr.mxu0 0.0
        %462 = vmatpush1.msra.mxu0 0.0
        %463 = vmatprep.subr.mxu0 0.0
        %464 = vmatpush1.msra.mxu0 0.0
        %465 = vmatprep.subr.mxu0 0.0
        %466 = vmatpush1.msra.mxu0 0.0
        %467 = vmatprep.subr.mxu0 0.0
        %468 = vmatpush1.msra.mxu0 0.0
        %469 = vmatprep.subr.mxu0 0.0
        %470 = vmatpush1.msra.mxu0 0.0
        %471 = vmatprep.subr.mxu0 0.0
        %472 = vmatpush1.msra.mxu0 0.0
        %473 = vmatprep.subr.mxu0 0.0
        %474 = vmatpush1.msra.mxu0 0.0
        %475 = vmatprep.subr.mxu0 0.0
        %476 = vmatpush1.msra.mxu0 0.0
        %477 = vmatprep.subr.mxu0 0.0
        %478 = vmatpush1.msra.mxu0 0.0
        %479 = vmatprep.subr.mxu0 0.0
        %480 = vmatpush1.msra.mxu0 0.0
        %481 = vmatprep.subr.mxu0 0.0
        %482 = vmatpush1.msra.mxu0 0.0
        %483 = vmatprep.subr.mxu0 0.0
        %484 = vmatpush1.msra.mxu0 0.0
        %485 = vmatprep.subr.mxu0 0.0
        %486 = vmatpush1.msra.mxu0 0.0
        %487 = vmatprep.subr.mxu0 0.0
        %488 = vmatpush1.msra.mxu0 0.0
        %489 = vmatprep.subr.mxu0 0.0
        %490 = vmatpush1.msra.mxu0 0.0
        %491 = vmatprep.subr.mxu0 0.0
        %492 = vmatpush1.msra.mxu0 0.0
        %493 = vmatprep.subr.mxu0 0.0
        %494 = vmatpush1.msra.mxu0 0.0
        %495 = vmatprep.subr.mxu0 0.0
        %496 = vmatpush1.msra.mxu0 0.0
        %497 = vmatprep.subr.mxu0 0.0
        %498 = vmatpush1.msra.mxu0 0.0
        %499 = vmatprep.mubr.f32.mxu0 0.0
        %500 = vmatmul.mubr.f32.gmra.mrb[0].mxu0 %v433
        %v501 = vpop.f32.mrb[0].mxu0
        %v502 = vadd.f32 0.0, %v501
        %v503 = vpop.f32.mrb[0].mxu0
        %504 = vdwg.mxu0
        %v505 = vmul.f32 %v502, %v351
        %v506 = vmul.f32 %v502, %v352
        %v507 = vmul.f32 %v502, %v353
        %v508 = vmul.f32 %v502, %v354
        %v509 = vld [vmem:[%s4] sm:$0x1]
        %v510 = vld [vmem:[%s4 + $0x1] sm:$0x1]
        %v511 = vld [vmem:[%s4 + $0x2] sm:$0x1]
        %v512 = vld [vmem:[%s4 + $0x3] sm:$0x1]
        %v513 = vld [vmem:[%s4 + $0x4] sm:$0x1]
        %v514 = vld [vmem:[%s4 + $0x5] sm:$0x1]
        %v515 = vld [vmem:[%s4 + $0x6] sm:$0x1]
        %v516 = vld [vmem:[%s4 + $0x7] sm:$0x1]
        %v517 = vld [vmem:[%s4 + $0x8] sm:$0x1]
        %v518 = vld [vmem:[%s4 + $0x9] sm:$0x1]
        %v519 = vld [vmem:[%s4 + $0xa] sm:$0x1]
        %v520 = vld [vmem:[%s4 + $0xb] sm:$0x1]
        %v521 = vld [vmem:[%s4 + $0xc] sm:$0x1]
        %v522 = vld [vmem:[%s4 + $0xd] sm:$0x1]
        %v523 = vld [vmem:[%s4 + $0xe] sm:$0x1]
        %v524 = vld [vmem:[%s4 + $0xf] sm:$0x1]
        %v541 = vlaneseq
        %v542 = vshrl.u32 %v541, 7
        %v543 = vsub.s32 0, %v542
        %v544 = vrot.slane %v509, %v543
        %v545 = vlaneseq
        %v546 = vshrl.u32 %v545, 7
        %v547 = vsub.s32 0, %v546
        %v548 = vrot.slane %v510, %v547
        %v549 = vlaneseq
        %v550 = vshrl.u32 %v549, 7
        %v551 = vsub.s32 0, %v550
        %v552 = vrot.slane %v511, %v551
        %v553 = vlaneseq
        %v554 = vshrl.u32 %v553, 7
        %v555 = vsub.s32 0, %v554
        %v556 = vrot.slane %v512, %v555
        %v557 = vlaneseq
        %v558 = vshrl.u32 %v557, 7
        %v559 = vsub.s32 0, %v558
        %v560 = vrot.slane %v513, %v559
        %v561 = vlaneseq
        %v562 = vshrl.u32 %v561, 7
        %v563 = vsub.s32 0, %v562
        %v564 = vrot.slane %v514, %v563
        %v565 = vlaneseq
        %v566 = vshrl.u32 %v565, 7
        %v567 = vsub.s32 0, %v566
        %v568 = vrot.slane %v515, %v567
        %v569 = vlaneseq
        %v570 = vshrl.u32 %v569, 7
        %v571 = vsub.s32 0, %v570
        %v572 = vrot.slane %v516, %v571
        %v573 = vlaneseq
        %v574 = vshrl.u32 %v573, 7
        %v575 = vsub.s32 0, %v574
        %v576 = vrot.slane %v517, %v575
        %v577 = vlaneseq
        %v578 = vshrl.u32 %v577, 7
        %v579 = vsub.s32 0, %v578
        %v580 = vrot.slane %v518, %v579
        %v581 = vlaneseq
        %v582 = vshrl.u32 %v581, 7
        %v583 = vsub.s32 0, %v582
        %v584 = vrot.slane %v519, %v583
        %v585 = vlaneseq
        %v586 = vshrl.u32 %v585, 7
        %v587 = vsub.s32 0, %v586
        %v588 = vrot.slane %v520, %v587
        %v589 = vlaneseq
        %v590 = vshrl.u32 %v589, 7
        %v591 = vsub.s32 0, %v590
        %v592 = vrot.slane %v521, %v591
        %v593 = vlaneseq
        %v594 = vshrl.u32 %v593, 7
        %v595 = vsub.s32 0, %v594
        %v596 = vrot.slane %v522, %v595
        %v597 = vlaneseq
        %v598 = vshrl.u32 %v597, 7
        %v599 = vsub.s32 0, %v598
        %v600 = vrot.slane %v523, %v599
        %v601 = vlaneseq
        %v602 = vshrl.u32 %v601, 7
        %v603 = vsub.s32 0, %v602
        %v604 = vrot.slane %v524, %v603
        %605 = vset.pattern.permute.xlu0 0
        %606 = vperm.xlu0 %605, %v544
        %v607 = vpop.permute.xlu0 %606
        %609 = vset.pattern.permute.xlu0 0
        %610 = vperm.xlu0 %609, %v548
        %v611 = vpop.permute.xlu0 %610
        %613 = vset.pattern.permute.xlu0 0
        %614 = vperm.xlu0 %613, %v552
        %v615 = vpop.permute.xlu0 %614
        %617 = vset.pattern.permute.xlu0 0
        %618 = vperm.xlu0 %617, %v556
        %v619 = vpop.permute.xlu0 %618
        %621 = vset.pattern.permute.xlu0 0
        %622 = vperm.xlu0 %621, %v560
        %v623 = vpop.permute.xlu0 %622
        %625 = vset.pattern.permute.xlu0 0
        %626 = vperm.xlu0 %625, %v564
        %v627 = vpop.permute.xlu0 %626
        %629 = vset.pattern.permute.xlu0 0
        %630 = vperm.xlu0 %629, %v568
        %v631 = vpop.permute.xlu0 %630
        %633 = vset.pattern.permute.xlu0 0
        %634 = vperm.xlu0 %633, %v572
        %v635 = vpop.permute.xlu0 %634
        %637 = vset.pattern.permute.xlu0 0
        %638 = vperm.xlu0 %637, %v576
        %v639 = vpop.permute.xlu0 %638
        %641 = vset.pattern.permute.xlu0 0
        %642 = vperm.xlu0 %641, %v580
        %v643 = vpop.permute.xlu0 %642
        %645 = vset.pattern.permute.xlu0 0
        %646 = vperm.xlu0 %645, %v584
        %v647 = vpop.permute.xlu0 %646
        %649 = vset.pattern.permute.xlu0 0
        %650 = vperm.xlu0 %649, %v588
        %v651 = vpop.permute.xlu0 %650
        %653 = vset.pattern.permute.xlu0 0
        %654 = vperm.xlu0 %653, %v592
        %v655 = vpop.permute.xlu0 %654
        %657 = vset.pattern.permute.xlu0 0
        %658 = vperm.xlu0 %657, %v596
        %v659 = vpop.permute.xlu0 %658
        %661 = vset.pattern.permute.xlu0 0
        %662 = vperm.xlu0 %661, %v600
        %v663 = vpop.permute.xlu0 %662
        %665 = vset.pattern.permute.xlu0 0
        %666 = vperm.xlu0 %665, %v604
        %v667 = vpop.permute.xlu0 %666
        %v669 = vmul.f32 %v607, %v505
        %v670 = vmul.f32 %v611, %v506
        %v671 = vmul.f32 %v615, %v507
        %v672 = vmul.f32 %v619, %v508
        %v673 = vmul.f32 %v623, %v505
        %v674 = vmul.f32 %v627, %v506
        %v675 = vmul.f32 %v631, %v507
        %v676 = vmul.f32 %v635, %v508
        %v677 = vmul.f32 %v639, %v505
        %v678 = vmul.f32 %v643, %v506
        %v679 = vmul.f32 %v647, %v507
        %v680 = vmul.f32 %v651, %v508
        %v681 = vmul.f32 %v655, %v505
        %v682 = vmul.f32 %v659, %v506
        %v683 = vmul.f32 %v663, %v507
        %v684 = vmul.f32 %v667, %v508
        %vm685 = vcmask 130048
        %v686 = vsel %vm685, %v669, 0.0
        %v687 = vsel %vm685, %v670, 0.0
        %v688 = vadd.f32 %v686, %v687
        %v689 = vsel %vm685, %v671, 0.0
        %v690 = vadd.f32 %v688, %v689
        %v691 = vsel %vm685, %v672, 0.0
        %v692 = vadd.f32 %v690, %v691
        %v693 = vsel %vm685, %v673, 0.0
        %v694 = vsel %vm685, %v674, 0.0
        %v695 = vadd.f32 %v693, %v694
        %v696 = vsel %vm685, %v675, 0.0
        %v697 = vadd.f32 %v695, %v696
        %v698 = vsel %vm685, %v676, 0.0
        %v699 = vadd.f32 %v697, %v698
        %v700 = vsel %vm685, %v677, 0.0
        %v701 = vsel %vm685, %v678, 0.0
        %v702 = vadd.f32 %v700, %v701
        %v703 = vsel %vm685, %v679, 0.0
        %v704 = vadd.f32 %v702, %v703
        %v705 = vsel %vm685, %v680, 0.0
        %v706 = vadd.f32 %v704, %v705
        %v707 = vsel %vm685, %v681, 0.0
        %v708 = vsel %vm685, %v682, 0.0
        %v709 = vadd.f32 %v707, %v708
        %v710 = vsel %vm685, %v683, 0.0
        %v711 = vadd.f32 %v709, %v710
        %v712 = vsel %vm685, %v684, 0.0
        %v713 = vadd.f32 %v711, %v712
        %v714 = vld [vmem:[%s5] sm:$0x1]
        %v715 = vld [vmem:[%s5 + $0x1] sm:$0x1]
        %v716 = vld [vmem:[%s5 + $0x2] sm:$0x1]
        %v717 = vld [vmem:[%s5 + $0x3] sm:$0x1]
        %v722 = vlaneseq
        %v723 = vshrl.u32 %v722, 7
        %v724 = vsub.s32 0, %v723
        %v725 = vrot.slane %v714, %v724
        %v726 = vlaneseq
        %v727 = vshrl.u32 %v726, 7
        %v728 = vsub.s32 0, %v727
        %v729 = vrot.slane %v715, %v728
        %v730 = vlaneseq
        %v731 = vshrl.u32 %v730, 7
        %v732 = vsub.s32 0, %v731
        %v733 = vrot.slane %v716, %v732
        %v734 = vlaneseq
        %v735 = vshrl.u32 %v734, 7
        %v736 = vsub.s32 0, %v735
        %v737 = vrot.slane %v717, %v736
        %738 = vset.pattern.permute.xlu0 0
        %739 = vperm.xlu0 %738, %v725
        %v740 = vpop.permute.xlu0 %739
        %742 = vset.pattern.permute.xlu0 0
        %743 = vperm.xlu0 %742, %v729
        %v744 = vpop.permute.xlu0 %743
        %746 = vset.pattern.permute.xlu0 0
        %747 = vperm.xlu0 %746, %v733
        %v748 = vpop.permute.xlu0 %747
        %750 = vset.pattern.permute.xlu0 0
        %751 = vperm.xlu0 %750, %v737
        %v752 = vpop.permute.xlu0 %751
        %v754 = vadd.f32 %v692, %v740
        %v755 = vadd.f32 %v699, %v744
        %v756 = vadd.f32 %v706, %v748
        %v757 = vadd.f32 %v713, %v752
        %758 = vst.msk [vmem:[%s340] sm:$0xff] %vm685, %v754
        %759 = vst.msk [vmem:[%s340 + $0x8] sm:$0xff] %vm685, %v755
        %760 = vst.msk [vmem:[%s340 + $0x10] sm:$0xff] %vm685, %v756
        %761 = vst.msk [vmem:[%s340 + $0x18] sm:$0xff] %vm685, %v757
        %s762 = sand.u32 %s185, 1
        %s763 = scalar_lea.sflag [#allocation4], %s762
        %s764 = sand.u32 %s185, 1
        %s765 = smul.addr %s764, 32
        %s766 = scalar_lea.vmem [#allocation3], %s765
        // Predicated region
        $region83: #{attention_block_forward.5} parent=77 // pred_check
          %p767 = pneg %p195
        $region84: #{attention_block_forward.5} parent=77 // pred_check_branch
          %769 = sbr.rel (%p767) target = $region86
        $region85: #{attention_block_forward.5} parent=77 // pred_region
          %s770 = smul.u32 4, %s24
          %s772 = ssub.s32 512, 512
          %773 = vsyncadd %s763, %s772
          %s774 = smul.addr %s770, 2
          %s775 = sadd.s32 %s25, %s774
          %s776 = smul.addr %s775, 128
          %s777 = scalar_lea.hbm %s6, %s776
          %s778 = sshll.u32 %s766, 4
          %s779 = int_to_ptr.vmem [resolvable:$true] %s778
          %784 = dma.vmem_to_hbm [thread:$0]  %s779, 512, %s777, %s763, 128, 256, 8
        $region86: #{attention_block_forward.5} parent=77 // pred_fallthru
          _
      $region78: #{attention_block_forward.5} parent=5 // pred_fallthru
        _
      %p785 = scmp.le.s32.totalorder 2, %s15
      // Predicated region
      $region87: #{attention_block_forward.5} parent=5 // pred_check
        %p786 = pneg %p785
      $region88: #{attention_block_forward.5} parent=5 // pred_check_branch
        %788 = sbr.rel (%p786) target = $region90
      $region89: #{attention_block_forward.5} parent=5 // pred_region
        %s789 = ssub.s32 %s15, 2
        // Predicated region
        $region91: #{attention_block_forward.5} parent=89 // pred_check
          %p790 = pneg %p201
        $region92: #{attention_block_forward.5} parent=89 // pred_check_branch
          %792 = sbr.rel (%p790) target = $region94
        $region93: #{attention_block_forward.5} parent=89 // pred_region
          %s793 = sand.u32 %s186, 1
          %s794 = scalar_lea.sflag [#allocation4], %s793
          %s795 = sand.u32 %s186, 1
          %s796 = smul.addr %s795, 32
          %s797 = scalar_lea.vmem [#allocation3], %s796
          %798 = dma.done %s794, 512
        $region94: #{attention_block_forward.5} parent=89 // pred_fallthru
          _
      $region90: #{attention_block_forward.5} parent=5 // pred_fallthru
        _
    $region6: #{attention_block_forward.5} parent=1 // loop_footer
      %s19 = sadd.s32 1, %s15
    $region7: #{attention_block_forward.5} parent=1 // loop_footer_branch
      %14 = sbr.rel target = $region3
    $region8: #{attention_block_forward.5} parent=1 // loop_exit
      _
    %799 = vsyncpa [#allocation4], 1
    %s800 = scalar_lea.sflag [#allocation4], 1
    %801 = vsyncpa %s800, 1

// kernel: attention_block_forward.4
$region0: #{attention_block_forward.4}
  #allocation0 [shape = 'u32[]', space=smem, size = 0x4, offset = 0x4, fixed_abs, tag = 'smem constant byte address 0x4 - core index']
  #allocation1 [shape = 'u32[144,128]{1,0:T(1,128)}', space=vmem, size = 0x12000, scoped, tag = 'internal scratch']
  %s0 = inlined_call_operand.vmem [shape: f32[8,16,16], index: 0, kind: input, shape index: {}]
  %s1 = inlined_call_operand.vmem [shape: f32[2,8,8], index: 1, kind: input, shape index: {}]
  %s2 = inlined_call_operand.vmem [shape: f32[16,8], index: 2, kind: input, shape index: {}]
  %s3 = inlined_call_operand.vmem [shape: f32[8,16], index: 3, kind: input, shape index: {}]
  %s4 = inlined_call_operand.vmem [shape: f32[4,4,1,1], index: 4, kind: input, shape index: {}]
  %s5 = inlined_call_operand.vmem [shape: f32[4,1,1], index: 5, kind: input, shape index: {}]
  %s6 = inlined_call_operand.vmem [shape: f32[2,4,2], index: 6, kind: output, shape index: {}]
  %s7 = sld [smem:[#allocation0]]
  $region99: #{attention_block_forward.4} parent=0
    _
  %s9 = ssub.s32 1, %s7
  %s10 = scalar_select 0, %s9, %s7
  $region1: #{attention_block_forward.4} parent=0
    #allocation2 [shape = 'u8[32768]{0}', space=vmem, size = 0x8000, scoped, tag = 'input window, operand 0']
    loop: start=0, step=1, limit=6
    $region2: #{attention_block_forward.4} parent=1 // loop_pre_header
      _
    $region3: #{attention_block_forward.4} parent=1 // loop_header
      %s12 = sphi 0, %s16
      %p13 = scmp.ge.s32.totalorder %s12, 6
      %s19 = sphi 0, %s31
      %s20 = sphi 0, %s27
      %s21 = sphi 0, %s19
      %s22 = sphi 0, %s20
      %s23 = sphi 0, %s21
      %s24 = sphi 0, %s22
      %s36 = sphi 0, %s38
      %s39 = sphi 0, %s36
      %s40 = sphi 0, %s39
      %s56 = sphi 0, %s40
      %s62 = sphi 0, %s64
      %s65 = sphi 0, %s62
      %s66 = sphi 0, %s65
      %s82 = sphi 0, %s66
      %s88 = sphi 0, %s90
      %s91 = sphi 0, %s88
      %s92 = sphi 0, %s91
      %s108 = sphi 0, %s92
      %s112 = sphi 0, %s112
      %s114 = sphi 0, %s112
      %s115 = sphi 0, %s114
      %s129 = sphi 0, %s115
      %s133 = sphi 0, %s133
      %s135 = sphi 0, %s133
      %s136 = sphi 0, %s135
      %s150 = sphi 0, %s136
      %s154 = sphi 0, %s154
      %s156 = sphi 0, %s154
      %s157 = sphi 0, %s156
      %s171 = sphi 0, %s157
      %s177 = sphi 0, %s179
      %s180 = sphi 0, %s177
      %s181 = sphi 0, %s180
      %s197 = sphi 0, %s181
    $region4: #{attention_block_forward.4} parent=1 // loop_header_branch
      %15 = sbr.rel (%p13) target = $region8
    $region5: #{attention_block_forward.4} parent=1 // loop_body
      %s17 = ssub.s32 %s12, 1
      %s18 = ssub.s32 %s12, 2
      %s25 = sadd.s32 1, %s20
      %p26 = scmp.ge.s32.totalorder %s25, 2
      %s27 = scalar_select %p26, 0, %s25
      %s28 = sadd.s32 1, %s19
      %s29 = scalar_select %p26, %s28, %s19
      %p30 = scmp.ge.s32.totalorder %s29, 2
      %s31 = scalar_select %p30, 0, %s29
      %s32 = ssub.s32 %s19, %s31
      %s33 = ssub.s32 %s20, %s27
      %s34 = sor.u32 %s32, %s33
      %p35 = scmp.eq.s32.totalorder %s34, 0
      %s37 = sadd.s32 %s36, 1
      %s38 = scalar_select %p35, %s36, %s37
      %p41 = pneg %p35
      %p42 = scmp.eq.s32.totalorder %s12, 3
      %p43 = por %p41, %p42
      %p44 = scmp.ne.s32.totalorder %s36, %s39
      %p45 = scmp.eq.s32.totalorder %s12, 0
      %p46 = por %p44, %p45
      %p47 = scmp.ne.s32.totalorder %s36, %s39
      %p48 = scmp.eq.s32.totalorder %s17, 3
      %p49 = por %p47, %p48
      %p50 = scmp.ne.s32.totalorder %s39, %s40
      %p51 = scmp.eq.s32.totalorder %s17, 0
      %p52 = por %p50, %p51
      %p53 = scmp.ne.s32.totalorder %s39, %s40
      %p54 = scmp.eq.s32.totalorder %s18, 3
      %p55 = por %p53, %p54
      %p57 = scmp.ne.s32.totalorder %s40, %s56
      %p58 = scmp.eq.s32.totalorder %s18, 0
      %p59 = por %p57, %p58
      %s60 = ssub.s32 %s19, %s31
      %p61 = scmp.eq.s32.totalorder %s60, 0
      %s63 = sadd.s32 %s62, 1
      %s64 = scalar_select %p61, %s62, %s63
      %p67 = pneg %p61
      %p68 = scmp.eq.s32.totalorder %s12, 3
      %p69 = por %p67, %p68
      %p70 = scmp.ne.s32.totalorder %s62, %s65
      %p71 = scmp.eq.s32.totalorder %s12, 0
      %p72 = por %p70, %p71
      %p73 = scmp.ne.s32.totalorder %s62, %s65
      %p74 = scmp.eq.s32.totalorder %s17, 3
      %p75 = por %p73, %p74
      %p76 = scmp.ne.s32.totalorder %s65, %s66
      %p77 = scmp.eq.s32.totalorder %s17, 0
      %p78 = por %p76, %p77
      %p79 = scmp.ne.s32.totalorder %s65, %s66
      %p80 = scmp.eq.s32.totalorder %s18, 3
      %p81 = por %p79, %p80
      %p83 = scmp.ne.s32.totalorder %s66, %s82
      %p84 = scmp.eq.s32.totalorder %s18, 0
      %p85 = por %p83, %p84
      %s86 = ssub.s32 %s20, %s27
      %p87 = scmp.eq.s32.totalorder %s86, 0
      %s89 = sadd.s32 %s88, 1
      %s90 = scalar_select %p87, %s88, %s89
      %p93 = pneg %p87
      %p94 = scmp.eq.s32.totalorder %s12, 3
      %p95 = por %p93, %p94
      %p96 = scmp.ne.s32.totalorder %s88, %s91
      %p97 = scmp.eq.s32.totalorder %s12, 0
      %p98 = por %p96, %p97
      %p99 = scmp.ne.s32.totalorder %s88, %s91
      %p100 = scmp.eq.s32.totalorder %s17, 3
      %p101 = por %p99, %p100
      %p102 = scmp.ne.s32.totalorder %s91, %s92
      %p103 = scmp.eq.s32.totalorder %s17, 0
      %p104 = por %p102, %p103
      %p105 = scmp.ne.s32.totalorder %s91, %s92
      %p106 = scmp.eq.s32.totalorder %s18, 3
      %p107 = por %p105, %p106
      %p109 = scmp.ne.s32.totalorder %s92, %s108
      %p110 = scmp.eq.s32.totalorder %s18, 0
      %p111 = por %p109, %p110
      %s113 = sadd.s32 %s112, 1
      %p116 = scmp.eq.s32.totalorder %s12, 3
      %p117 = scmp.ne.s32.totalorder %s112, %s114
      %p118 = scmp.eq.s32.totalorder %s12, 0
      %p119 = por %p117, %p118
      %p120 = scmp.ne.s32.totalorder %s112, %s114
      %p121 = scmp.eq.s32.totalorder %s17, 3
      %p122 = por %p120, %p121
      %p123 = scmp.ne.s32.totalorder %s114, %s115
      %p124 = scmp.eq.s32.totalorder %s17, 0
      %p125 = por %p123, %p124
      %p126 = scmp.ne.s32.totalorder %s114, %s115
      %p127 = scmp.eq.s32.totalorder %s18, 3
      %p128 = por %p126, %p127
      %p130 = scmp.ne.s32.totalorder %s115, %s129
      %p131 = scmp.eq.s32.totalorder %s18, 0
      %p132 = por %p130, %p131
      %s134 = sadd.s32 %s133, 1
      %p137 = scmp.eq.s32.totalorder %s12, 3
      %p138 = scmp.ne.s32.totalorder %s133, %s135
      %p139 = scmp.eq.s32.totalorder %s12, 0
      %p140 = por %p138, %p139
      %p141 = scmp.ne.s32.totalorder %s133, %s135
      %p142 = scmp.eq.s32.totalorder %s17, 3
      %p143 = por %p141, %p142
      %p144 = scmp.ne.s32.totalorder %s135, %s136
      %p145 = scmp.eq.s32.totalorder %s17, 0
      %p146 = por %p144, %p145
      %p147 = scmp.ne.s32.totalorder %s135, %s136
      %p148 = scmp.eq.s32.totalorder %s18, 3
      %p149 = por %p147, %p148
      %p151 = scmp.ne.s32.totalorder %s136, %s150
      %p152 = scmp.eq.s32.totalorder %s18, 0
      %p153 = por %p151, %p152
      %s155 = sadd.s32 %s154, 1
      %p158 = scmp.eq.s32.totalorder %s12, 3
      %p159 = scmp.ne.s32.totalorder %s154, %s156
      %p160 = scmp.eq.s32.totalorder %s12, 0
      %p161 = por %p159, %p160
      %p162 = scmp.ne.s32.totalorder %s154, %s156
      %p163 = scmp.eq.s32.totalorder %s17, 3
      %p164 = por %p162, %p163
      %p165 = scmp.ne.s32.totalorder %s156, %s157
      %p166 = scmp.eq.s32.totalorder %s17, 0
      %p167 = por %p165, %p166
      %p168 = scmp.ne.s32.totalorder %s156, %s157
      %p169 = scmp.eq.s32.totalorder %s18, 3
      %p170 = por %p168, %p169
      %p172 = scmp.ne.s32.totalorder %s157, %s171
      %p173 = scmp.eq.s32.totalorder %s18, 0
      %p174 = por %p172, %p173
      %s175 = ssub.s32 %s19, %s31
      %p176 = scmp.eq.s32.totalorder %s175, 0
      %s178 = sadd.s32 %s177, 1
      %s179 = scalar_select %p176, %s177, %s178
      %p182 = pneg %p176
      %p183 = scmp.eq.s32.totalorder %s12, 3
      %p184 = por %p182, %p183
      %p185 = scmp.ne.s32.totalorder %s177, %s180
      %p186 = scmp.eq.s32.totalorder %s12, 0
      %p187 = por %p185, %p186
      %p188 = scmp.ne.s32.totalorder %s177, %s180
      %p189 = scmp.eq.s32.totalorder %s17, 3
      %p190 = por %p188, %p189
      %p191 = scmp.ne.s32.totalorder %s180, %s181
      %p192 = scmp.eq.s32.totalorder %s17, 0
      %p193 = por %p191, %p192
      %p194 = scmp.ne.s32.totalorder %s180, %s181
      %p195 = scmp.eq.s32.totalorder %s18, 3
      %p196 = por %p194, %p195
      %p198 = scmp.ne.s32.totalorder %s181, %s197
      %p199 = scmp.eq.s32.totalorder %s18, 0
      %p200 = por %p198, %p199
      %p201 = scmp.le.s32.totalorder 1, %s12
      %p202 = scmp.lt.s32.totalorder %s12, 5
      %p203 = pnand %p201, %p202
      %p204 = pneg %p203
      // Predicated region
      $region9: #{attention_block_forward.4} parent=5 // pred_check
        _
      $region10: #{attention_block_forward.4} parent=5 // pred_check_branch
        %206 = sbr.rel (%p203) target = $region12
      $region11: #{attention_block_forward.4} parent=5 // pred_region
        %s207 = ssub.s32 %s12, 1
        // Predicated region
        $region13: #{attention_block_forward.4} parent=11 // pred_check
          %p208 = pneg %p125
        $region14: #{attention_block_forward.4} parent=11 // pred_check_branch
          %210 = sbr.rel (%p208) target = $region16
        $region15: #{attention_block_forward.4} parent=11 // pred_region
          _
        $region16: #{attention_block_forward.4} parent=11 // pred_fallthru
          _
        // Predicated region
        $region17: #{attention_block_forward.4} parent=11 // pred_check
          %p211 = pneg %p146
        $region18: #{attention_block_forward.4} parent=11 // pred_check_branch
          %213 = sbr.rel (%p211) target = $region20
        $region19: #{attention_block_forward.4} parent=11 // pred_region
          _
        $region20: #{attention_block_forward.4} parent=11 // pred_fallthru
          _
        // Predicated region
        $region21: #{attention_block_forward.4} parent=11 // pred_check
          %p214 = pneg %p167
        $region22: #{attention_block_forward.4} parent=11 // pred_check_branch
          %216 = sbr.rel (%p214) target = $region24
        $region23: #{attention_block_forward.4} parent=11 // pred_region
          _
        $region24: #{attention_block_forward.4} parent=11 // pred_fallthru
          _
      $region12: #{attention_block_forward.4} parent=5 // pred_fallthru
        _
      %p217 = scmp.lt.s32.totalorder %s12, 4
      // Predicated region
      $region25: #{attention_block_forward.4} parent=5 // pred_check
        %p218 = pneg %p217
      $region26: #{attention_block_forward.4} parent=5 // pred_check_branch
        %220 = sbr.rel (%p218) target = $region28
      $region27: #{attention_block_forward.4} parent=5 // pred_region
        // Predicated region
        $region29: #{attention_block_forward.4} parent=27 // pred_check
          %p221 = pneg %p46
        $region30: #{attention_block_forward.4} parent=27 // pred_check_branch
          %223 = sbr.rel (%p221) target = $region32
        $region31: #{attention_block_forward.4} parent=27 // pred_region
          %s224 = sand.u32 %s36, 1
          %s225 = sand.u32 %s36, 1
          %s226 = smul.addr %s225, 32
          %s227 = scalar_lea.vmem [#allocation2], %s226
          %s228 = smul.u32 4, %s19
          %s229 = smul.addr %s228, 2
          %s230 = sadd.s32 %s20, %s229
          %s231 = smul.addr %s230, 8
          %s232 = scalar_lea.vmem %s0, %s231
          // Predicated region
          $region33: #{attention_block_forward.4} parent=31 // pred_check
            _
          $region34: #{attention_block_forward.4} parent=31 // pred_check_branch
            %234 = sbr.rel (0) target = $region36
          $region35: #{attention_block_forward.4} parent=31 // pred_region
            // Predicated region
            $region37: #{attention_block_forward.4} parent=35 // pred_check
              _
            $region38: #{attention_block_forward.4} parent=35 // pred_check_branch
              %236 = sbr.rel (0) target = $region40
            $region39: #{attention_block_forward.4} parent=35 // pred_region
              // Predicated region
              $region52: #{attention_block_forward.4} parent=39 // pred_check
                _
              $region53: #{attention_block_forward.4} parent=39 // pred_check_branch
                %257 = sbr.rel (0) target = $region55
              $region54: #{attention_block_forward.4} parent=39 // pred_region
                loop: start=0, step=1, limit=1
                $region56: #{attention_block_forward.4} parent=54 // loop_pre_header
                  _
                $region57: #{attention_block_forward.4} parent=54 // loop_header
                  %s259 = sphi 0, %s263
                  %p260 = scmp.ge.s32.totalorder %s259, 1
                  %s264 = sphi %s232, %s232
                  %s265 = sphi %s227, %s227
                $region58: #{attention_block_forward.4} parent=54 // loop_header_branch
                  %262 = sbr.rel (%p260) target = $region62
                $region59: #{attention_block_forward.4} parent=54 // loop_body
                  %v266 = vld [vmem:[%s264] sm:$0xff]
                  %267 = vst [vmem:[%s265] sm:$0xff] %v266
                  %v268 = vld [vmem:[%s264 + $0x10] sm:$0xff]
                  %269 = vst [vmem:[%s265 + $0x8] sm:$0xff] %v268
                  %v270 = vld [vmem:[%s264 + $0x20] sm:$0xff]
                  %271 = vst [vmem:[%s265 + $0x10] sm:$0xff] %v270
                  %v272 = vld [vmem:[%s264 + $0x30] sm:$0xff]
                  %273 = vst [vmem:[%s265 + $0x18] sm:$0xff] %v272
                $region60: #{attention_block_forward.4} parent=54 // loop_footer
                  %s263 = sadd.s32 1, %s259
                $region61: #{attention_block_forward.4} parent=54 // loop_footer_branch
                  %258 = sbr.rel target = $region57
                $region62: #{attention_block_forward.4} parent=54 // loop_exit
                  _
              $region55: #{attention_block_forward.4} parent=39 // pred_fallthru
                _
              // Predicated region
              $region63: #{attention_block_forward.4} parent=39 // pred_check
                _
              $region64: #{attention_block_forward.4} parent=39 // pred_check_branch
                %275 = sbr.rel target = $region66
              $region65: #{attention_block_forward.4} parent=39 // pred_region
                _
              $region66: #{attention_block_forward.4} parent=39 // pred_fallthru
                _
            $region40: #{attention_block_forward.4} parent=35 // pred_fallthru
              _
            // Predicated region
            $region41: #{attention_block_forward.4} parent=35 // pred_check
              _
            $region42: #{attention_block_forward.4} parent=35 // pred_check_branch
              %238 = sbr.rel target = $region44
            $region43: #{attention_block_forward.4} parent=35 // pred_region
              loop: start=0, step=1, limit=1
              $region45: #{attention_block_forward.4} parent=43 // loop_pre_header
                _
              $region46: #{attention_block_forward.4} parent=43 // loop_header
                %s241 = sphi 0, %s245
                %p242 = scmp.ge.s32.totalorder %s241, 1
                %s246 = sphi %s232, %s232
                %s247 = sphi %s227, %s227
              $region47: #{attention_block_forward.4} parent=43 // loop_header_branch
                %244 = sbr.rel (%p242) target = $region51
              $region48: #{attention_block_forward.4} parent=43 // loop_body
                %v248 = vld [vmem:[%s246] sm:$0xff]
                %249 = vst [vmem:[%s247] sm:$0xff] %v248
                %v250 = vld [vmem:[%s246 + $0x10] sm:$0xff]
                %251 = vst [vmem:[%s247 + $0x8] sm:$0xff] %v250
                %v252 = vld [vmem:[%s246 + $0x20] sm:$0xff]
                %253 = vst [vmem:[%s247 + $0x10] sm:$0xff] %v252
                %v254 = vld [vmem:[%s246 + $0x30] sm:$0xff]
                %255 = vst [vmem:[%s247 + $0x18] sm:$0xff] %v254
              $region49: #{attention_block_forward.4} parent=43 // loop_footer
                %s245 = sadd.s32 1, %s241
              $region50: #{attention_block_forward.4} parent=43 // loop_footer_branch
                %240 = sbr.rel target = $region46
              $region51: #{attention_block_forward.4} parent=43 // loop_exit
                _
            $region44: #{attention_block_forward.4} parent=35 // pred_fallthru
              _
          $region36: #{attention_block_forward.4} parent=31 // pred_fallthru
            _
          %276 = vnop
        $region32: #{attention_block_forward.4} parent=27 // pred_fallthru
          _
        // Predicated region
        $region67: #{attention_block_forward.4} parent=27 // pred_check
          %p277 = pneg %p72
        $region68: #{attention_block_forward.4} parent=27 // pred_check_branch
          %279 = sbr.rel (%p277) target = $region70
        $region69: #{attention_block_forward.4} parent=27 // pred_region
          %p280 = scmp.lt.s32.totalorder %s19, 1
          %s281 = scalar_select %p280, %s19, 1
          %s282 = smul.addr %s281, 8
          %s283 = scalar_lea.vmem %s1, %s282
        $region70: #{attention_block_forward.4} parent=27 // pred_fallthru
          _
        // Predicated region
        $region71: #{attention_block_forward.4} parent=27 // pred_check
          %p284 = pneg %p98
        $region72: #{attention_block_forward.4} parent=27 // pred_check_branch
          %286 = sbr.rel (%p284) target = $region74
        $region73: #{attention_block_forward.4} parent=27 // pred_region
          %p287 = scmp.lt.s32.totalorder %s20, 1
          %s288 = scalar_select %p287, %s20, 1
          %s289 = smul.addr %s288, 8
          %s290 = scalar_lea.vmem %s2, %s289
        $region74: #{attention_block_forward.4} parent=27 // pred_fallthru
          _
      $region28: #{attention_block_forward.4} parent=5 // pred_fallthru
        _
      %p291 = scmp.le.s32.totalorder 1, %s12
      %p292 = scmp.lt.s32.totalorder %s12, 5
      %p293 = pnand %p291, %p292
      %p294 = pneg %p293
      // Predicated region
      $region75: #{attention_block_forward.4} parent=5 // pred_check
        _
      $region76: #{attention_block_forward.4} parent=5 // pred_check_branch
        %296 = sbr.rel (%p293) target = $region78
      $region77: #{attention_block_forward.4} parent=5 // pred_region
        %s297 = ssub.s32 %s12, 1
        %s298 = sand.u32 %s39, 1
        %s299 = sand.u32 %s39, 1
        %s300 = smul.addr %s299, 32
        %s301 = scalar_lea.vmem [#allocation2], %s300
        // Predicated region
        $region79: #{attention_block_forward.4} parent=77 // pred_check
          %p302 = pneg %p52
        $region80: #{attention_block_forward.4} parent=77 // pred_check_branch
          %304 = sbr.rel (%p302) target = $region82
        $region81: #{attention_block_forward.4} parent=77 // pred_region
          _
        $region82: #{attention_block_forward.4} parent=77 // pred_fallthru
          _
        %s305 = sand.u32 %s39, 1
        %s306 = sand.u32 %s39, 1
        %s307 = smul.addr %s306, 32
        %s308 = scalar_lea.vmem [#allocation2], %s307
        %p309 = pneg %p52
        %p310 = pneg %p49
        %p311 = scmp.lt.s32.totalorder %s21, 1
        %s312 = scalar_select %p311, %s21, 1
        %s313 = smul.addr %s312, 8
        %s314 = scalar_lea.vmem %s1, %s313
        %p315 = pneg %p78
        %p316 = pneg %p75
        %p317 = scmp.lt.s32.totalorder %s22, 1
        %s318 = scalar_select %p317, %s22, 1
        %s319 = smul.addr %s318, 8
        %s320 = scalar_lea.vmem %s2, %s319
        %p321 = pneg %p104
        %p322 = pneg %p101
        %p323 = pneg %p125
        %p324 = pneg %p122
        %p325 = pneg %p146
        %p326 = pneg %p143
        %p327 = pneg %p167
        %p328 = pneg %p164
        %p329 = pneg %p193
        %p330 = pneg %p190
        %p331 = scmp.lt.s32.totalorder %s21, 1
        %s332 = scalar_select %p331, %s21, 1
        %s333 = smul.addr %s332, 4
        %s334 = scalar_lea.vmem %s6, %s333
        %s335 = smul.u32 4, %s21
        %p336 = scmp.lt.s32.totalorder %s21, 1
        %s337 = scalar_select %p336, %s21, 1
        %s338 = smul.addr %s337, 8
        %s339 = scalar_lea.vmem %s1, %s338
        %p340 = scmp.lt.s32.totalorder %s22, 1
        %s341 = scalar_select %p340, %s22, 1
        %s342 = smul.addr %s341, 8
        %s343 = scalar_lea.vmem %s2, %s342
        %p344 = scmp.lt.s32.totalorder %s21, 1
        %s345 = scalar_select %p344, %s21, 1
        %s346 = smul.addr %s345, 4
        %s347 = scalar_lea.vmem %s6, %s346
        %v348 = vld [vmem:[%s301] sm:$0xff]
        %v349 = vld [vmem:[%s301 + $0x8] sm:$0xff]
        %v350 = vld [vmem:[%s301 + $0x10] sm:$0xff]
        %v351 = vld [vmem:[%s301 + $0x18] sm:$0xff]
        %v352 = vld [vmem:[%s339] sm:$0xff]
        %v353 = vld [vmem:[%s343] sm:$0xff]
        %vm354 = vcmask 64512
        %v356 = vsel %vm354, %v353, 0
        %358 = vmatprep.subr.mxu0 0.0
        %359 = vmatpush1.msra.mxu0 %v352
        %360 = vmatprep.subr.mxu0 0.0
        %361 = vmatpush1.msra.mxu0 0.0
        %362 = vmatprep.subr.mxu0 0.0
        %363 = vmatpush1.msra.mxu0 0.0
        %364 = vmatprep.subr.mxu0 0.0
        %365 = vmatpush1.msra.mxu0 0.0
        %366 = vmatprep.subr.mxu0 0.0
        %367 = vmatpush1.msra.mxu0 0.0
        %368 = vmatprep.subr.mxu0 0.0
        %369 = vmatpush1.msra.mxu0 0.0
        %370 = vmatprep.subr.mxu0 0.0
        %371 = vmatpush1.msra.mxu0 0.0
        %372 = vmatprep.subr.mxu0 0.0
        %373 = vmatpush1.msra.mxu0 0.0
        %374 = vmatprep.subr.mxu0 0.0
        %375 = vmatpush1.msra.mxu0 0.0
        %376 = vmatprep.subr.mxu0 0.0
        %377 = vmatpush1.msra.mxu0 0.0
        %378 = vmatprep.subr.mxu0 0.0
        %379 = vmatpush1.msra.mxu0 0.0
        %380 = vmatprep.subr.mxu0 0.0
        %381 = vmatpush1.msra.mxu0 0.0
        %382 = vmatprep.subr.mxu0 0.0
        %383 = vmatpush1.msra.mxu0 0.0
        %384 = vmatprep.subr.mxu0 0.0
        %385 = vmatpush1.msra.mxu0 0.0
        %386 = vmatprep.subr.mxu0 0.0
        %387 = vmatpush1.msra.mxu0 0.0
        %388 = vmatprep.subr.mxu0 0.0
        %389 = vmatpush1.msra.mxu0 0.0
        %390 = vmatprep.subr.mxu0 0.0
        %391 = vmatpush1.msra.mxu0 0.0
        %392 = vmatprep.subr.mxu0 0.0
        %393 = vmatpush1.msra.mxu0 0.0
        %394 = vmatprep.subr.mxu0 0.0
        %395 = vmatpush1.msra.mxu0 0.0
        %396 = vmatprep.subr.mxu0 0.0
        %397 = vmatpush1.msra.mxu0 0.0
        %398 = vmatprep.subr.mxu0 0.0
        %399 = vmatpush1.msra.mxu0 0.0
        %400 = vmatprep.subr.mxu0 0.0
        %401 = vmatpush1.msra.mxu0 0.0
        %402 = vmatprep.subr.mxu0 0.0
        %403 = vmatpush1.msra.mxu0 0.0
        %404 = vmatprep.subr.mxu0 0.0
        %405 = vmatpush1.msra.mxu0 0.0
        %406 = vmatprep.subr.mxu0 0.0
        %407 = vmatpush1.msra.mxu0 0.0
        %408 = vmatprep.subr.mxu0 0.0
        %409 = vmatpush1.msra.mxu0 0.0
        %410 = vmatprep.subr.mxu0 0.0
        %411 = vmatpush1.msra.mxu0 0.0
        %412 = vmatprep.subr.mxu0 0.0
        %413 = vmatpush1.msra.mxu0 0.0
        %414 = vmatprep.subr.mxu0 0.0
        %415 = vmatpush1.msra.mxu0 0.0
        %416 = vmatprep.subr.mxu0 0.0
        %417 = vmatpush1.msra.mxu0 0.0
        %418 = vmatprep.subr.mxu0 0.0
        %419 = vmatpush1.msra.mxu0 0.0
        %420 = vmatprep.subr.mxu0 0.0
        %421 = vmatpush1.msra.mxu0 0.0
        %422 = vmatprep.mubr.f32.mxu0 0.0
        %423 = vmatmul.mubr.f32.gmra.mrb[0].mxu0 %v356
        %v424 = vpop.f32.mrb[0].mxu0
        %v425 = vadd.f32 0.0, %v424
        %v426 = vpop.f32.mrb[0].mxu0
        %427 = vdwg.mxu0
        %v428 = vld [vmem:[%s3] sm:$0xff]
        %v430 = vsel %vm354, %v425, 0
        %432 = vmatprep.subr.mxu0 0.0
        %433 = vmatpush1.msra.mxu0 %v428
        %434 = vmatprep.subr.mxu0 0.0
        %435 = vmatpush1.msra.mxu0 0.0
        %436 = vmatprep.subr.mxu0 0.0
        %437 = vmatpush1.msra.mxu0 0.0
        %438 = vmatprep.subr.mxu0 0.0
        %439 = vmatpush1.msra.mxu0 0.0
        %440 = vmatprep.subr.mxu0 0.0
        %441 = vmatpush1.msra.mxu0 0.0
        %442 = vmatprep.subr.mxu0 0.0
        %443 = vmatpush1.msra.mxu0 0.0
        %444 = vmatprep.subr.mxu0 0.0
        %445 = vmatpush1.msra.mxu0 0.0
        %446 = vmatprep.subr.mxu0 0.0
        %447 = vmatpush1.msra.mxu0 0.0
        %448 = vmatprep.subr.mxu0 0.0
        %449 = vmatpush1.msra.mxu0 0.0
        %450 = vmatprep.subr.mxu0 0.0
        %451 = vmatpush1.msra.mxu0 0.0
        %452 = vmatprep.subr.mxu0 0.0
        %453 = vmatpush1.msra.mxu0 0.0
        %454 = vmatprep.subr.mxu0 0.0
        %455 = vmatpush1.msra.mxu0 0.0
        %456 = vmatprep.subr.mxu0 0.0
        %457 = vmatpush1.msra.mxu0 0.0
        %458 = vmatprep.subr.mxu0 0.0
        %459 = vmatpush1.msra.mxu0 0.0
        %460 = vmatprep.subr.mxu0 0.0
        %461 = vmatpush1.msra.mxu0 0.0
        %462 = vmatprep.subr.mxu0 0.0
        %463 = vmatpush1.msra.mxu0 0.0
        %464 = vmatprep.subr.mxu0 0.0
        %465 = vmatpush1.msra.mxu0 0.0
        %466 = vmatprep.subr.mxu0 0.0
        %467 = vmatpush1.msra.mxu0 0.0
        %468 = vmatprep.subr.mxu0 0.0
        %469 = vmatpush1.msra.mxu0 0.0
        %470 = vmatprep.subr.mxu0 0.0
        %471 = vmatpush1.msra.mxu0 0.0
        %472 = vmatprep.subr.mxu0 0.0
        %473 = vmatpush1.msra.mxu0 0.0
        %474 = vmatprep.subr.mxu0 0.0
        %475 = vmatpush1.msra.mxu0 0.0
        %476 = vmatprep.subr.mxu0 0.0
        %477 = vmatpush1.msra.mxu0 0.0
        %478 = vmatprep.subr.mxu0 0.0
        %479 = vmatpush1.msra.mxu0 0.0
        %480 = vmatprep.subr.mxu0 0.0
        %481 = vmatpush1.msra.mxu0 0.0
        %482 = vmatprep.subr.mxu0 0.0
        %483 = vmatpush1.msra.mxu0 0.0
        %484 = vmatprep.subr.mxu0 0.0
        %485 = vmatpush1.msra.mxu0 0.0
        %486 = vmatprep.subr.mxu0 0.0
        %487 = vmatpush1.msra.mxu0 0.0
        %488 = vmatprep.subr.mxu0 0.0
        %489 = vmatpush1.msra.mxu0 0.0
        %490 = vmatprep.subr.mxu0 0.0
        %491 = vmatpush1.msra.mxu0 0.0
        %492 = vmatprep.subr.mxu0 0.0
        %493 = vmatpush1.msra.mxu0 0.0
        %494 = vmatprep.subr.mxu0 0.0
        %495 = vmatpush1.msra.mxu0 0.0
        %496 = vmatprep.mubr.f32.mxu0 0.0
        %497 = vmatmul.mubr.f32.gmra.mrb[0].mxu0 %v430
        %v498 = vpop.f32.mrb[0].mxu0
        %v499 = vadd.f32 0.0, %v498
        %v500 = vpop.f32.mrb[0].mxu0
        %501 = vdwg.mxu0
        %v502 = vmul.f32 %v499, %v348
        %v503 = vmul.f32 %v499, %v349
        %v504 = vmul.f32 %v499, %v350
        %v505 = vmul.f32 %v499, %v351
        %v506 = vld [vmem:[%s4] sm:$0x1]
        %v507 = vld [vmem:[%s4 + $0x1] sm:$0x1]
        %v508 = vld [vmem:[%s4 + $0x2] sm:$0x1]
        %v509 = vld [vmem:[%s4 + $0x3] sm:$0x1]
        %v510 = vld [vmem:[%s4 + $0x4] sm:$0x1]
        %v511 = vld [vmem:[%s4 + $0x5] sm:$0x1]
        %v512 = vld [vmem:[%s4 + $0x6] sm:$0x1]
        %v513 = vld [vmem:[%s4 + $0x7] sm:$0x1]
        %v514 = vld [vmem:[%s4 + $0x8] sm:$0x1]
        %v515 = vld [vmem:[%s4 + $0x9] sm:$0x1]
        %v516 = vld [vmem:[%s4 + $0xa] sm:$0x1]
        %v517 = vld [vmem:[%s4 + $0xb] sm:$0x1]
        %v518 = vld [vmem:[%s4 + $0xc] sm:$0x1]
        %v519 = vld [vmem:[%s4 + $0xd] sm:$0x1]
        %v520 = vld [vmem:[%s4 + $0xe] sm:$0x1]
        %v521 = vld [vmem:[%s4 + $0xf] sm:$0x1]
        %v538 = vlaneseq
        %v539 = vshrl.u32 %v538, 7
        %v540 = vsub.s32 0, %v539
        %v541 = vrot.slane %v506, %v540
        %v542 = vlaneseq
        %v543 = vshrl.u32 %v542, 7
        %v544 = vsub.s32 0, %v543
        %v545 = vrot.slane %v507, %v544
        %v546 = vlaneseq
        %v547 = vshrl.u32 %v546, 7
        %v548 = vsub.s32 0, %v547
        %v549 = vrot.slane %v508, %v548
        %v550 = vlaneseq
        %v551 = vshrl.u32 %v550, 7
        %v552 = vsub.s32 0, %v551
        %v553 = vrot.slane %v509, %v552
        %v554 = vlaneseq
        %v555 = vshrl.u32 %v554, 7
        %v556 = vsub.s32 0, %v555
        %v557 = vrot.slane %v510, %v556
        %v558 = vlaneseq
        %v559 = vshrl.u32 %v558, 7
        %v560 = vsub.s32 0, %v559
        %v561 = vrot.slane %v511, %v560
        %v562 = vlaneseq
        %v563 = vshrl.u32 %v562, 7
        %v564 = vsub.s32 0, %v563
        %v565 = vrot.slane %v512, %v564
        %v566 = vlaneseq
        %v567 = vshrl.u32 %v566, 7
        %v568 = vsub.s32 0, %v567
        %v569 = vrot.slane %v513, %v568
        %v570 = vlaneseq
        %v571 = vshrl.u32 %v570, 7
        %v572 = vsub.s32 0, %v571
        %v573 = vrot.slane %v514, %v572
        %v574 = vlaneseq
        %v575 = vshrl.u32 %v574, 7
        %v576 = vsub.s32 0, %v575
        %v577 = vrot.slane %v515, %v576
        %v578 = vlaneseq
        %v579 = vshrl.u32 %v578, 7
        %v580 = vsub.s32 0, %v579
        %v581 = vrot.slane %v516, %v580
        %v582 = vlaneseq
        %v583 = vshrl.u32 %v582, 7
        %v584 = vsub.s32 0, %v583
        %v585 = vrot.slane %v517, %v584
        %v586 = vlaneseq
        %v587 = vshrl.u32 %v586, 7
        %v588 = vsub.s32 0, %v587
        %v589 = vrot.slane %v518, %v588
        %v590 = vlaneseq
        %v591 = vshrl.u32 %v590, 7
        %v592 = vsub.s32 0, %v591
        %v593 = vrot.slane %v519, %v592
        %v594 = vlaneseq
        %v595 = vshrl.u32 %v594, 7
        %v596 = vsub.s32 0, %v595
        %v597 = vrot.slane %v520, %v596
        %v598 = vlaneseq
        %v599 = vshrl.u32 %v598, 7
        %v600 = vsub.s32 0, %v599
        %v601 = vrot.slane %v521, %v600
        %602 = vset.pattern.permute.xlu0 0
        %603 = vperm.xlu0 %602, %v541
        %v604 = vpop.permute.xlu0 %603
        %606 = vset.pattern.permute.xlu0 0
        %607 = vperm.xlu0 %606, %v545
        %v608 = vpop.permute.xlu0 %607
        %610 = vset.pattern.permute.xlu0 0
        %611 = vperm.xlu0 %610, %v549
        %v612 = vpop.permute.xlu0 %611
        %614 = vset.pattern.permute.xlu0 0
        %615 = vperm.xlu0 %614, %v553
        %v616 = vpop.permute.xlu0 %615
        %618 = vset.pattern.permute.xlu0 0
        %619 = vperm.xlu0 %618, %v557
        %v620 = vpop.permute.xlu0 %619
        %622 = vset.pattern.permute.xlu0 0
        %623 = vperm.xlu0 %622, %v561
        %v624 = vpop.permute.xlu0 %623
        %626 = vset.pattern.permute.xlu0 0
        %627 = vperm.xlu0 %626, %v565
        %v628 = vpop.permute.xlu0 %627
        %630 = vset.pattern.permute.xlu0 0
        %631 = vperm.xlu0 %630, %v569
        %v632 = vpop.permute.xlu0 %631
        %634 = vset.pattern.permute.xlu0 0
        %635 = vperm.xlu0 %634, %v573
        %v636 = vpop.permute.xlu0 %635
        %638 = vset.pattern.permute.xlu0 0
        %639 = vperm.xlu0 %638, %v577
        %v640 = vpop.permute.xlu0 %639
        %642 = vset.pattern.permute.xlu0 0
        %643 = vperm.xlu0 %642, %v581
        %v644 = vpop.permute.xlu0 %643
        %646 = vset.pattern.permute.xlu0 0
        %647 = vperm.xlu0 %646, %v585
        %v648 = vpop.permute.xlu0 %647
        %650 = vset.pattern.permute.xlu0 0
        %651 = vperm.xlu0 %650, %v589
        %v652 = vpop.permute.xlu0 %651
        %654 = vset.pattern.permute.xlu0 0
        %655 = vperm.xlu0 %654, %v593
        %v656 = vpop.permute.xlu0 %655
        %658 = vset.pattern.permute.xlu0 0
        %659 = vperm.xlu0 %658, %v597
        %v660 = vpop.permute.xlu0 %659
        %662 = vset.pattern.permute.xlu0 0
        %663 = vperm.xlu0 %662, %v601
        %v664 = vpop.permute.xlu0 %663
        %v666 = vmul.f32 %v604, %v502
        %v667 = vmul.f32 %v608, %v503
        %v668 = vmul.f32 %v612, %v504
        %v669 = vmul.f32 %v616, %v505
        %v670 = vmul.f32 %v620, %v502
        %v671 = vmul.f32 %v624, %v503
        %v672 = vmul.f32 %v628, %v504
        %v673 = vmul.f32 %v632, %v505
        %v674 = vmul.f32 %v636, %v502
        %v675 = vmul.f32 %v640, %v503
        %v676 = vmul.f32 %v644, %v504
        %v677 = vmul.f32 %v648, %v505
        %v678 = vmul.f32 %v652, %v502
        %v679 = vmul.f32 %v656, %v503
        %v680 = vmul.f32 %v660, %v504
        %v681 = vmul.f32 %v664, %v505
        %vm682 = vcmask 130048
        %v683 = vsel %vm682, %v666, 0.0
        %v684 = vsel %vm682, %v667, 0.0
        %v685 = vadd.f32 %v683, %v684
        %v686 = vsel %vm682, %v668, 0.0
        %v687 = vadd.f32 %v685, %v686
        %v688 = vsel %vm682, %v669, 0.0
        %v689 = vadd.f32 %v687, %v688
        %v690 = vsel %vm682, %v670, 0.0
        %v691 = vsel %vm682, %v671, 0.0
        %v692 = vadd.f32 %v690, %v691
        %v693 = vsel %vm682, %v672, 0.0
        %v694 = vadd.f32 %v692, %v693
        %v695 = vsel %vm682, %v673, 0.0
        %v696 = vadd.f32 %v694, %v695
        %v697 = vsel %vm682, %v674, 0.0
        %v698 = vsel %vm682, %v675, 0.0
        %v699 = vadd.f32 %v697, %v698
        %v700 = vsel %vm682, %v676, 0.0
        %v701 = vadd.f32 %v699, %v700
        %v702 = vsel %vm682, %v677, 0.0
        %v703 = vadd.f32 %v701, %v702
        %v704 = vsel %vm682, %v678, 0.0
        %v705 = vsel %vm682, %v679, 0.0
        %v706 = vadd.f32 %v704, %v705
        %v707 = vsel %vm682, %v680, 0.0
        %v708 = vadd.f32 %v706, %v707
        %v709 = vsel %vm682, %v681, 0.0
        %v710 = vadd.f32 %v708, %v709
        %v711 = vld [vmem:[%s5] sm:$0x1]
        %v712 = vld [vmem:[%s5 + $0x1] sm:$0x1]
        %v713 = vld [vmem:[%s5 + $0x2] sm:$0x1]
        %v714 = vld [vmem:[%s5 + $0x3] sm:$0x1]
        %v719 = vlaneseq
        %v720 = vshrl.u32 %v719, 7
        %v721 = vsub.s32 0, %v720
        %v722 = vrot.slane %v711, %v721
        %v723 = vlaneseq
        %v724 = vshrl.u32 %v723, 7
        %v725 = vsub.s32 0, %v724
        %v726 = vrot.slane %v712, %v725
        %v727 = vlaneseq
        %v728 = vshrl.u32 %v727, 7
        %v729 = vsub.s32 0, %v728
        %v730 = vrot.slane %v713, %v729
        %v731 = vlaneseq
        %v732 = vshrl.u32 %v731, 7
        %v733 = vsub.s32 0, %v732
        %v734 = vrot.slane %v714, %v733
        %735 = vset.pattern.permute.xlu0 0
        %736 = vperm.xlu0 %735, %v722
        %v737 = vpop.permute.xlu0 %736
        %739 = vset.pattern.permute.xlu0 0
        %740 = vperm.xlu0 %739, %v726
        %v741 = vpop.permute.xlu0 %740
        %743 = vset.pattern.permute.xlu0 0
        %744 = vperm.xlu0 %743, %v730
        %v745 = vpop.permute.xlu0 %744
        %747 = vset.pattern.permute.xlu0 0
        %748 = vperm.xlu0 %747, %v734
        %v749 = vpop.permute.xlu0 %748
        %v751 = vadd.f32 %v689, %v737
        %v752 = vadd.f32 %v696, %v741
        %v753 = vadd.f32 %v703, %v745
        %v754 = vadd.f32 %v710, %v749
        %v755 = vsel %vm682, %v751, 0.0
        %756 = vadd.xlane.f32.xlu0 %v755
        %v757 = vpop.xlane.xlu0 %756
        %v758 = vsel %vm682, %v752, 0.0
        %759 = vadd.xlane.f32.xlu0 %v758
        %v760 = vpop.xlane.xlu0 %759
        %v761 = vsel %vm682, %v753, 0.0
        %762 = vadd.xlane.f32.xlu0 %v761
        %v763 = vpop.xlane.xlu0 %762
        %v764 = vsel %vm682, %v754, 0.0
        %765 = vadd.xlane.f32.xlu0 %v764
        %v766 = vpop.xlane.xlu0 %765
        %v771 = vlaneseq
        %v772 = vand.u32 %v771, 127
        %v773 = vlaneseq
        %v774 = vshrl.u32 %v773, 7
        %v775 = vsub.s32 %v772, %v774
        %v776 = vrot.slane %v757, %v775
        %v777 = vlaneseq
        %v778 = vshrl.u32 %v777, 7
        %v779 = vsub.s32 %v772, %v778
        %v780 = vrot.slane %v760, %v779
        %v781 = vlaneseq
        %v782 = vshrl.u32 %v781, 7
        %v783 = vsub.s32 %v772, %v782
        %v784 = vrot.slane %v763, %v783
        %v785 = vlaneseq
        %v786 = vshrl.u32 %v785, 7
        %v787 = vsub.s32 %v772, %v786
        %v788 = vrot.slane %v766, %v787
        %vm789 = vcmask 1041409
        %v790 = vsel %vm789, %v780, %v776
        %vm791 = vcmask 1042434
        %v792 = vsel %vm791, %v784, %v790
        %vm793 = vcmask 1043459
        %v794 = vsel %vm793, %v788, %v792
        %vm796 = vcmask 60416
        %v797 = vsel %vm796, %v794, 0.0
        %798 = vadd.xlane.f32.xlu0 %v797
        %v799 = vpop.xlane.xlu0 %798
        %v800 = vmul.f32 %v751, %v751
        %v801 = vmul.f32 %v752, %v752
        %v802 = vmul.f32 %v753, %v753
        %v803 = vmul.f32 %v754, %v754
        %v804 = vsel %vm682, %v800, 0.0
        %805 = vadd.xlane.f32.xlu0 %v804
        %v806 = vpop.xlane.xlu0 %805
        %v807 = vsel %vm682, %v801, 0.0
        %808 = vadd.xlane.f32.xlu0 %v807
        %v809 = vpop.xlane.xlu0 %808
        %v810 = vsel %vm682, %v802, 0.0
        %811 = vadd.xlane.f32.xlu0 %v810
        %v812 = vpop.xlane.xlu0 %811
        %v813 = vsel %vm682, %v803, 0.0
        %814 = vadd.xlane.f32.xlu0 %v813
        %v815 = vpop.xlane.xlu0 %814
        %v820 = vlaneseq
        %v821 = vshrl.u32 %v820, 7
        %v822 = vsub.s32 %v772, %v821
        %v823 = vrot.slane %v806, %v822
        %v824 = vlaneseq
        %v825 = vshrl.u32 %v824, 7
        %v826 = vsub.s32 %v772, %v825
        %v827 = vrot.slane %v809, %v826
        %v828 = vlaneseq
        %v829 = vshrl.u32 %v828, 7
        %v830 = vsub.s32 %v772, %v829
        %v831 = vrot.slane %v812, %v830
        %v832 = vlaneseq
        %v833 = vshrl.u32 %v832, 7
        %v834 = vsub.s32 %v772, %v833
        %v835 = vrot.slane %v815, %v834
        %v836 = vsel %vm789, %v827, %v823
        %v837 = vsel %vm791, %v831, %v836
        %v838 = vsel %vm793, %v835, %v837
        %v840 = vsel %vm796, %v838, 0.0
        %841 = vadd.xlane.f32.xlu0 %v840
        %v842 = vpop.xlane.xlu0 %841
        %vm843 = vcmask 7168
        %v844 = vsel %vm843, %v799, %v842
        %p845 = scmp.eq.s32.totalorder %s22, 0
        // Predicated region
        $region83: #{attention_block_forward.4} parent=77 // pred_check
          %p846 = pneg %p845
        $region84: #{attention_block_forward.4} parent=77 // pred_check_branch
          %848 = sbr.rel (%p846) target = $region86
        $region85: #{attention_block_forward.4} parent=77 // pred_region
          %vm849 = vcmask 11264
          %850 = vst.msk [vmem:[%s347] sm:$0xf] %vm849, 0.0
        $region86: #{attention_block_forward.4} parent=77 // pred_fallthru
          _
        %v851 = vld [vmem:[%s347] sm:$0xf]
        %v852 = vadd.f32 %v851, %v844
        %vm853 = vcmask 11264
        %854 = vst.msk [vmem:[%s347] sm:$0xf] %vm853, %v852
        %p855 = scmp.lt.s32.totalorder %s21, 1
        %s856 = scalar_select %p855, %s21, 1
        %s857 = smul.addr %s856, 4
        %s858 = scalar_lea.vmem %s6, %s857
        // Predicated region
        $region87: #{attention_block_forward.4} parent=77 // pred_check
          %p859 = pneg %p190
        $region88: #{attention_block_forward.4} parent=77 // pred_check_branch
          %861 = sbr.rel (%p859) target = $region90
        $region89: #{attention_block_forward.4} parent=77 // pred_region
          _
        $region90: #{attention_block_forward.4} parent=77 // pred_fallthru
          _
      $region78: #{attention_block_forward.4} parent=5 // pred_fallthru
        _
      %p862 = scmp.le.s32.totalorder 2, %s12
      // Predicated region
      $region91: #{attention_block_forward.4} parent=5 // pred_check
        %p863 = pneg %p862
      $region92: #{attention_block_forward.4} parent=5 // pred_check_branch
        %865 = sbr.rel (%p863) target = $region94
      $region93: #{attention_block_forward.4} parent=5 // pred_region
        %s866 = ssub.s32 %s12, 2
        // Predicated region
        $region95: #{attention_block_forward.4} parent=93 // pred_check
          %p867 = pneg %p196
        $region96: #{attention_block_forward.4} parent=93 // pred_check_branch
          %869 = sbr.rel (%p867) target = $region98
        $region97: #{attention_block_forward.4} parent=93 // pred_region
          %p870 = scmp.lt.s32.totalorder %s23, 1
          %s871 = scalar_select %p870, %s23, 1
          %s872 = smul.addr %s871, 4
          %s873 = scalar_lea.vmem %s6, %s872
        $region98: #{attention_block_forward.4} parent=93 // pred_fallthru
          _
      $region94: #{attention_block_forward.4} parent=5 // pred_fallthru
        _
    $region6: #{attention_block_forward.4} parent=1 // loop_footer
      %s16 = sadd.s32 1, %s12
    $region7: #{attention_block_forward.4} parent=1 // loop_footer_branch
      %11 = sbr.rel target = $region3
    $region8: #{attention_block_forward.4} parent=1 // loop_exit
      _

// kernel: attention_block_forward.3
$region0: #{attention_block_forward.3}
  #allocation0 [shape = 'u32[]', space=smem, size = 0x4, offset = 0x4, fixed_abs, tag = 'smem constant byte address 0x4 - core index']
  #allocation1 [shape = 'u32[144,128]{1,0:T(1,128)}', space=vmem, size = 0x12000, scoped, tag = 'internal scratch']
  #allocation2 [shape = 'f32[1,1]{1,0:T(1,128)S(1)}', space=vmem, size = 0x200, scoped, tag = 'scoped memory for attention_block_forward.3']
  %s0 = inlined_call_operand.vmem [shape: f32[8,8,2,16], index: 0, kind: input, shape index: {}]
  %s1 = inlined_call_operand.vmem [shape: f32[16,4,4], index: 1, kind: input, shape index: {}]
  %s2 = inlined_call_operand.vmem [shape: f32[2,16,8], index: 2, kind: input, shape index: {}]
  %s3 = inlined_call_operand.vmem [shape: f32[24,4,1,1], index: 3, kind: input, shape index: {}]
  %s4 = inlined_call_operand.vmem [shape: f32[6,8,1,1], index: 4, kind: input, shape index: {}]
  %s5 = inlined_call_operand.vmem [shape: f32[6,1,1], index: 5, kind: input, shape index: {}]
  %s6 = inlined_call_operand.vmem [shape: f32[8,4], index: 6, kind: input, shape index: {}]
  %s7 = inlined_call_operand.vmem [shape: f32[4,8], index: 7, kind: input, shape index: {}]
  %s8 = inlined_call_operand.vmem [shape: f32[6,1,1], index: 8, kind: input, shape index: {}]
  %s9 = inlined_call_operand.<no memory space> [shape: f32[1,1], index: 9, kind: input, shape index: {}]
  %s10 = inlined_call_operand.vmem [shape: f32[2,8,8], index: 10, kind: output, shape index: {}]
  %s11 = sld [smem:[#allocation0]]
  $region73: #{attention_block_forward.3} parent=0
    _
  %s13 = ssub.s32 1, %s11
  %s14 = scalar_select 0, %s13, %s11
  %v15 = vstv %s9
  %16 = vst [vmem:[#allocation2] sm:$0x1] %v15
  loop: start=0, step=1, limit=4
  $region2: #{attention_block_forward.3} parent=0 // loop_pre_header
    _
  $region3: #{attention_block_forward.3} parent=0 // loop_header
    %s18 = sphi 0, %s22
    %p19 = scmp.ge.s32.totalorder %s18, 4
    %s25 = sphi 0, %s37
    %s26 = sphi 0, %s33
    %s27 = sphi 0, %s25
    %s28 = sphi 0, %s26
    %s29 = sphi 0, %s27
    %s30 = sphi 0, %s28
    %s42 = sphi 0, %s44
    %s45 = sphi 0, %s42
    %s46 = sphi 0, %s45
    %s62 = sphi 0, %s46
    %s68 = sphi 0, %s70
    %s71 = sphi 0, %s68
    %s72 = sphi 0, %s71
    %s88 = sphi 0, %s72
    %s92 = sphi 0, %s92
    %s94 = sphi 0, %s92
    %s95 = sphi 0, %s94
    %s109 = sphi 0, %s95
    %s113 = sphi 0, %s113
    %s115 = sphi 0, %s113
    %s116 = sphi 0, %s115
    %s130 = sphi 0, %s116
    %s134 = sphi 0, %s134
    %s136 = sphi 0, %s134
    %s137 = sphi 0, %s136
    %s151 = sphi 0, %s137
    %s155 = sphi 0, %s155
    %s157 = sphi 0, %s155
    %s158 = sphi 0, %s157
    %s172 = sphi 0, %s158
    %s178 = sphi 0, %s180
    %s181 = sphi 0, %s178
    %s182 = sphi 0, %s181
    %s198 = sphi 0, %s182
    %s202 = sphi 0, %s202
    %s204 = sphi 0, %s202
    %s205 = sphi 0, %s204
    %s219 = sphi 0, %s205
    %s223 = sphi 0, %s223
    %s225 = sphi 0, %s223
    %s226 = sphi 0, %s225
    %s240 = sphi 0, %s226
    %s244 = sphi 0, %s244
    %s246 = sphi 0, %s244
    %s247 = sphi 0, %s246
    %s261 = sphi 0, %s247
    %s269 = sphi 0, %s271
    %s272 = sphi 0, %s269
    %s273 = sphi 0, %s272
    %s289 = sphi 0, %s273
  $region4: #{attention_block_forward.3} parent=0 // loop_header_branch
    %21 = sbr.rel (%p19) target = $region8
  $region5: #{attention_block_forward.3} parent=0 // loop_body
    %s23 = ssub.s32 %s18, 1
    %s24 = ssub.s32 %s18, 2
    %s31 = sadd.s32 1, %s26
    %p32 = scmp.ge.s32.totalorder %s31, 1
    %s33 = scalar_select %p32, 0, %s31
    %s34 = sadd.s32 1, %s25
    %s35 = scalar_select %p32, %s34, %s25
    %p36 = scmp.ge.s32.totalorder %s35, 2
    %s37 = scalar_select %p36, 0, %s35
    %s38 = ssub.s32 %s25, %s37
    %s39 = ssub.s32 %s26, %s33
    %s40 = sor.u32 %s38, %s39
    %p41 = scmp.eq.s32.totalorder %s40, 0
    %s43 = sadd.s32 %s42, 1
    %s44 = scalar_select %p41, %s42, %s43
    %p47 = pneg %p41
    %p48 = scmp.eq.s32.totalorder %s18, 1
    %p49 = por %p47, %p48
    %p50 = scmp.ne.s32.totalorder %s42, %s45
    %p51 = scmp.eq.s32.totalorder %s18, 0
    %p52 = por %p50, %p51
    %p53 = scmp.ne.s32.totalorder %s42, %s45
    %p54 = scmp.eq.s32.totalorder %s23, 1
    %p55 = por %p53, %p54
    %p56 = scmp.ne.s32.totalorder %s45, %s46
    %p57 = scmp.eq.s32.totalorder %s23, 0
    %p58 = por %p56, %p57
    %p59 = scmp.ne.s32.totalorder %s45, %s46
    %p60 = scmp.eq.s32.totalorder %s24, 1
    %p61 = por %p59, %p60
    %p63 = scmp.ne.s32.totalorder %s46, %s62
    %p64 = scmp.eq.s32.totalorder %s24, 0
    %p65 = por %p63, %p64
    %s66 = ssub.s32 %s25, %s37
    %p67 = scmp.eq.s32.totalorder %s66, 0
    %s69 = sadd.s32 %s68, 1
    %s70 = scalar_select %p67, %s68, %s69
    %p73 = pneg %p67
    %p74 = scmp.eq.s32.totalorder %s18, 1
    %p75 = por %p73, %p74
    %p76 = scmp.ne.s32.totalorder %s68, %s71
    %p77 = scmp.eq.s32.totalorder %s18, 0
    %p78 = por %p76, %p77
    %p79 = scmp.ne.s32.totalorder %s68, %s71
    %p80 = scmp.eq.s32.totalorder %s23, 1
    %p81 = por %p79, %p80
    %p82 = scmp.ne.s32.totalorder %s71, %s72
    %p83 = scmp.eq.s32.totalorder %s23, 0
    %p84 = por %p82, %p83
    %p85 = scmp.ne.s32.totalorder %s71, %s72
    %p86 = scmp.eq.s32.totalorder %s24, 1
    %p87 = por %p85, %p86
    %p89 = scmp.ne.s32.totalorder %s72, %s88
    %p90 = scmp.eq.s32.totalorder %s24, 0
    %p91 = por %p89, %p90
    %s93 = sadd.s32 %s92, 1
    %p96 = scmp.eq.s32.totalorder %s18, 1
    %p97 = scmp.ne.s32.totalorder %s92, %s94
    %p98 = scmp.eq.s32.totalorder %s18, 0
    %p99 = por %p97, %p98
    %p100 = scmp.ne.s32.totalorder %s92, %s94
    %p101 = scmp.eq.s32.totalorder %s23, 1
    %p102 = por %p100, %p101
    %p103 = scmp.ne.s32.totalorder %s94, %s95
    %p104 = scmp.eq.s32.totalorder %s23, 0
    %p105 = por %p103, %p104
    %p106 = scmp.ne.s32.totalorder %s94, %s95
    %p107 = scmp.eq.s32.totalorder %s24, 1
    %p108 = por %p106, %p107
    %p110 = scmp.ne.s32.totalorder %s95, %s109
    %p111 = scmp.eq.s32.totalorder %s24, 0
    %p112 = por %p110, %p111
    %s114 = sadd.s32 %s113, 1
    %p117 = scmp.eq.s32.totalorder %s18, 1
    %p118 = scmp.ne.s32.totalorder %s113, %s115
    %p119 = scmp.eq.s32.totalorder %s18, 0
    %p120 = por %p118, %p119
    %p121 = scmp.ne.s32.totalorder %s113, %s115
    %p122 = scmp.eq.s32.totalorder %s23, 1
    %p123 = por %p121, %p122
    %p124 = scmp.ne.s32.totalorder %s115, %s116
    %p125 = scmp.eq.s32.totalorder %s23, 0
    %p126 = por %p124, %p125
    %p127 = scmp.ne.s32.totalorder %s115, %s116
    %p128 = scmp.eq.s32.totalorder %s24, 1
    %p129 = por %p127, %p128
    %p131 = scmp.ne.s32.totalorder %s116, %s130
    %p132 = scmp.eq.s32.totalorder %s24, 0
    %p133 = por %p131, %p132
    %s135 = sadd.s32 %s134, 1
    %p138 = scmp.eq.s32.totalorder %s18, 1
    %p139 = scmp.ne.s32.totalorder %s134, %s136
    %p140 = scmp.eq.s32.totalorder %s18, 0
    %p141 = por %p139, %p140
    %p142 = scmp.ne.s32.totalorder %s134, %s136
    %p143 = scmp.eq.s32.totalorder %s23, 1
    %p144 = por %p142, %p143
    %p145 = scmp.ne.s32.totalorder %s136, %s137
    %p146 = scmp.eq.s32.totalorder %s23, 0
    %p147 = por %p145, %p146
    %p148 = scmp.ne.s32.totalorder %s136, %s137
    %p149 = scmp.eq.s32.totalorder %s24, 1
    %p150 = por %p148, %p149
    %p152 = scmp.ne.s32.totalorder %s137, %s151
    %p153 = scmp.eq.s32.totalorder %s24, 0
    %p154 = por %p152, %p153
    %s156 = sadd.s32 %s155, 1
    %p159 = scmp.eq.s32.totalorder %s18, 1
    %p160 = scmp.ne.s32.totalorder %s155, %s157
    %p161 = scmp.eq.s32.totalorder %s18, 0
    %p162 = por %p160, %p161
    %p163 = scmp.ne.s32.totalorder %s155, %s157
    %p164 = scmp.eq.s32.totalorder %s23, 1
    %p165 = por %p163, %p164
    %p166 = scmp.ne.s32.totalorder %s157, %s158
    %p167 = scmp.eq.s32.totalorder %s23, 0
    %p168 = por %p166, %p167
    %p169 = scmp.ne.s32.totalorder %s157, %s158
    %p170 = scmp.eq.s32.totalorder %s24, 1
    %p171 = por %p169, %p170
    %p173 = scmp.ne.s32.totalorder %s158, %s172
    %p174 = scmp.eq.s32.totalorder %s24, 0
    %p175 = por %p173, %p174
    %s176 = ssub.s32 %s26, %s33
    %p177 = scmp.eq.s32.totalorder %s176, 0
    %s179 = sadd.s32 %s178, 1
    %s180 = scalar_select %p177, %s178, %s179
    %p183 = pneg %p177
    %p184 = scmp.eq.s32.totalorder %s18, 1
    %p185 = por %p183, %p184
    %p186 = scmp.ne.s32.totalorder %s178, %s181
    %p187 = scmp.eq.s32.totalorder %s18, 0
    %p188 = por %p186, %p187
    %p189 = scmp.ne.s32.totalorder %s178, %s181
    %p190 = scmp.eq.s32.totalorder %s23, 1
    %p191 = por %p189, %p190
    %p192 = scmp.ne.s32.totalorder %s181, %s182
    %p193 = scmp.eq.s32.totalorder %s23, 0
    %p194 = por %p192, %p193
    %p195 = scmp.ne.s32.totalorder %s181, %s182
    %p196 = scmp.eq.s32.totalorder %s24, 1
    %p197 = por %p195, %p196
    %p199 = scmp.ne.s32.totalorder %s182, %s198
    %p200 = scmp.eq.s32.totalorder %s24, 0
    %p201 = por %p199, %p200
    %s203 = sadd.s32 %s202, 1
    %p206 = scmp.eq.s32.totalorder %s18, 1
    %p207 = scmp.ne.s32.totalorder %s202, %s204
    %p208 = scmp.eq.s32.totalorder %s18, 0
    %p209 = por %p207, %p208
    %p210 = scmp.ne.s32.totalorder %s202, %s204
    %p211 = scmp.eq.s32.totalorder %s23, 1
    %p212 = por %p210, %p211
    %p213 = scmp.ne.s32.totalorder %s204, %s205
    %p214 = scmp.eq.s32.totalorder %s23, 0
    %p215 = por %p213, %p214
    %p216 = scmp.ne.s32.totalorder %s204, %s205
    %p217 = scmp.eq.s32.totalorder %s24, 1
    %p218 = por %p216, %p217
    %p220 = scmp.ne.s32.totalorder %s205, %s219
    %p221 = scmp.eq.s32.totalorder %s24, 0
    %p222 = por %p220, %p221
    %s224 = sadd.s32 %s223, 1
    %p227 = scmp.eq.s32.totalorder %s18, 1
    %p228 = scmp.ne.s32.totalorder %s223, %s225
    %p229 = scmp.eq.s32.totalorder %s18, 0
    %p230 = por %p228, %p229
    %p231 = scmp.ne.s32.totalorder %s223, %s225
    %p232 = scmp.eq.s32.totalorder %s23, 1
    %p233 = por %p231, %p232
    %p234 = scmp.ne.s32.totalorder %s225, %s226
    %p235 = scmp.eq.s32.totalorder %s23, 0
    %p236 = por %p234, %p235
    %p237 = scmp.ne.s32.totalorder %s225, %s226
    %p238 = scmp.eq.s32.totalorder %s24, 1
    %p239 = por %p237, %p238
    %p241 = scmp.ne.s32.totalorder %s226, %s240
    %p242 = scmp.eq.s32.totalorder %s24, 0
    %p243 = por %p241, %p242
    %s245 = sadd.s32 %s244, 1
    %p248 = scmp.eq.s32.totalorder %s18, 1
    %p249 = scmp.ne.s32.totalorder %s244, %s246
    %p250 = scmp.eq.s32.totalorder %s18, 0
    %p251 = por %p249, %p250
    %p252 = scmp.ne.s32.totalorder %s244, %s246
    %p253 = scmp.eq.s32.totalorder %s23, 1
    %p254 = por %p252, %p253
    %p255 = scmp.ne.s32.totalorder %s246, %s247
    %p256 = scmp.eq.s32.totalorder %s23, 0
    %p257 = por %p255, %p256
    %p258 = scmp.ne.s32.totalorder %s246, %s247
    %p259 = scmp.eq.s32.totalorder %s24, 1
    %p260 = por %p258, %p259
    %p262 = scmp.ne.s32.totalorder %s247, %s261
    %p263 = scmp.eq.s32.totalorder %s24, 0
    %p264 = por %p262, %p263
    %s265 = ssub.s32 %s25, %s37
    %s266 = ssub.s32 %s26, %s33
    %s267 = sor.u32 %s265, %s266
    %p268 = scmp.eq.s32.totalorder %s267, 0
    %s270 = sadd.s32 %s269, 1
    %s271 = scalar_select %p268, %s269, %s270
    %p274 = pneg %p268
    %p275 = scmp.eq.s32.totalorder %s18, 1
    %p276 = por %p274, %p275
    %p277 = scmp.ne.s32.totalorder %s269, %s272
    %p278 = scmp.eq.s32.totalorder %s18, 0
    %p279 = por %p277, %p278
    %p280 = scmp.ne.s32.totalorder %s269, %s272
    %p281 = scmp.eq.s32.totalorder %s23, 1
    %p282 = por %p280, %p281
    %p283 = scmp.ne.s32.totalorder %s272, %s273
    %p284 = scmp.eq.s32.totalorder %s23, 0
    %p285 = por %p283, %p284
    %p286 = scmp.ne.s32.totalorder %s272, %s273
    %p287 = scmp.eq.s32.totalorder %s24, 1
    %p288 = por %p286, %p287
    %p290 = scmp.ne.s32.totalorder %s273, %s289
    %p291 = scmp.eq.s32.totalorder %s24, 0
    %p292 = por %p290, %p291
    %p293 = scmp.le.s32.totalorder 1, %s18
    %p294 = scmp.lt.s32.totalorder %s18, 3
    %p295 = pnand %p293, %p294
    %p296 = pneg %p295
    // Predicated region
    $region9: #{attention_block_forward.3} parent=5 // pred_check
      _
    $region10: #{attention_block_forward.3} parent=5 // pred_check_branch
      %298 = sbr.rel (%p295) target = $region12
    $region11: #{attention_block_forward.3} parent=5 // pred_region
      %s299 = ssub.s32 %s18, 1
      // Predicated region
      $region13: #{attention_block_forward.3} parent=11 // pred_check
        %p300 = pneg %p105
      $region14: #{attention_block_forward.3} parent=11 // pred_check_branch
        %302 = sbr.rel (%p300) target = $region16
      $region15: #{attention_block_forward.3} parent=11 // pred_region
        _
      $region16: #{attention_block_forward.3} parent=11 // pred_fallthru
        _
      // Predicated region
      $region17: #{attention_block_forward.3} parent=11 // pred_check
        %p303 = pneg %p126
      $region18: #{attention_block_forward.3} parent=11 // pred_check_branch
        %305 = sbr.rel (%p303) target = $region20
      $region19: #{attention_block_forward.3} parent=11 // pred_region
        _
      $region20: #{attention_block_forward.3} parent=11 // pred_fallthru
        _
      // Predicated region
      $region21: #{attention_block_forward.3} parent=11 // pred_check
        %p306 = pneg %p147
      $region22: #{attention_block_forward.3} parent=11 // pred_check_branch
        %308 = sbr.rel (%p306) target = $region24
      $region23: #{attention_block_forward.3} parent=11 // pred_region
        _
      $region24: #{attention_block_forward.3} parent=11 // pred_fallthru
        _
      // Predicated region
      $region25: #{attention_block_forward.3} parent=11 // pred_check
        %p309 = pneg %p168
      $region26: #{attention_block_forward.3} parent=11 // pred_check_branch
        %311 = sbr.rel (%p309) target = $region28
      $region27: #{attention_block_forward.3} parent=11 // pred_region
        _
      $region28: #{attention_block_forward.3} parent=11 // pred_fallthru
        _
      // Predicated region
      $region29: #{attention_block_forward.3} parent=11 // pred_check
        %p312 = pneg %p194
      $region30: #{attention_block_forward.3} parent=11 // pred_check_branch
        %314 = sbr.rel (%p312) target = $region32
      $region31: #{attention_block_forward.3} parent=11 // pred_region
        %p315 = scmp.lt.s32.totalorder %s28, 0
        %s316 = scalar_select %p315, %s28, 0
        %s317 = smul.addr %s316, 8
        %s318 = scalar_lea.vmem %s6, %s317
      $region32: #{attention_block_forward.3} parent=11 // pred_fallthru
        _
      // Predicated region
      $region33: #{attention_block_forward.3} parent=11 // pred_check
        %p319 = pneg %p215
      $region34: #{attention_block_forward.3} parent=11 // pred_check_branch
        %321 = sbr.rel (%p319) target = $region36
      $region35: #{attention_block_forward.3} parent=11 // pred_region
        _
      $region36: #{attention_block_forward.3} parent=11 // pred_fallthru
        _
      // Predicated region
      $region37: #{attention_block_forward.3} parent=11 // pred_check
        %p322 = pneg %p236
      $region38: #{attention_block_forward.3} parent=11 // pred_check_branch
        %324 = sbr.rel (%p322) target = $region40
      $region39: #{attention_block_forward.3} parent=11 // pred_region
        _
      $region40: #{attention_block_forward.3} parent=11 // pred_fallthru
        _
      // Predicated region
      $region41: #{attention_block_forward.3} parent=11 // pred_check
        %p325 = pneg %p257
      $region42: #{attention_block_forward.3} parent=11 // pred_check_branch
        %327 = sbr.rel (%p325) target = $region44
      $region43: #{attention_block_forward.3} parent=11 // pred_region
        _
      $region44: #{attention_block_forward.3} parent=11 // pred_fallthru
        _
    $region12: #{attention_block_forward.3} parent=5 // pred_fallthru
      _
    %p328 = scmp.lt.s32.totalorder %s18, 2
    // Predicated region
    $region45: #{attention_block_forward.3} parent=5 // pred_check
      %p329 = pneg %p328
    $region46: #{attention_block_forward.3} parent=5 // pred_check_branch
      %331 = sbr.rel (%p329) target = $region48
    $region47: #{attention_block_forward.3} parent=5 // pred_region
      // Predicated region
      $region49: #{attention_block_forward.3} parent=47 // pred_check
        %p332 = pneg %p52
      $region50: #{attention_block_forward.3} parent=47 // pred_check_branch
        %334 = sbr.rel (%p332) target = $region52
      $region51: #{attention_block_forward.3} parent=47 // pred_region
        %s335 = smul.u32 4, %s25
        %s336 = smul.u32 8, %s26
        %p337 = scmp.lt.s32.totalorder %s335, 7
        %s338 = scalar_select %p337, %s335, 7
        %p339 = scmp.lt.s32.totalorder %s336, 7
        %s340 = scalar_select %p339, %s336, 7
        %s341 = smul.addr %s338, 8
        %s342 = sadd.s32 %s340, %s341
        %s343 = smul.addr %s342, 2
        %s344 = scalar_lea.vmem %s0, %s343
        %s345 = smul.u32 4, %s25
        %s346 = smul.u32 8, %s26
      $region52: #{attention_block_forward.3} parent=47 // pred_fallthru
        _
      // Predicated region
      $region53: #{attention_block_forward.3} parent=47 // pred_check
        %p347 = pneg %p78
      $region54: #{attention_block_forward.3} parent=47 // pred_check_branch
        %349 = sbr.rel (%p347) target = $region56
      $region55: #{attention_block_forward.3} parent=47 // pred_region
        %s350 = smul.u32 8, %s25
        %p351 = scmp.lt.s32.totalorder %s350, 15
        %s352 = scalar_select %p351, %s350, 15
        %s353 = smul.addr %s352, 4
        %s354 = scalar_lea.vmem %s1, %s353
        %s355 = smul.u32 8, %s25
      $region56: #{attention_block_forward.3} parent=47 // pred_fallthru
        _
    $region48: #{attention_block_forward.3} parent=5 // pred_fallthru
      _
    %p356 = scmp.le.s32.totalorder 1, %s18
    %p357 = scmp.lt.s32.totalorder %s18, 3
    %p358 = pnand %p356, %p357
    %p359 = pneg %p358
    // Predicated region
    $region57: #{attention_block_forward.3} parent=5 // pred_check
      _
    $region58: #{attention_block_forward.3} parent=5 // pred_check_branch
      %361 = sbr.rel (%p358) target = $region60
    $region59: #{attention_block_forward.3} parent=5 // pred_region
      %s362 = ssub.s32 %s18, 1
      %s363 = smul.u32 4, %s27
      %s364 = smul.u32 8, %s28
      %p365 = scmp.lt.s32.totalorder %s363, 7
      %s366 = scalar_select %p365, %s363, 7
      %p367 = scmp.lt.s32.totalorder %s364, 7
      %s368 = scalar_select %p367, %s364, 7
      %s369 = smul.addr %s366, 8
      %s370 = sadd.s32 %s368, %s369
      %s371 = smul.addr %s370, 2
      %s372 = scalar_lea.vmem %s0, %s371
      %p373 = pneg %p58
      %p374 = pneg %p55
      %s375 = smul.u32 8, %s27
      %p376 = scmp.lt.s32.totalorder %s375, 15
      %s377 = scalar_select %p376, %s375, 15
      %s378 = smul.addr %s377, 4
      %s379 = scalar_lea.vmem %s1, %s378
      %p380 = pneg %p84
      %p381 = pneg %p81
      %p382 = pneg %p105
      %p383 = pneg %p102
      %p384 = pneg %p126
      %p385 = pneg %p123
      %p386 = pneg %p147
      %p387 = pneg %p144
      %p388 = pneg %p168
      %p389 = pneg %p165
      %p390 = scmp.lt.s32.totalorder %s28, 0
      %s391 = scalar_select %p390, %s28, 0
      %s392 = smul.addr %s391, 8
      %s393 = scalar_lea.vmem %s6, %s392
      %p394 = pneg %p194
      %p395 = pneg %p191
      %p396 = pneg %p215
      %p397 = pneg %p212
      %p398 = pneg %p236
      %p399 = pneg %p233
      %p400 = pneg %p257
      %p401 = pneg %p254
      %p402 = pneg %p285
      %p403 = pneg %p282
      %p404 = scmp.lt.s32.totalorder %s27, 1
      %s405 = scalar_select %p404, %s27, 1
      %p406 = scmp.lt.s32.totalorder %s28, 0
      %s407 = scalar_select %p406, %s28, 0
      %s408 = sadd.s32 %s407, %s405
      %s409 = smul.addr %s408, 8
      %s410 = scalar_lea.vmem %s10, %s409
      %s411 = smul.u32 4, %s27
      %s412 = smul.u32 8, %s28
      %p413 = scmp.lt.s32.totalorder %s411, 7
      %s414 = scalar_select %p413, %s411, 7
      %p415 = scmp.lt.s32.totalorder %s412, 7
      %s416 = scalar_select %p415, %s412, 7
      %s417 = smul.addr %s414, 8
      %s418 = sadd.s32 %s416, %s417
      %s419 = smul.addr %s418, 2
      %s420 = scalar_lea.vmem %s0, %s419
      %s421 = smul.u32 4, %s27
      %s422 = smul.u32 8, %s28
      %s423 = smul.u32 8, %s27
      %p424 = scmp.lt.s32.totalorder %s423, 15
      %s425 = scalar_select %p424, %s423, 15
      %s426 = smul.addr %s425, 4
      %s427 = scalar_lea.vmem %s1, %s426
      %s428 = smul.u32 8, %s27
      %p429 = scmp.lt.s32.totalorder %s28, 0
      %s430 = scalar_select %p429, %s28, 0
      %s431 = smul.addr %s430, 8
      %s432 = scalar_lea.vmem %s6, %s431
      %p433 = scmp.lt.s32.totalorder %s27, 1
      %s434 = scalar_select %p433, %s27, 1
      %p435 = scmp.lt.s32.totalorder %s28, 0
      %s436 = scalar_select %p435, %s28, 0
      %s437 = sadd.s32 %s436, %s434
      %s438 = smul.addr %s437, 8
      %s439 = scalar_lea.vmem %s10, %s438
      %v440 = vld [vmem:[%s420] sm:$0x3]
      %v441 = vld [vmem:[%s420 + $0x2] sm:$0x3]
      %v442 = vld [vmem:[%s420 + $0x4] sm:$0x3]
      %v443 = vld [vmem:[%s420 + $0x6] sm:$0x3]
      %v444 = vld [vmem:[%s420 + $0x8] sm:$0x3]
      %v445 = vld [vmem:[%s420 + $0xa] sm:$0x3]
      %v446 = vld [vmem:[%s420 + $0xc] sm:$0x3]
      %v447 = vld [vmem:[%s420 + $0xe] sm:$0x3]
      %v448 = vld [vmem:[%s420 + $0x10] sm:$0x3]
      %v449 = vld [vmem:[%s420 + $0x12] sm:$0x3]
      %v450 = vld [vmem:[%s420 + $0x14] sm:$0x3]
      %v451 = vld [vmem:[%s420 + $0x16] sm:$0x3]
      %v452 = vld [vmem:[%s420 + $0x18] sm:$0x3]
      %v453 = vld [vmem:[%s420 + $0x1a] sm:$0x3]
      %v454 = vld [vmem:[%s420 + $0x1c] sm:$0x3]
      %v455 = vld [vmem:[%s420 + $0x1e] sm:$0x3]
      %v456 = vld [vmem:[%s420 + $0x20] sm:$0x3]
      %v457 = vld [vmem:[%s420 + $0x22] sm:$0x3]
      %v458 = vld [vmem:[%s420 + $0x24] sm:$0x3]
      %v459 = vld [vmem:[%s420 + $0x26] sm:$0x3]
      %v460 = vld [vmem:[%s420 + $0x28] sm:$0x3]
      %v461 = vld [vmem:[%s420 + $0x2a] sm:$0x3]
      %v462 = vld [vmem:[%s420 + $0x2c] sm:$0x3]
      %v463 = vld [vmem:[%s420 + $0x2e] sm:$0x3]
      %v464 = vld [vmem:[%s420 + $0x30] sm:$0x3]
      %v465 = vld [vmem:[%s420 + $0x32] sm:$0x3]
      %v466 = vld [vmem:[%s420 + $0x34] sm:$0x3]
      %v467 = vld [vmem:[%s420 + $0x36] sm:$0x3]
      %v468 = vld [vmem:[%s420 + $0x38] sm:$0x3]
      %v469 = vld [vmem:[%s420 + $0x3a] sm:$0x3]
      %v470 = vld [vmem:[%s420 + $0x3c] sm:$0x3]
      %v471 = vld [vmem:[%s420 + $0x3e] sm:$0x3]
      %v472 = vld [vmem:[%s2] sm:$0xff]
      %v473 = vld [vmem:[%s2 + $0x8] sm:$0xff]
      %v506 = vrot.slane %v441, 7
      %vm507 = vcmask 1041409
      %v508 = vsel %vm507, %v506, %v440
      %v509 = vrot.slane %v442, 6
      %vm510 = vcmask 1042434
      %v511 = vsel %vm510, %v509, %v508
      %v512 = vrot.slane %v443, 5
      %vm513 = vcmask 1043459
      %v514 = vsel %vm513, %v512, %v511
      %v515 = vrot.slane %v444, 4
      %vm516 = vcmask 1044484
      %v517 = vsel %vm516, %v515, %v514
      %v518 = vrot.slane %v445, 3
      %vm519 = vcmask 1045509
      %v520 = vsel %vm519, %v518, %v517
      %v521 = vrot.slane %v446, 2
      %vm522 = vcmask 1046534
      %v523 = vsel %vm522, %v521, %v520
      %v524 = vrot.slane %v447, 1
      %vm525 = vcmask 1047559
      %v526 = vsel %vm525, %v524, %v523
      %v527 = vrot.slane %v449, 7
      %v528 = vsel %vm507, %v527, %v448
      %v529 = vrot.slane %v450, 6
      %v530 = vsel %vm510, %v529, %v528
      %v531 = vrot.slane %v451, 5
      %v532 = vsel %vm513, %v531, %v530
      %v533 = vrot.slane %v452, 4
      %v534 = vsel %vm516, %v533, %v532
      %v535 = vrot.slane %v453, 3
      %v536 = vsel %vm519, %v535, %v534
      %v537 = vrot.slane %v454, 2
      %v538 = vsel %vm522, %v537, %v536
      %v539 = vrot.slane %v455, 1
      %v540 = vsel %vm525, %v539, %v538
      %v541 = vrot.slane %v457, 7
      %v542 = vsel %vm507, %v541, %v456
      %v543 = vrot.slane %v458, 6
      %v544 = vsel %vm510, %v543, %v542
      %v545 = vrot.slane %v459, 5
      %v546 = vsel %vm513, %v545, %v544
      %v547 = vrot.slane %v460, 4
      %v548 = vsel %vm516, %v547, %v546
      %v549 = vrot.slane %v461, 3
      %v550 = vsel %vm519, %v549, %v548
      %v551 = vrot.slane %v462, 2
      %v552 = vsel %vm522, %v551, %v550
      %v553 = vrot.slane %v463, 1
      %v554 = vsel %vm525, %v553, %v552
      %v555 = vrot.slane %v465, 7
      %v556 = vsel %vm507, %v555, %v464
      %v557 = vrot.slane %v466, 6
      %v558 = vsel %vm510, %v557, %v556
      %v559 = vrot.slane %v467, 5
      %v560 = vsel %vm513, %v559, %v558
      %v561 = vrot.slane %v468, 4
      %v562 = vsel %vm516, %v561, %v560
      %v563 = vrot.slane %v469, 3
      %v564 = vsel %vm519, %v563, %v562
      %v565 = vrot.slane %v470, 2
      %v566 = vsel %vm522, %v565, %v564
      %v567 = vrot.slane %v471, 1
      %v568 = vsel %vm525, %v567, %v566
      %vm569 = vcmask 130048
      %v570 = vsel %vm569, %v526, 0
      %v572 = vsel %vm569, %v540, 0
      %v574 = vsel %vm569, %v554, 0
      %v576 = vsel %vm569, %v568, 0
      %578 = vmatprep.subr.mxu0 0.0
      %579 = vmatpush1.msra.mxu0 %v472
      %580 = vmatprep.subr.mxu0 0.0
      %581 = vmatpush1.msra.mxu0 %v473
      %582 = vmatprep.subr.mxu0 0.0
      %583 = vmatpush1.msra.mxu0 0.0
      %584 = vmatprep.subr.mxu0 0.0
      %585 = vmatpush1.msra.mxu0 0.0
      %586 = vmatprep.subr.mxu0 0.0
      %587 = vmatpush1.msra.mxu0 0.0
      %588 = vmatprep.subr.mxu0 0.0
      %589 = vmatpush1.msra.mxu0 0.0
      %590 = vmatprep.subr.mxu0 0.0
      %591 = vmatpush1.msra.mxu0 0.0
      %592 = vmatprep.subr.mxu0 0.0
      %593 = vmatpush1.msra.mxu0 0.0
      %594 = vmatprep.subr.mxu0 0.0
      %595 = vmatpush1.msra.mxu0 0.0
      %596 = vmatprep.subr.mxu0 0.0
      %597 = vmatpush1.msra.mxu0 0.0
      %598 = vmatprep.subr.mxu0 0.0
      %599 = vmatpush1.msra.mxu0 0.0
      %600 = vmatprep.subr.mxu0 0.0
      %601 = vmatpush1.msra.mxu0 0.0
      %602 = vmatprep.subr.mxu0 0.0
      %603 = vmatpush1.msra.mxu0 0.0
      %604 = vmatprep.subr.mxu0 0.0
      %605 = vmatpush1.msra.mxu0 0.0
      %606 = vmatprep.subr.mxu0 0.0
      %607 = vmatpush1.msra.mxu0 0.0
      %608 = vmatprep.subr.mxu0 0.0
      %609 = vmatpush1.msra.mxu0 0.0
      %610 = vmatprep.subr.mxu0 0.0
      %611 = vmatpush1.msra.mxu0 0.0
      %612 = vmatprep.subr.mxu0 0.0
      %613 = vmatpush1.msra.mxu0 0.0
      %614 = vmatprep.subr.mxu0 0.0
      %615 = vmatpush1.msra.mxu0 0.0
      %616 = vmatprep.subr.mxu0 0.0
      %617 = vmatpush1.msra.mxu0 0.0
      %618 = vmatprep.subr.mxu0 0.0
      %619 = vmatpush1.msra.mxu0 0.0
      %620 = vmatprep.subr.mxu0 0.0
      %621 = vmatpush1.msra.mxu0 0.0
      %622 = vmatprep.subr.mxu0 0.0
      %623 = vmatpush1.msra.mxu0 0.0
      %624 = vmatprep.subr.mxu0 0.0
      %625 = vmatpush1.msra.mxu0 0.0
      %626 = vmatprep.subr.mxu0 0.0
      %627 = vmatpush1.msra.mxu0 0.0
      %628 = vmatprep.subr.mxu0 0.0
      %629 = vmatpush1.msra.mxu0 0.0
      %630 = vmatprep.subr.mxu0 0.0
      %631 = vmatpush1.msra.mxu0 0.0
      %632 = vmatprep.subr.mxu0 0.0
      %633 = vmatpush1.msra.mxu0 0.0
      %634 = vmatprep.subr.mxu0 0.0
      %635 = vmatpush1.msra.mxu0 0.0
      %636 = vmatprep.subr.mxu0 0.0
      %637 = vmatpush1.msra.mxu0 0.0
      %638 = vmatprep.subr.mxu0 0.0
      %639 = vmatpush1.msra.mxu0 0.0
      %640 = vmatprep.subr.mxu0 0.0
      %641 = vmatpush1.msra.mxu0 0.0
      %642 = vmatprep.mubr.f32.mxu0 0.0
      %643 = vmatmul.mubr.f32.gmra.mrb[0].mxu0 %v570
      %v644 = vpop.f32.mrb[0].mxu0
      %v645 = vadd.f32 0.0, %v644
      %v646 = vpop.f32.mrb[0].mxu0
      %647 = vmatprep.mubr.f32.mxu0 0.0
      %648 = vmatmul.mubr.f32.gmra.mrb[0].mxu0 %v572
      %v649 = vpop.f32.mrb[0].mxu0
      %v650 = vadd.f32 0.0, %v649
      %v651 = vpop.f32.mrb[0].mxu0
      %652 = vmatprep.mubr.f32.mxu0 0.0
      %653 = vmatmul.mubr.f32.gmra.mrb[0].mxu0 %v574
      %v654 = vpop.f32.mrb[0].mxu0
      %v655 = vadd.f32 0.0, %v654
      %v656 = vpop.f32.mrb[0].mxu0
      %657 = vmatprep.mubr.f32.mxu0 0.0
      %658 = vmatmul.mubr.f32.gmra.mrb[0].mxu0 %v576
      %v659 = vpop.f32.mrb[0].mxu0
      %v660 = vadd.f32 0.0, %v659
      %v661 = vpop.f32.mrb[0].mxu0
      %662 = vdwg.mxu0
      %v663 = vld [vmem:[%s3] sm:$0x1]
      %v664 = vld [vmem:[%s3 + $0x1] sm:$0x1]
      %v665 = vld [vmem:[%s3 + $0x2] sm:$0x1]
      %v666 = vld [vmem:[%s3 + $0x3] sm:$0x1]
      %v667 = vld [vmem:[%s3 + $0x4] sm:$0x1]
      %v668 = vld [vmem:[%s3 + $0x5] sm:$0x1]
      %v669 = vld [vmem:[%s3 + $0x6] sm:$0x1]
      %v670 = vld [vmem:[%s3 + $0x7] sm:$0x1]
      %v671 = vld [vmem:[%s3 + $0x8] sm:$0x1]
      %v672 = vld [vmem:[%s3 + $0x9] sm:$0x1]
      %v673 = vld [vmem:[%s3 + $0xa] sm:$0x1]
      %v674 = vld [vmem:[%s3 + $0xb] sm:$0x1]
      %v675 = vld [vmem:[%s3 + $0xc] sm:$0x1]
      %v676 = vld [vmem:[%s3 + $0xd] sm:$0x1]
      %v677 = vld [vmem:[%s3 + $0xe] sm:$0x1]
      %v678 = vld [vmem:[%s3 + $0xf] sm:$0x1]
      %v679 = vld [vmem:[%s3 + $0x10] sm:$0x1]
      %v680 = vld [vmem:[%s3 + $0x11] sm:$0x1]
      %v681 = vld [vmem:[%s3 + $0x12] sm:$0x1]
      %v682 = vld [vmem:[%s3 + $0x13] sm:$0x1]
      %v683 = vld [vmem:[%s3 + $0x14] sm:$0x1]
      %v684 = vld [vmem:[%s3 + $0x15] sm:$0x1]
      %v685 = vld [vmem:[%s3 + $0x16] sm:$0x1]
      %v686 = vld [vmem:[%s3 + $0x17] sm:$0x1]
      %v711 = vlaneseq
      %v712 = vshrl.u32 %v711, 7
      %v713 = vsub.s32 0, %v712
      %v714 = vrot.slane %v663, %v713
      %v715 = vlaneseq
      %v716 = vshrl.u32 %v715, 7
      %v717 = vsub.s32 0, %v716
      %v718 = vrot.slane %v664, %v717
      %v719 = vlaneseq
      %v720 = vshrl.u32 %v719, 7
      %v721 = vsub.s32 0, %v720
      %v722 = vrot.slane %v665, %v721
      %v723 = vlaneseq
      %v724 = vshrl.u32 %v723, 7
      %v725 = vsub.s32 0, %v724
      %v726 = vrot.slane %v666, %v725
      %v727 = vlaneseq
      %v728 = vshrl.u32 %v727, 7
      %v729 = vsub.s32 0, %v728
      %v730 = vrot.slane %v667, %v729
      %v731 = vlaneseq
      %v732 = vshrl.u32 %v731, 7
      %v733 = vsub.s32 0, %v732
      %v734 = vrot.slane %v668, %v733
      %v735 = vlaneseq
      %v736 = vshrl.u32 %v735, 7
      %v737 = vsub.s32 0, %v736
      %v738 = vrot.slane %v669, %v737
      %v739 = vlaneseq
      %v740 = vshrl.u32 %v739, 7
      %v741 = vsub.s32 0, %v740
      %v742 = vrot.slane %v670, %v741
      %v743 = vlaneseq
      %v744 = vshrl.u32 %v743, 7
      %v745 = vsub.s32 0, %v744
      %v746 = vrot.slane %v671, %v745
      %v747 = vlaneseq
      %v748 = vshrl.u32 %v747, 7
      %v749 = vsub.s32 0, %v748
      %v750 = vrot.slane %v672, %v749
      %v751 = vlaneseq
      %v752 = vshrl.u32 %v751, 7
      %v753 = vsub.s32 0, %v752
      %v754 = vrot.slane %v673, %v753
      %v755 = vlaneseq
      %v756 = vshrl.u32 %v755, 7
      %v757 = vsub.s32 0, %v756
      %v758 = vrot.slane %v674, %v757
      %v759 = vlaneseq
      %v760 = vshrl.u32 %v759, 7
      %v761 = vsub.s32 0, %v760
      %v762 = vrot.slane %v675, %v761
      %v763 = vlaneseq
      %v764 = vshrl.u32 %v763, 7
      %v765 = vsub.s32 0, %v764
      %v766 = vrot.slane %v676, %v765
      %v767 = vlaneseq
      %v768 = vshrl.u32 %v767, 7
      %v769 = vsub.s32 0, %v768
      %v770 = vrot.slane %v677, %v769
      %v771 = vlaneseq
      %v772 = vshrl.u32 %v771, 7
      %v773 = vsub.s32 0, %v772
      %v774 = vrot.slane %v678, %v773
      %v775 = vlaneseq
      %v776 = vshrl.u32 %v775, 7
      %v777 = vsub.s32 0, %v776
      %v778 = vrot.slane %v679, %v777
      %v779 = vlaneseq
      %v780 = vshrl.u32 %v779, 7
      %v781 = vsub.s32 0, %v780
      %v782 = vrot.slane %v680, %v781
      %v783 = vlaneseq
      %v784 = vshrl.u32 %v783, 7
      %v785 = vsub.s32 0, %v784
      %v786 = vrot.slane %v681, %v785
      %v787 = vlaneseq
      %v788 = vshrl.u32 %v787, 7
      %v789 = vsub.s32 0, %v788
      %v790 = vrot.slane %v682, %v789
      %v791 = vlaneseq
      %v792 = vshrl.u32 %v791, 7
      %v793 = vsub.s32 0, %v792
      %v794 = vrot.slane %v683, %v793
      %v795 = vlaneseq
      %v796 = vshrl.u32 %v795, 7
      %v797 = vsub.s32 0, %v796
      %v798 = vrot.slane %v684, %v797
      %v799 = vlaneseq
      %v800 = vshrl.u32 %v799, 7
      %v801 = vsub.s32 0, %v800
      %v802 = vrot.slane %v685, %v801
      %v803 = vlaneseq
      %v804 = vshrl.u32 %v803, 7
      %v805 = vsub.s32 0, %v804
      %v806 = vrot.slane %v686, %v805
      %807 = vset.pattern.permute.xlu0 0
      %808 = vperm.xlu0 %807, %v714
      %v809 = vpop.permute.xlu0 %808
      %811 = vset.pattern.permute.xlu0 0
      %812 = vperm.xlu0 %811, %v718
      %v813 = vpop.permute.xlu0 %812
      %815 = vset.pattern.permute.xlu0 0
      %816 = vperm.xlu0 %815, %v722
      %v817 = vpop.permute.xlu0 %816
      %819 = vset.pattern.permute.xlu0 0
      %820 = vperm.xlu0 %819, %v726
      %v821 = vpop.permute.xlu0 %820
      %823 = vset.pattern.permute.xlu0 0
      %824 = vperm.xlu0 %823, %v730
      %v825 = vpop.permute.xlu0 %824
      %827 = vset.pattern.permute.xlu0 0
      %828 = vperm.xlu0 %827, %v734
      %v829 = vpop.permute.xlu0 %828
      %831 = vset.pattern.permute.xlu0 0
      %832 = vperm.xlu0 %831, %v738
      %v833 = vpop.permute.xlu0 %832
      %835 = vset.pattern.permute.xlu0 0
      %836 = vperm.xlu0 %835, %v742
      %v837 = vpop.permute.xlu0 %836
      %839 = vset.pattern.permute.xlu0 0
      %840 = vperm.xlu0 %839, %v746
      %v841 = vpop.permute.xlu0 %840
      %843 = vset.pattern.permute.xlu0 0
      %844 = vperm.xlu0 %843, %v750
      %v845 = vpop.permute.xlu0 %844
      %847 = vset.pattern.permute.xlu0 0
      %848 = vperm.xlu0 %847, %v754
      %v849 = vpop.permute.xlu0 %848
      %851 = vset.pattern.permute.xlu0 0
      %852 = vperm.xlu0 %851, %v758
      %v853 = vpop.permute.xlu0 %852
      %855 = vset.pattern.permute.xlu0 0
      %856 = vperm.xlu0 %855, %v762
      %v857 = vpop.permute.xlu0 %856
      %859 = vset.pattern.permute.xlu0 0
      %860 = vperm.xlu0 %859, %v766
      %v861 = vpop.permute.xlu0 %860
      %863 = vset.pattern.permute.xlu0 0
      %864 = vperm.xlu0 %863, %v770
      %v865 = vpop.permute.xlu0 %864
      %867 = vset.pattern.permute.xlu0 0
      %868 = vperm.xlu0 %867, %v774
      %v869 = vpop.permute.xlu0 %868
      %871 = vset.pattern.permute.xlu0 0
      %872 = vperm.xlu0 %871, %v778
      %v873 = vpop.permute.xlu0 %872
      %875 = vset.pattern.permute.xlu0 0
      %876 = vperm.xlu0 %875, %v782
      %v877 = vpop.permute.xlu0 %876
      %879 = vset.pattern.permute.xlu0 0
      %880 = vperm.xlu0 %879, %v786
      %v881 = vpop.permute.xlu0 %880
      %883 = vset.pattern.permute.xlu0 0
      %884 = vperm.xlu0 %883, %v790
      %v885 = vpop.permute.xlu0 %884
      %887 = vset.pattern.permute.xlu0 0
      %888 = vperm.xlu0 %887, %v794
      %v889 = vpop.permute.xlu0 %888
      %891 = vset.pattern.permute.xlu0 0
      %892 = vperm.xlu0 %891, %v798
      %v893 = vpop.permute.xlu0 %892
      %895 = vset.pattern.permute.xlu0 0
      %896 = vperm.xlu0 %895, %v802
      %v897 = vpop.permute.xlu0 %896
      %899 = vset.pattern.permute.xlu0 0
      %900 = vperm.xlu0 %899, %v806
      %v901 = vpop.permute.xlu0 %900
      %v903 = vmul.f32 %v809, %v645
      %v904 = vmul.f32 %v813, %v650
      %v905 = vmul.f32 %v817, %v655
      %v906 = vmul.f32 %v821, %v660
      %v907 = vmul.f32 %v825, %v645
      %v908 = vmul.f32 %v829, %v650
      %v909 = vmul.f32 %v833, %v655
      %v910 = vmul.f32 %v837, %v660
      %v911 = vmul.f32 %v841, %v645
      %v912 = vmul.f32 %v845, %v650
      %v913 = vmul.f32 %v849, %v655
      %v914 = vmul.f32 %v853, %v660
      %v915 = vmul.f32 %v857, %v645
      %v916 = vmul.f32 %v861, %v650
      %v917 = vmul.f32 %v865, %v655
      %v918 = vmul.f32 %v869, %v660
      %v919 = vmul.f32 %v873, %v645
      %v920 = vmul.f32 %v877, %v650
      %v921 = vmul.f32 %v881, %v655
      %v922 = vmul.f32 %v885, %v660
      %v923 = vmul.f32 %v889, %v645
      %v924 = vmul.f32 %v893, %v650
      %v925 = vmul.f32 %v897, %v655
      %v926 = vmul.f32 %v901, %v660
      %vm927 = vcmask 64512
      %v928 = vsel %vm927, %v903, 0.0
      %v929 = vsel %vm927, %v904, 0.0
      %v930 = vadd.f32 %v928, %v929
      %v931 = vsel %vm927, %v905, 0.0
      %v932 = vadd.f32 %v930, %v931
      %v933 = vsel %vm927, %v906, 0.0
      %v934 = vadd.f32 %v932, %v933
      %v935 = vsel %vm927, %v907, 0.0
      %v936 = vsel %vm927, %v908, 0.0
      %v937 = vadd.f32 %v935, %v936
      %v938 = vsel %vm927, %v909, 0.0
      %v939 = vadd.f32 %v937, %v938
      %v940 = vsel %vm927, %v910, 0.0
      %v941 = vadd.f32 %v939, %v940
      %v942 = vsel %vm927, %v911, 0.0
      %v943 = vsel %vm927, %v912, 0.0
      %v944 = vadd.f32 %v942, %v943
      %v945 = vsel %vm927, %v913, 0.0
      %v946 = vadd.f32 %v944, %v945
      %v947 = vsel %vm927, %v914, 0.0
      %v948 = vadd.f32 %v946, %v947
      %v949 = vsel %vm927, %v915, 0.0
      %v950 = vsel %vm927, %v916, 0.0
      %v951 = vadd.f32 %v949, %v950
      %v952 = vsel %vm927, %v917, 0.0
      %v953 = vadd.f32 %v951, %v952
      %v954 = vsel %vm927, %v918, 0.0
      %v955 = vadd.f32 %v953, %v954
      %v956 = vsel %vm927, %v919, 0.0
      %v957 = vsel %vm927, %v920, 0.0
      %v958 = vadd.f32 %v956, %v957
      %v959 = vsel %vm927, %v921, 0.0
      %v960 = vadd.f32 %v958, %v959
      %v961 = vsel %vm927, %v922, 0.0
      %v962 = vadd.f32 %v960, %v961
      %v963 = vsel %vm927, %v923, 0.0
      %v964 = vsel %vm927, %v924, 0.0
      %v965 = vadd.f32 %v963, %v964
      %v966 = vsel %vm927, %v925, 0.0
      %v967 = vadd.f32 %v965, %v966
      %v968 = vsel %vm927, %v926, 0.0
      %v969 = vadd.f32 %v967, %v968
      %v970 = vadd.f32 %v934, 0.0
      %v971 = vadd.f32 %v941, 0.0
      %v972 = vadd.f32 %v948, 0.0
      %v973 = vadd.f32 %v955, 0.0
      %v974 = vadd.f32 %v962, 0.0
      %v975 = vadd.f32 %v969, 0.0
      %s976 = scalar_lea.vmem %s2, 16
      %v977 = vld [vmem:[%s976] sm:$0xff]
      %v978 = vld [vmem:[%s976 + $0x8] sm:$0xff]
      %979 = vmatprep.subr.mxu0 0.0
      %980 = vmatpush1.msra.mxu0 %v977
      %981 = vmatprep.subr.mxu0 0.0
      %982 = vmatpush1.msra.mxu0 %v978
      %983 = vmatprep.subr.mxu0 0.0
      %984 = vmatpush1.msra.mxu0 0.0
      %985 = vmatprep.subr.mxu0 0.0
      %986 = vmatpush1.msra.mxu0 0.0
      %987 = vmatprep.subr.mxu0 0.0
      %988 = vmatpush1.msra.mxu0 0.0
      %989 = vmatprep.subr.mxu0 0.0
      %990 = vmatpush1.msra.mxu0 0.0
      %991 = vmatprep.subr.mxu0 0.0
      %992 = vmatpush1.msra.mxu0 0.0
      %993 = vmatprep.subr.mxu0 0.0
      %994 = vmatpush1.msra.mxu0 0.0
      %995 = vmatprep.subr.mxu0 0.0
      %996 = vmatpush1.msra.mxu0 0.0
      %997 = vmatprep.subr.mxu0 0.0
      %998 = vmatpush1.msra.mxu0 0.0
      %999 = vmatprep.subr.mxu0 0.0
      %1000 = vmatpush1.msra.mxu0 0.0
      %1001 = vmatprep.subr.mxu0 0.0
      %1002 = vmatpush1.msra.mxu0 0.0
      %1003 = vmatprep.subr.mxu0 0.0
      %1004 = vmatpush1.msra.mxu0 0.0
      %1005 = vmatprep.subr.mxu0 0.0
      %1006 = vmatpush1.msra.mxu0 0.0
      %1007 = vmatprep.subr.mxu0 0.0
      %1008 = vmatpush1.msra.mxu0 0.0
      %1009 = vmatprep.subr.mxu0 0.0
      %1010 = vmatpush1.msra.mxu0 0.0
      %1011 = vmatprep.subr.mxu0 0.0
      %1012 = vmatpush1.msra.mxu0 0.0
      %1013 = vmatprep.subr.mxu0 0.0
      %1014 = vmatpush1.msra.mxu0 0.0
      %1015 = vmatprep.subr.mxu0 0.0
      %1016 = vmatpush1.msra.mxu0 0.0
      %1017 = vmatprep.subr.mxu0 0.0
      %1018 = vmatpush1.msra.mxu0 0.0
      %1019 = vmatprep.subr.mxu0 0.0
      %1020 = vmatpush1.msra.mxu0 0.0
      %1021 = vmatprep.subr.mxu0 0.0
      %1022 = vmatpush1.msra.mxu0 0.0
      %1023 = vmatprep.subr.mxu0 0.0
      %1024 = vmatpush1.msra.mxu0 0.0
      %1025 = vmatprep.subr.mxu0 0.0
      %1026 = vmatpush1.msra.mxu0 0.0
      %1027 = vmatprep.subr.mxu0 0.0
      %1028 = vmatpush1.msra.mxu0 0.0
      %1029 = vmatprep.subr.mxu0 0.0
      %1030 = vmatpush1.msra.mxu0 0.0
      %1031 = vmatprep.subr.mxu0 0.0
      %1032 = vmatpush1.msra.mxu0 0.0
      %1033 = vmatprep.subr.mxu0 0.0
      %1034 = vmatpush1.msra.mxu0 0.0
      %1035 = vmatprep.subr.mxu0 0.0
      %1036 = vmatpush1.msra.mxu0 0.0
      %1037 = vmatprep.subr.mxu0 0.0
      %1038 = vmatpush1.msra.mxu0 0.0
      %1039 = vmatprep.subr.mxu0 0.0
      %1040 = vmatpush1.msra.mxu0 0.0
      %1041 = vmatprep.subr.mxu0 0.0
      %1042 = vmatpush1.msra.mxu0 0.0
      %1043 = vmatprep.mubr.f32.mxu0 0.0
      %1044 = vmatmul.mubr.f32.gmra.mrb[0].mxu0 %v570
      %v1045 = vpop.f32.mrb[0].mxu0
      %v1046 = vadd.f32 0.0, %v1045
      %v1047 = vpop.f32.mrb[0].mxu0
      %1048 = vmatprep.mubr.f32.mxu0 0.0
      %1049 = vmatmul.mubr.f32.gmra.mrb[0].mxu0 %v572
      %v1050 = vpop.f32.mrb[0].mxu0
      %v1051 = vadd.f32 0.0, %v1050
      %v1052 = vpop.f32.mrb[0].mxu0
      %1053 = vmatprep.mubr.f32.mxu0 0.0
      %1054 = vmatmul.mubr.f32.gmra.mrb[0].mxu0 %v574
      %v1055 = vpop.f32.mrb[0].mxu0
      %v1056 = vadd.f32 0.0, %v1055
      %v1057 = vpop.f32.mrb[0].mxu0
      %1058 = vmatprep.mubr.f32.mxu0 0.0
      %1059 = vmatmul.mubr.f32.gmra.mrb[0].mxu0 %v576
      %v1060 = vpop.f32.mrb[0].mxu0
      %v1061 = vadd.f32 0.0, %v1060
      %v1062 = vpop.f32.mrb[0].mxu0
      %1063 = vdwg.mxu0
      %s1064 = scalar_lea.vmem %s3, 24
      %v1065 = vld [vmem:[%s1064] sm:$0x1]
      %v1066 = vld [vmem:[%s1064 + $0x1] sm:$0x1]
      %v1067 = vld [vmem:[%s1064 + $0x2] sm:$0x1]
      %v1068 = vld [vmem:[%s1064 + $0x3] sm:$0x1]
      %v1069 = vld [vmem:[%s1064 + $0x4] sm:$0x1]
      %v1070 = vld [vmem:[%s1064 + $0x5] sm:$0x1]
      %v1071 = vld [vmem:[%s1064 + $0x6] sm:$0x1]
      %v1072 = vld [vmem:[%s1064 + $0x7] sm:$0x1]
      %v1073 = vld [vmem:[%s1064 + $0x8] sm:$0x1]
      %v1074 = vld [vmem:[%s1064 + $0x9] sm:$0x1]
      %v1075 = vld [vmem:[%s1064 + $0xa] sm:$0x1]
      %v1076 = vld [vmem:[%s1064 + $0xb] sm:$0x1]
      %v1077 = vld [vmem:[%s1064 + $0xc] sm:$0x1]
      %v1078 = vld [vmem:[%s1064 + $0xd] sm:$0x1]
      %v1079 = vld [vmem:[%s1064 + $0xe] sm:$0x1]
      %v1080 = vld [vmem:[%s1064 + $0xf] sm:$0x1]
      %v1081 = vld [vmem:[%s1064 + $0x10] sm:$0x1]
      %v1082 = vld [vmem:[%s1064 + $0x11] sm:$0x1]
      %v1083 = vld [vmem:[%s1064 + $0x12] sm:$0x1]
      %v1084 = vld [vmem:[%s1064 + $0x13] sm:$0x1]
      %v1085 = vld [vmem:[%s1064 + $0x14] sm:$0x1]
      %v1086 = vld [vmem:[%s1064 + $0x15] sm:$0x1]
      %v1087 = vld [vmem:[%s1064 + $0x16] sm:$0x1]
      %v1088 = vld [vmem:[%s1064 + $0x17] sm:$0x1]
      %v1113 = vlaneseq
      %v1114 = vshrl.u32 %v1113, 7
      %v1115 = vsub.s32 0, %v1114
      %v1116 = vrot.slane %v1065, %v1115
      %v1117 = vlaneseq
      %v1118 = vshrl.u32 %v1117, 7
      %v1119 = vsub.s32 0, %v1118
      %v1120 = vrot.slane %v1066, %v1119
      %v1121 = vlaneseq
      %v1122 = vshrl.u32 %v1121, 7
      %v1123 = vsub.s32 0, %v1122
      %v1124 = vrot.slane %v1067, %v1123
      %v1125 = vlaneseq
      %v1126 = vshrl.u32 %v1125, 7
      %v1127 = vsub.s32 0, %v1126
      %v1128 = vrot.slane %v1068, %v1127
      %v1129 = vlaneseq
      %v1130 = vshrl.u32 %v1129, 7
      %v1131 = vsub.s32 0, %v1130
      %v1132 = vrot.slane %v1069, %v1131
      %v1133 = vlaneseq
      %v1134 = vshrl.u32 %v1133, 7
      %v1135 = vsub.s32 0, %v1134
      %v1136 = vrot.slane %v1070, %v1135
      %v1137 = vlaneseq
      %v1138 = vshrl.u32 %v1137, 7
      %v1139 = vsub.s32 0, %v1138
      %v1140 = vrot.slane %v1071, %v1139
      %v1141 = vlaneseq
      %v1142 = vshrl.u32 %v1141, 7
      %v1143 = vsub.s32 0, %v1142
      %v1144 = vrot.slane %v1072, %v1143
      %v1145 = vlaneseq
      %v1146 = vshrl.u32 %v1145, 7
      %v1147 = vsub.s32 0, %v1146
      %v1148 = vrot.slane %v1073, %v1147
      %v1149 = vlaneseq
      %v1150 = vshrl.u32 %v1149, 7
      %v1151 = vsub.s32 0, %v1150
      %v1152 = vrot.slane %v1074, %v1151
      %v1153 = vlaneseq
      %v1154 = vshrl.u32 %v1153, 7
      %v1155 = vsub.s32 0, %v1154
      %v1156 = vrot.slane %v1075, %v1155
      %v1157 = vlaneseq
      %v1158 = vshrl.u32 %v1157, 7
      %v1159 = vsub.s32 0, %v1158
      %v1160 = vrot.slane %v1076, %v1159
      %v1161 = vlaneseq
      %v1162 = vshrl.u32 %v1161, 7
      %v1163 = vsub.s32 0, %v1162
      %v1164 = vrot.slane %v1077, %v1163
      %v1165 = vlaneseq
      %v1166 = vshrl.u32 %v1165, 7
      %v1167 = vsub.s32 0, %v1166
      %v1168 = vrot.slane %v1078, %v1167
      %v1169 = vlaneseq
      %v1170 = vshrl.u32 %v1169, 7
      %v1171 = vsub.s32 0, %v1170
      %v1172 = vrot.slane %v1079, %v1171
      %v1173 = vlaneseq
      %v1174 = vshrl.u32 %v1173, 7
      %v1175 = vsub.s32 0, %v1174
      %v1176 = vrot.slane %v1080, %v1175
      %v1177 = vlaneseq
      %v1178 = vshrl.u32 %v1177, 7
      %v1179 = vsub.s32 0, %v1178
      %v1180 = vrot.slane %v1081, %v1179
      %v1181 = vlaneseq
      %v1182 = vshrl.u32 %v1181, 7
      %v1183 = vsub.s32 0, %v1182
      %v1184 = vrot.slane %v1082, %v1183
      %v1185 = vlaneseq
      %v1186 = vshrl.u32 %v1185, 7
      %v1187 = vsub.s32 0, %v1186
      %v1188 = vrot.slane %v1083, %v1187
      %v1189 = vlaneseq
      %v1190 = vshrl.u32 %v1189, 7
      %v1191 = vsub.s32 0, %v1190
      %v1192 = vrot.slane %v1084, %v1191
      %v1193 = vlaneseq
      %v1194 = vshrl.u32 %v1193, 7
      %v1195 = vsub.s32 0, %v1194
      %v1196 = vrot.slane %v1085, %v1195
      %v1197 = vlaneseq
      %v1198 = vshrl.u32 %v1197, 7
      %v1199 = vsub.s32 0, %v1198
      %v1200 = vrot.slane %v1086, %v1199
      %v1201 = vlaneseq
      %v1202 = vshrl.u32 %v1201, 7
      %v1203 = vsub.s32 0, %v1202
      %v1204 = vrot.slane %v1087, %v1203
      %v1205 = vlaneseq
      %v1206 = vshrl.u32 %v1205, 7
      %v1207 = vsub.s32 0, %v1206
      %v1208 = vrot.slane %v1088, %v1207
      %1209 = vset.pattern.permute.xlu0 0
      %1210 = vperm.xlu0 %1209, %v1116
      %v1211 = vpop.permute.xlu0 %1210
      %1213 = vset.pattern.permute.xlu0 0
      %1214 = vperm.xlu0 %1213, %v1120
      %v1215 = vpop.permute.xlu0 %1214
      %1217 = vset.pattern.permute.xlu0 0
      %1218 = vperm.xlu0 %1217, %v1124
      %v1219 = vpop.permute.xlu0 %1218
      %1221 = vset.pattern.permute.xlu0 0
      %1222 = vperm.xlu0 %1221, %v1128
      %v1223 = vpop.permute.xlu0 %1222
      %1225 = vset.pattern.permute.xlu0 0
      %1226 = vperm.xlu0 %1225, %v1132
      %v1227 = vpop.permute.xlu0 %1226
      %1229 = vset.pattern.permute.xlu0 0
      %1230 = vperm.xlu0 %1229, %v1136
      %v1231 = vpop.permute.xlu0 %1230
      %1233 = vset.pattern.permute.xlu0 0
      %1234 = vperm.xlu0 %1233, %v1140
      %v1235 = vpop.permute.xlu0 %1234
      %1237 = vset.pattern.permute.xlu0 0
      %1238 = vperm.xlu0 %1237, %v1144
      %v1239 = vpop.permute.xlu0 %1238
      %1241 = vset.pattern.permute.xlu0 0
      %1242 = vperm.xlu0 %1241, %v1148
      %v1243 = vpop.permute.xlu0 %1242
      %1245 = vset.pattern.permute.xlu0 0
      %1246 = vperm.xlu0 %1245, %v1152
      %v1247 = vpop.permute.xlu0 %1246
      %1249 = vset.pattern.permute.xlu0 0
      %1250 = vperm.xlu0 %1249, %v1156
      %v1251 = vpop.permute.xlu0 %1250
      %1253 = vset.pattern.permute.xlu0 0
      %1254 = vperm.xlu0 %1253, %v1160
      %v1255 = vpop.permute.xlu0 %1254
      %1257 = vset.pattern.permute.xlu0 0
      %1258 = vperm.xlu0 %1257, %v1164
      %v1259 = vpop.permute.xlu0 %1258
      %1261 = vset.pattern.permute.xlu0 0
      %1262 = vperm.xlu0 %1261, %v1168
      %v1263 = vpop.permute.xlu0 %1262
      %1265 = vset.pattern.permute.xlu0 0
      %1266 = vperm.xlu0 %1265, %v1172
      %v1267 = vpop.permute.xlu0 %1266
      %1269 = vset.pattern.permute.xlu0 0
      %1270 = vperm.xlu0 %1269, %v1176
      %v1271 = vpop.permute.xlu0 %1270
      %1273 = vset.pattern.permute.xlu0 0
      %1274 = vperm.xlu0 %1273, %v1180
      %v1275 = vpop.permute.xlu0 %1274
      %1277 = vset.pattern.permute.xlu0 0
      %1278 = vperm.xlu0 %1277, %v1184
      %v1279 = vpop.permute.xlu0 %1278
      %1281 = vset.pattern.permute.xlu0 0
      %1282 = vperm.xlu0 %1281, %v1188
      %v1283 = vpop.permute.xlu0 %1282
      %1285 = vset.pattern.permute.xlu0 0
      %1286 = vperm.xlu0 %1285, %v1192
      %v1287 = vpop.permute.xlu0 %1286
      %1289 = vset.pattern.permute.xlu0 0
      %1290 = vperm.xlu0 %1289, %v1196
      %v1291 = vpop.permute.xlu0 %1290
      %1293 = vset.pattern.permute.xlu0 0
      %1294 = vperm.xlu0 %1293, %v1200
      %v1295 = vpop.permute.xlu0 %1294
      %1297 = vset.pattern.permute.xlu0 0
      %1298 = vperm.xlu0 %1297, %v1204
      %v1299 = vpop.permute.xlu0 %1298
      %1301 = vset.pattern.permute.xlu0 0
      %1302 = vperm.xlu0 %1301, %v1208
      %v1303 = vpop.permute.xlu0 %1302
      %v1305 = vmul.f32 %v1211, %v1046
      %v1306 = vmul.f32 %v1215, %v1051
      %v1307 = vmul.f32 %v1219, %v1056
      %v1308 = vmul.f32 %v1223, %v1061
      %v1309 = vmul.f32 %v1227, %v1046
      %v1310 = vmul.f32 %v1231, %v1051
      %v1311 = vmul.f32 %v1235, %v1056
      %v1312 = vmul.f32 %v1239, %v1061
      %v1313 = vmul.f32 %v1243, %v1046
      %v1314 = vmul.f32 %v1247, %v1051
      %v1315 = vmul.f32 %v1251, %v1056
      %v1316 = vmul.f32 %v1255, %v1061
      %v1317 = vmul.f32 %v1259, %v1046
      %v1318 = vmul.f32 %v1263, %v1051
      %v1319 = vmul.f32 %v1267, %v1056
      %v1320 = vmul.f32 %v1271, %v1061
      %v1321 = vmul.f32 %v1275, %v1046
      %v1322 = vmul.f32 %v1279, %v1051
      %v1323 = vmul.f32 %v1283, %v1056
      %v1324 = vmul.f32 %v1287, %v1061
      %v1325 = vmul.f32 %v1291, %v1046
      %v1326 = vmul.f32 %v1295, %v1051
      %v1327 = vmul.f32 %v1299, %v1056
      %v1328 = vmul.f32 %v1303, %v1061
      %v1329 = vsel %vm927, %v1305, 0.0
      %v1330 = vsel %vm927, %v1306, 0.0
      %v1331 = vadd.f32 %v1329, %v1330
      %v1332 = vsel %vm927, %v1307, 0.0
      %v1333 = vadd.f32 %v1331, %v1332
      %v1334 = vsel %vm927, %v1308, 0.0
      %v1335 = vadd.f32 %v1333, %v1334
      %v1336 = vsel %vm927, %v1309, 0.0
      %v1337 = vsel %vm927, %v1310, 0.0
      %v1338 = vadd.f32 %v1336, %v1337
      %v1339 = vsel %vm927, %v1311, 0.0
      %v1340 = vadd.f32 %v1338, %v1339
      %v1341 = vsel %vm927, %v1312, 0.0
      %v1342 = vadd.f32 %v1340, %v1341
      %v1343 = vsel %vm927, %v1313, 0.0
      %v1344 = vsel %vm927, %v1314, 0.0
      %v1345 = vadd.f32 %v1343, %v1344
      %v1346 = vsel %vm927, %v1315, 0.0
      %v1347 = vadd.f32 %v1345, %v1346
      %v1348 = vsel %vm927, %v1316, 0.0
      %v1349 = vadd.f32 %v1347, %v1348
      %v1350 = vsel %vm927, %v1317, 0.0
      %v1351 = vsel %vm927, %v1318, 0.0
      %v1352 = vadd.f32 %v1350, %v1351
      %v1353 = vsel %vm927, %v1319, 0.0
      %v1354 = vadd.f32 %v1352, %v1353
      %v1355 = vsel %vm927, %v1320, 0.0
      %v1356 = vadd.f32 %v1354, %v1355
      %v1357 = vsel %vm927, %v1321, 0.0
      %v1358 = vsel %vm927, %v1322, 0.0
      %v1359 = vadd.f32 %v1357, %v1358
      %v1360 = vsel %vm927, %v1323, 0.0
      %v1361 = vadd.f32 %v1359, %v1360
      %v1362 = vsel %vm927, %v1324, 0.0
      %v1363 = vadd.f32 %v1361, %v1362
      %v1364 = vsel %vm927, %v1325, 0.0
      %v1365 = vsel %vm927, %v1326, 0.0
      %v1366 = vadd.f32 %v1364, %v1365
      %v1367 = vsel %vm927, %v1327, 0.0
      %v1368 = vadd.f32 %v1366, %v1367
      %v1369 = vsel %vm927, %v1328, 0.0
      %v1370 = vadd.f32 %v1368, %v1369
      %v1371 = vadd.f32 %v970, %v1335
      %v1372 = vadd.f32 %v971, %v1342
      %v1373 = vadd.f32 %v972, %v1349
      %v1374 = vadd.f32 %v973, %v1356
      %v1375 = vadd.f32 %v974, %v1363
      %v1376 = vadd.f32 %v975, %v1370
      %v1377 = vrot.slane %v440, 1
      %v1378 = vsel %vm507, %v441, %v1377
      %v1379 = vrot.slane %v442, 7
      %v1380 = vsel %vm510, %v1379, %v1378
      %v1381 = vrot.slane %v443, 6
      %v1382 = vsel %vm513, %v1381, %v1380
      %v1383 = vrot.slane %v444, 5
      %v1384 = vsel %vm516, %v1383, %v1382
      %v1385 = vrot.slane %v445, 4
      %v1386 = vsel %vm519, %v1385, %v1384
      %v1387 = vrot.slane %v446, 3
      %v1388 = vsel %vm522, %v1387, %v1386
      %v1389 = vrot.slane %v447, 2
      %v1390 = vsel %vm525, %v1389, %v1388
      %v1391 = vrot.slane %v448, 1
      %v1392 = vsel %vm507, %v449, %v1391
      %v1393 = vrot.slane %v450, 7
      %v1394 = vsel %vm510, %v1393, %v1392
      %v1395 = vrot.slane %v451, 6
      %v1396 = vsel %vm513, %v1395, %v1394
      %v1397 = vrot.slane %v452, 5
      %v1398 = vsel %vm516, %v1397, %v1396
      %v1399 = vrot.slane %v453, 4
      %v1400 = vsel %vm519, %v1399, %v1398
      %v1401 = vrot.slane %v454, 3
      %v1402 = vsel %vm522, %v1401, %v1400
      %v1403 = vrot.slane %v455, 2
      %v1404 = vsel %vm525, %v1403, %v1402
      %v1405 = vrot.slane %v456, 1
      %v1406 = vsel %vm507, %v457, %v1405
      %v1407 = vrot.slane %v458, 7
      %v1408 = vsel %vm510, %v1407, %v1406
      %v1409 = vrot.slane %v459, 6
      %v1410 = vsel %vm513, %v1409, %v1408
      %v1411 = vrot.slane %v460, 5
      %v1412 = vsel %vm516, %v1411, %v1410
      %v1413 = vrot.slane %v461, 4
      %v1414 = vsel %vm519, %v1413, %v1412
      %v1415 = vrot.slane %v462, 3
      %v1416 = vsel %vm522, %v1415, %v1414
      %v1417 = vrot.slane %v463, 2
      %v1418 = vsel %vm525, %v1417, %v1416
      %v1419 = vrot.slane %v464, 1
      %v1420 = vsel %vm507, %v465, %v1419
      %v1421 = vrot.slane %v466, 7
      %v1422 = vsel %vm510, %v1421, %v1420
      %v1423 = vrot.slane %v467, 6
      %v1424 = vsel %vm513, %v1423, %v1422
      %v1425 = vrot.slane %v468, 5
      %v1426 = vsel %vm516, %v1425, %v1424
      %v1427 = vrot.slane %v469, 4
      %v1428 = vsel %vm519, %v1427, %v1426
      %v1429 = vrot.slane %v470, 3
      %v1430 = vsel %vm522, %v1429, %v1428
      %v1431 = vrot.slane %v471, 2
      %v1432 = vsel %vm525, %v1431, %v1430
      %v1433 = vsel %vm569, %v1390, 0
      %v1435 = vsel %vm569, %v1404, 0
      %v1437 = vsel %vm569, %v1418, 0
      %v1439 = vsel %vm569, %v1432, 0
      %1441 = vmatprep.subr.mxu0 0.0
      %1442 = vmatpush1.msra.mxu0 %v472
      %1443 = vmatprep.subr.mxu0 0.0
      %1444 = vmatpush1.msra.mxu0 %v473
      %1445 = vmatprep.subr.mxu0 0.0
      %1446 = vmatpush1.msra.mxu0 0.0
      %1447 = vmatprep.subr.mxu0 0.0
      %1448 = vmatpush1.msra.mxu0 0.0
      %1449 = vmatprep.subr.mxu0 0.0
      %1450 = vmatpush1.msra.mxu0 0.0
      %1451 = vmatprep.subr.mxu0 0.0
      %1452 = vmatpush1.msra.mxu0 0.0
      %1453 = vmatprep.subr.mxu0 0.0
      %1454 = vmatpush1.msra.mxu0 0.0
      %1455 = vmatprep.subr.mxu0 0.0
      %1456 = vmatpush1.msra.mxu0 0.0
      %1457 = vmatprep.subr.mxu0 0.0
      %1458 = vmatpush1.msra.mxu0 0.0
      %1459 = vmatprep.subr.mxu0 0.0
      %1460 = vmatpush1.msra.mxu0 0.0
      %1461 = vmatprep.subr.mxu0 0.0
      %1462 = vmatpush1.msra.mxu0 0.0
      %1463 = vmatprep.subr.mxu0 0.0
      %1464 = vmatpush1.msra.mxu0 0.0
      %1465 = vmatprep.subr.mxu0 0.0
      %1466 = vmatpush1.msra.mxu0 0.0
      %1467 = vmatprep.subr.mxu0 0.0
      %1468 = vmatpush1.msra.mxu0 0.0
      %1469 = vmatprep.subr.mxu0 0.0
      %1470 = vmatpush1.msra.mxu0 0.0
      %1471 = vmatprep.subr.mxu0 0.0
      %1472 = vmatpush1.msra.mxu0 0.0
      %1473 = vmatprep.subr.mxu0 0.0
      %1474 = vmatpush1.msra.mxu0 0.0
      %1475 = vmatprep.subr.mxu0 0.0
      %1476 = vmatpush1.msra.mxu0 0.0
      %1477 = vmatprep.subr.mxu0 0.0
      %1478 = vmatpush1.msra.mxu0 0.0
      %1479 = vmatprep.subr.mxu0 0.0
      %1480 = vmatpush1.msra.mxu0 0.0
      %1481 = vmatprep.subr.mxu0 0.0
      %1482 = vmatpush1.msra.mxu0 0.0
      %1483 = vmatprep.subr.mxu0 0.0
      %1484 = vmatpush1.msra.mxu0 0.0
      %1485 = vmatprep.subr.mxu0 0.0
      %1486 = vmatpush1.msra.mxu0 0.0
      %1487 = vmatprep.subr.mxu0 0.0
      %1488 = vmatpush1.msra.mxu0 0.0
      %1489 = vmatprep.subr.mxu0 0.0
      %1490 = vmatpush1.msra.mxu0 0.0
      %1491 = vmatprep.subr.mxu0 0.0
      %1492 = vmatpush1.msra.mxu0 0.0
      %1493 = vmatprep.subr.mxu0 0.0
      %1494 = vmatpush1.msra.mxu0 0.0
      %1495 = vmatprep.subr.mxu0 0.0
      %1496 = vmatpush1.msra.mxu0 0.0
      %1497 = vmatprep.subr.mxu0 0.0
      %1498 = vmatpush1.msra.mxu0 0.0
      %1499 = vmatprep.subr.mxu0 0.0
      %1500 = vmatpush1.msra.mxu0 0.0
      %1501 = vmatprep.subr.mxu0 0.0
      %1502 = vmatpush1.msra.mxu0 0.0
      %1503 = vmatprep.subr.mxu0 0.0
      %1504 = vmatpush1.msra.mxu0 0.0
      %1505 = vmatprep.mubr.f32.mxu0 0.0
      %1506 = vmatmul.mubr.f32.gmra.mrb[0].mxu0 %v1433
      %v1507 = vpop.f32.mrb[0].mxu0
      %v1508 = vadd.f32 0.0, %v1507
      %v1509 = vpop.f32.mrb[0].mxu0
      %1510 = vmatprep.mubr.f32.mxu0 0.0
      %1511 = vmatmul.mubr.f32.gmra.mrb[0].mxu0 %v1435
      %v1512 = vpop.f32.mrb[0].mxu0
      %v1513 = vadd.f32 0.0, %v1512
      %v1514 = vpop.f32.mrb[0].mxu0
      %1515 = vmatprep.mubr.f32.mxu0 0.0
      %1516 = vmatmul.mubr.f32.gmra.mrb[0].mxu0 %v1437
      %v1517 = vpop.f32.mrb[0].mxu0
      %v1518 = vadd.f32 0.0, %v1517
      %v1519 = vpop.f32.mrb[0].mxu0
      %1520 = vmatprep.mubr.f32.mxu0 0.0
      %1521 = vmatmul.mubr.f32.gmra.mrb[0].mxu0 %v1439
      %v1522 = vpop.f32.mrb[0].mxu0
      %v1523 = vadd.f32 0.0, %v1522
      %v1524 = vpop.f32.mrb[0].mxu0
      %1525 = vdwg.mxu0
      %s1526 = scalar_lea.vmem %s3, 48
      %v1527 = vld [vmem:[%s1526] sm:$0x1]
      %v1528 = vld [vmem:[%s1526 + $0x1] sm:$0x1]
      %v1529 = vld [vmem:[%s1526 + $0x2] sm:$0x1]
      %v1530 = vld [vmem:[%s1526 + $0x3] sm:$0x1]
      %v1531 = vld [vmem:[%s1526 + $0x4] sm:$0x1]
      %v1532 = vld [vmem:[%s1526 + $0x5] sm:$0x1]
      %v1533 = vld [vmem:[%s1526 + $0x6] sm:$0x1]
      %v1534 = vld [vmem:[%s1526 + $0x7] sm:$0x1]
      %v1535 = vld [vmem:[%s1526 + $0x8] sm:$0x1]
      %v1536 = vld [vmem:[%s1526 + $0x9] sm:$0x1]
      %v1537 = vld [vmem:[%s1526 + $0xa] sm:$0x1]
      %v1538 = vld [vmem:[%s1526 + $0xb] sm:$0x1]
      %v1539 = vld [vmem:[%s1526 + $0xc] sm:$0x1]
      %v1540 = vld [vmem:[%s1526 + $0xd] sm:$0x1]
      %v1541 = vld [vmem:[%s1526 + $0xe] sm:$0x1]
      %v1542 = vld [vmem:[%s1526 + $0xf] sm:$0x1]
      %v1543 = vld [vmem:[%s1526 + $0x10] sm:$0x1]
      %v1544 = vld [vmem:[%s1526 + $0x11] sm:$0x1]
      %v1545 = vld [vmem:[%s1526 + $0x12] sm:$0x1]
      %v1546 = vld [vmem:[%s1526 + $0x13] sm:$0x1]
      %v1547 = vld [vmem:[%s1526 + $0x14] sm:$0x1]
      %v1548 = vld [vmem:[%s1526 + $0x15] sm:$0x1]
      %v1549 = vld [vmem:[%s1526 + $0x16] sm:$0x1]
      %v1550 = vld [vmem:[%s1526 + $0x17] sm:$0x1]
      %v1575 = vlaneseq
      %v1576 = vshrl.u32 %v1575, 7
      %v1577 = vsub.s32 0, %v1576
      %v1578 = vrot.slane %v1527, %v1577
      %v1579 = vlaneseq
      %v1580 = vshrl.u32 %v1579, 7
      %v1581 = vsub.s32 0, %v1580
      %v1582 = vrot.slane %v1528, %v1581
      %v1583 = vlaneseq
      %v1584 = vshrl.u32 %v1583, 7
      %v1585 = vsub.s32 0, %v1584
      %v1586 = vrot.slane %v1529, %v1585
      %v1587 = vlaneseq
      %v1588 = vshrl.u32 %v1587, 7
      %v1589 = vsub.s32 0, %v1588
      %v1590 = vrot.slane %v1530, %v1589
      %v1591 = vlaneseq
      %v1592 = vshrl.u32 %v1591, 7
      %v1593 = vsub.s32 0, %v1592
      %v1594 = vrot.slane %v1531, %v1593
      %v1595 = vlaneseq
      %v1596 = vshrl.u32 %v1595, 7
      %v1597 = vsub.s32 0, %v1596
      %v1598 = vrot.slane %v1532, %v1597
      %v1599 = vlaneseq
      %v1600 = vshrl.u32 %v1599, 7
      %v1601 = vsub.s32 0, %v1600
      %v1602 = vrot.slane %v1533, %v1601
      %v1603 = vlaneseq
      %v1604 = vshrl.u32 %v1603, 7
      %v1605 = vsub.s32 0, %v1604
      %v1606 = vrot.slane %v1534, %v1605
      %v1607 = vlaneseq
      %v1608 = vshrl.u32 %v1607, 7
      %v1609 = vsub.s32 0, %v1608
      %v1610 = vrot.slane %v1535, %v1609
      %v1611 = vlaneseq
      %v1612 = vshrl.u32 %v1611, 7
      %v1613 = vsub.s32 0, %v1612
      %v1614 = vrot.slane %v1536, %v1613
      %v1615 = vlaneseq
      %v1616 = vshrl.u32 %v1615, 7
      %v1617 = vsub.s32 0, %v1616
      %v1618 = vrot.slane %v1537, %v1617
      %v1619 = vlaneseq
      %v1620 = vshrl.u32 %v1619, 7
      %v1621 = vsub.s32 0, %v1620
      %v1622 = vrot.slane %v1538, %v1621
      %v1623 = vlaneseq
      %v1624 = vshrl.u32 %v1623, 7
      %v1625 = vsub.s32 0, %v1624
      %v1626 = vrot.slane %v1539, %v1625
      %v1627 = vlaneseq
      %v1628 = vshrl.u32 %v1627, 7
      %v1629 = vsub.s32 0, %v1628
      %v1630 = vrot.slane %v1540, %v1629
      %v1631 = vlaneseq
      %v1632 = vshrl.u32 %v1631, 7
      %v1633 = vsub.s32 0, %v1632
      %v1634 = vrot.slane %v1541, %v1633
      %v1635 = vlaneseq
      %v1636 = vshrl.u32 %v1635, 7
      %v1637 = vsub.s32 0, %v1636
      %v1638 = vrot.slane %v1542, %v1637
      %v1639 = vlaneseq
      %v1640 = vshrl.u32 %v1639, 7
      %v1641 = vsub.s32 0, %v1640
      %v1642 = vrot.slane %v1543, %v1641
      %v1643 = vlaneseq
      %v1644 = vshrl.u32 %v1643, 7
      %v1645 = vsub.s32 0, %v1644
      %v1646 = vrot.slane %v1544, %v1645
      %v1647 = vlaneseq
      %v1648 = vshrl.u32 %v1647, 7
      %v1649 = vsub.s32 0, %v1648
      %v1650 = vrot.slane %v1545, %v1649
      %v1651 = vlaneseq
      %v1652 = vshrl.u32 %v1651, 7
      %v1653 = vsub.s32 0, %v1652
      %v1654 = vrot.slane %v1546, %v1653
      %v1655 = vlaneseq
      %v1656 = vshrl.u32 %v1655, 7
      %v1657 = vsub.s32 0, %v1656
      %v1658 = vrot.slane %v1547, %v1657
      %v1659 = vlaneseq
      %v1660 = vshrl.u32 %v1659, 7
      %v1661 = vsub.s32 0, %v1660
      %v1662 = vrot.slane %v1548, %v1661
      %v1663 = vlaneseq
      %v1664 = vshrl.u32 %v1663, 7
      %v1665 = vsub.s32 0, %v1664
      %v1666 = vrot.slane %v1549, %v1665
      %v1667 = vlaneseq
      %v1668 = vshrl.u32 %v1667, 7
      %v1669 = vsub.s32 0, %v1668
      %v1670 = vrot.slane %v1550, %v1669
      %1671 = vset.pattern.permute.xlu0 0
      %1672 = vperm.xlu0 %1671, %v1578
      %v1673 = vpop.permute.xlu0 %1672
      %1675 = vset.pattern.permute.xlu0 0
      %1676 = vperm.xlu0 %1675, %v1582
      %v1677 = vpop.permute.xlu0 %1676
      %1679 = vset.pattern.permute.xlu0 0
      %1680 = vperm.xlu0 %1679, %v1586
      %v1681 = vpop.permute.xlu0 %1680
      %1683 = vset.pattern.permute.xlu0 0
      %1684 = vperm.xlu0 %1683, %v1590
      %v1685 = vpop.permute.xlu0 %1684
      %1687 = vset.pattern.permute.xlu0 0
      %1688 = vperm.xlu0 %1687, %v1594
      %v1689 = vpop.permute.xlu0 %1688
      %1691 = vset.pattern.permute.xlu0 0
      %1692 = vperm.xlu0 %1691, %v1598
      %v1693 = vpop.permute.xlu0 %1692
      %1695 = vset.pattern.permute.xlu0 0
      %1696 = vperm.xlu0 %1695, %v1602
      %v1697 = vpop.permute.xlu0 %1696
      %1699 = vset.pattern.permute.xlu0 0
      %1700 = vperm.xlu0 %1699, %v1606
      %v1701 = vpop.permute.xlu0 %1700
      %1703 = vset.pattern.permute.xlu0 0
      %1704 = vperm.xlu0 %1703, %v1610
      %v1705 = vpop.permute.xlu0 %1704
      %1707 = vset.pattern.permute.xlu0 0
      %1708 = vperm.xlu0 %1707, %v1614
      %v1709 = vpop.permute.xlu0 %1708
      %1711 = vset.pattern.permute.xlu0 0
      %1712 = vperm.xlu0 %1711, %v1618
      %v1713 = vpop.permute.xlu0 %1712
      %1715 = vset.pattern.permute.xlu0 0
      %1716 = vperm.xlu0 %1715, %v1622
      %v1717 = vpop.permute.xlu0 %1716
      %1719 = vset.pattern.permute.xlu0 0
      %1720 = vperm.xlu0 %1719, %v1626
      %v1721 = vpop.permute.xlu0 %1720
      %1723 = vset.pattern.permute.xlu0 0
      %1724 = vperm.xlu0 %1723, %v1630
      %v1725 = vpop.permute.xlu0 %1724
      %1727 = vset.pattern.permute.xlu0 0
      %1728 = vperm.xlu0 %1727, %v1634
      %v1729 = vpop.permute.xlu0 %1728
      %1731 = vset.pattern.permute.xlu0 0
      %1732 = vperm.xlu0 %1731, %v1638
      %v1733 = vpop.permute.xlu0 %1732
      %1735 = vset.pattern.permute.xlu0 0
      %1736 = vperm.xlu0 %1735, %v1642
      %v1737 = vpop.permute.xlu0 %1736
      %1739 = vset.pattern.permute.xlu0 0
      %1740 = vperm.xlu0 %1739, %v1646
      %v1741 = vpop.permute.xlu0 %1740
      %1743 = vset.pattern.permute.xlu0 0
      %1744 = vperm.xlu0 %1743, %v1650
      %v1745 = vpop.permute.xlu0 %1744
      %1747 = vset.pattern.permute.xlu0 0
      %1748 = vperm.xlu0 %1747, %v1654
      %v1749 = vpop.permute.xlu0 %1748
      %1751 = vset.pattern.permute.xlu0 0
      %1752 = vperm.xlu0 %1751, %v1658
      %v1753 = vpop.permute.xlu0 %1752
      %1755 = vset.pattern.permute.xlu0 0
      %1756 = vperm.xlu0 %1755, %v1662
      %v1757 = vpop.permute.xlu0 %1756
      %1759 = vset.pattern.permute.xlu0 0
      %1760 = vperm.xlu0 %1759, %v1666
      %v1761 = vpop.permute.xlu0 %1760
      %1763 = vset.pattern.permute.xlu0 0
      %1764 = vperm.xlu0 %1763, %v1670
      %v1765 = vpop.permute.xlu0 %1764
      %v1767 = vmul.f32 %v1673, %v1508
      %v1768 = vmul.f32 %v1677, %v1513
      %v1769 = vmul.f32 %v1681, %v1518
      %v1770 = vmul.f32 %v1685, %v1523
      %v1771 = vmul.f32 %v1689, %v1508
      %v1772 = vmul.f32 %v1693, %v1513
      %v1773 = vmul.f32 %v1697, %v1518
      %v1774 = vmul.f32 %v1701, %v1523
      %v1775 = vmul.f32 %v1705, %v1508
      %v1776 = vmul.f32 %v1709, %v1513
      %v1777 = vmul.f32 %v1713, %v1518
      %v1778 = vmul.f32 %v1717, %v1523
      %v1779 = vmul.f32 %v1721, %v1508
      %v1780 = vmul.f32 %v1725, %v1513
      %v1781 = vmul.f32 %v1729, %v1518
      %v1782 = vmul.f32 %v1733, %v1523
      %v1783 = vmul.f32 %v1737, %v1508
      %v1784 = vmul.f32 %v1741, %v1513
      %v1785 = vmul.f32 %v1745, %v1518
      %v1786 = vmul.f32 %v1749, %v1523
      %v1787 = vmul.f32 %v1753, %v1508
      %v1788 = vmul.f32 %v1757, %v1513
      %v1789 = vmul.f32 %v1761, %v1518
      %v1790 = vmul.f32 %v1765, %v1523
      %v1791 = vsel %vm927, %v1767, 0.0
      %v1792 = vsel %vm927, %v1768, 0.0
      %v1793 = vadd.f32 %v1791, %v1792
      %v1794 = vsel %vm927, %v1769, 0.0
      %v1795 = vadd.f32 %v1793, %v1794
      %v1796 = vsel %vm927, %v1770, 0.0
      %v1797 = vadd.f32 %v1795, %v1796
      %v1798 = vsel %vm927, %v1771, 0.0
      %v1799 = vsel %vm927, %v1772, 0.0
      %v1800 = vadd.f32 %v1798, %v1799
      %v1801 = vsel %vm927, %v1773, 0.0
      %v1802 = vadd.f32 %v1800, %v1801
      %v1803 = vsel %vm927, %v1774, 0.0
      %v1804 = vadd.f32 %v1802, %v1803
      %v1805 = vsel %vm927, %v1775, 0.0
      %v1806 = vsel %vm927, %v1776, 0.0
      %v1807 = vadd.f32 %v1805, %v1806
      %v1808 = vsel %vm927, %v1777, 0.0
      %v1809 = vadd.f32 %v1807, %v1808
      %v1810 = vsel %vm927, %v1778, 0.0
      %v1811 = vadd.f32 %v1809, %v1810
      %v1812 = vsel %vm927, %v1779, 0.0
      %v1813 = vsel %vm927, %v1780, 0.0
      %v1814 = vadd.f32 %v1812, %v1813
      %v1815 = vsel %vm927, %v1781, 0.0
      %v1816 = vadd.f32 %v1814, %v1815
      %v1817 = vsel %vm927, %v1782, 0.0
      %v1818 = vadd.f32 %v1816, %v1817
      %v1819 = vsel %vm927, %v1783, 0.0
      %v1820 = vsel %vm927, %v1784, 0.0
      %v1821 = vadd.f32 %v1819, %v1820
      %v1822 = vsel %vm927, %v1785, 0.0
      %v1823 = vadd.f32 %v1821, %v1822
      %v1824 = vsel %vm927, %v1786, 0.0
      %v1825 = vadd.f32 %v1823, %v1824
      %v1826 = vsel %vm927, %v1787, 0.0
      %v1827 = vsel %vm927, %v1788, 0.0
      %v1828 = vadd.f32 %v1826, %v1827
      %v1829 = vsel %vm927, %v1789, 0.0
      %v1830 = vadd.f32 %v1828, %v1829
      %v1831 = vsel %vm927, %v1790, 0.0
      %v1832 = vadd.f32 %v1830, %v1831
      %v1833 = vadd.f32 %v1371, %v1797
      %v1834 = vadd.f32 %v1372, %v1804
      %v1835 = vadd.f32 %v1373, %v1811
      %v1836 = vadd.f32 %v1374, %v1818
      %v1837 = vadd.f32 %v1375, %v1825
      %v1838 = vadd.f32 %v1376, %v1832
      %1839 = vmatprep.subr.mxu0 0.0
      %1840 = vmatpush1.msra.mxu0 %v977
      %1841 = vmatprep.subr.mxu0 0.0
      %1842 = vmatpush1.msra.mxu0 %v978
      %1843 = vmatprep.subr.mxu0 0.0
      %1844 = vmatpush1.msra.mxu0 0.0
      %1845 = vmatprep.subr.mxu0 0.0
      %1846 = vmatpush1.msra.mxu0 0.0
      %1847 = vmatprep.subr.mxu0 0.0
      %1848 = vmatpush1.msra.mxu0 0.0
      %1849 = vmatprep.subr.mxu0 0.0
      %1850 = vmatpush1.msra.mxu0 0.0
      %1851 = vmatprep.subr.mxu0 0.0
      %1852 = vmatpush1.msra.mxu0 0.0
      %1853 = vmatprep.subr.mxu0 0.0
      %1854 = vmatpush1.msra.mxu0 0.0
      %1855 = vmatprep.subr.mxu0 0.0
      %1856 = vmatpush1.msra.mxu0 0.0
      %1857 = vmatprep.subr.mxu0 0.0
      %1858 = vmatpush1.msra.mxu0 0.0
      %1859 = vmatprep.subr.mxu0 0.0
      %1860 = vmatpush1.msra.mxu0 0.0
      %1861 = vmatprep.subr.mxu0 0.0
      %1862 = vmatpush1.msra.mxu0 0.0
      %1863 = vmatprep.subr.mxu0 0.0
      %1864 = vmatpush1.msra.mxu0 0.0
      %1865 = vmatprep.subr.mxu0 0.0
      %1866 = vmatpush1.msra.mxu0 0.0
      %1867 = vmatprep.subr.mxu0 0.0
      %1868 = vmatpush1.msra.mxu0 0.0
      %1869 = vmatprep.subr.mxu0 0.0
      %1870 = vmatpush1.msra.mxu0 0.0
      %1871 = vmatprep.subr.mxu0 0.0
      %1872 = vmatpush1.msra.mxu0 0.0
      %1873 = vmatprep.subr.mxu0 0.0
      %1874 = vmatpush1.msra.mxu0 0.0
      %1875 = vmatprep.subr.mxu0 0.0
      %1876 = vmatpush1.msra.mxu0 0.0
      %1877 = vmatprep.subr.mxu0 0.0
      %1878 = vmatpush1.msra.mxu0 0.0
      %1879 = vmatprep.subr.mxu0 0.0
      %1880 = vmatpush1.msra.mxu0 0.0
      %1881 = vmatprep.subr.mxu0 0.0
      %1882 = vmatpush1.msra.mxu0 0.0
      %1883 = vmatprep.subr.mxu0 0.0
      %1884 = vmatpush1.msra.mxu0 0.0
      %1885 = vmatprep.subr.mxu0 0.0
      %1886 = vmatpush1.msra.mxu0 0.0
      %1887 = vmatprep.subr.mxu0 0.0
      %1888 = vmatpush1.msra.mxu0 0.0
      %1889 = vmatprep.subr.mxu0 0.0
      %1890 = vmatpush1.msra.mxu0 0.0
      %1891 = vmatprep.subr.mxu0 0.0
      %1892 = vmatpush1.msra.mxu0 0.0
      %1893 = vmatprep.subr.mxu0 0.0
      %1894 = vmatpush1.msra.mxu0 0.0
      %1895 = vmatprep.subr.mxu0 0.0
      %1896 = vmatpush1.msra.mxu0 0.0
      %1897 = vmatprep.subr.mxu0 0.0
      %1898 = vmatpush1.msra.mxu0 0.0
      %1899 = vmatprep.subr.mxu0 0.0
      %1900 = vmatpush1.msra.mxu0 0.0
      %1901 = vmatprep.subr.mxu0 0.0
      %1902 = vmatpush1.msra.mxu0 0.0
      %1903 = vmatprep.mubr.f32.mxu0 0.0
      %1904 = vmatmul.mubr.f32.gmra.mrb[0].mxu0 %v1433
      %v1905 = vpop.f32.mrb[0].mxu0
      %v1906 = vadd.f32 0.0, %v1905
      %v1907 = vpop.f32.mrb[0].mxu0
      %1908 = vmatprep.mubr.f32.mxu0 0.0
      %1909 = vmatmul.mubr.f32.gmra.mrb[0].mxu0 %v1435
      %v1910 = vpop.f32.mrb[0].mxu0
      %v1911 = vadd.f32 0.0, %v1910
      %v1912 = vpop.f32.mrb[0].mxu0
      %1913 = vmatprep.mubr.f32.mxu0 0.0
      %1914 = vmatmul.mubr.f32.gmra.mrb[0].mxu0 %v1437
      %v1915 = vpop.f32.mrb[0].mxu0
      %v1916 = vadd.f32 0.0, %v1915
      %v1917 = vpop.f32.mrb[0].mxu0
      %1918 = vmatprep.mubr.f32.mxu0 0.0
      %1919 = vmatmul.mubr.f32.gmra.mrb[0].mxu0 %v1439
      %v1920 = vpop.f32.mrb[0].mxu0
      %v1921 = vadd.f32 0.0, %v1920
      %v1922 = vpop.f32.mrb[0].mxu0
      %1923 = vdwg.mxu0
      %s1924 = scalar_lea.vmem %s3, 72
      %v1925 = vld [vmem:[%s1924] sm:$0x1]
      %v1926 = vld [vmem:[%s1924 + $0x1] sm:$0x1]
      %v1927 = vld [vmem:[%s1924 + $0x2] sm:$0x1]
      %v1928 = vld [vmem:[%s1924 + $0x3] sm:$0x1]
      %v1929 = vld [vmem:[%s1924 + $0x4] sm:$0x1]
      %v1930 = vld [vmem:[%s1924 + $0x5] sm:$0x1]
      %v1931 = vld [vmem:[%s1924 + $0x6] sm:$0x1]
      %v1932 = vld [vmem:[%s1924 + $0x7] sm:$0x1]
      %v1933 = vld [vmem:[%s1924 + $0x8] sm:$0x1]
      %v1934 = vld [vmem:[%s1924 + $0x9] sm:$0x1]
      %v1935 = vld [vmem:[%s1924 + $0xa] sm:$0x1]
      %v1936 = vld [vmem:[%s1924 + $0xb] sm:$0x1]
      %v1937 = vld [vmem:[%s1924 + $0xc] sm:$0x1]
      %v1938 = vld [vmem:[%s1924 + $0xd] sm:$0x1]
      %v1939 = vld [vmem:[%s1924 + $0xe] sm:$0x1]
      %v1940 = vld [vmem:[%s1924 + $0xf] sm:$0x1]
      %v1941 = vld [vmem:[%s1924 + $0x10] sm:$0x1]
      %v1942 = vld [vmem:[%s1924 + $0x11] sm:$0x1]
      %v1943 = vld [vmem:[%s1924 + $0x12] sm:$0x1]
      %v1944 = vld [vmem:[%s1924 + $0x13] sm:$0x1]
      %v1945 = vld [vmem:[%s1924 + $0x14] sm:$0x1]
      %v1946 = vld [vmem:[%s1924 + $0x15] sm:$0x1]
      %v1947 = vld [vmem:[%s1924 + $0x16] sm:$0x1]
      %v1948 = vld [vmem:[%s1924 + $0x17] sm:$0x1]
      %v1973 = vlaneseq
      %v1974 = vshrl.u32 %v1973, 7
      %v1975 = vsub.s32 0, %v1974
      %v1976 = vrot.slane %v1925, %v1975
      %v1977 = vlaneseq
      %v1978 = vshrl.u32 %v1977, 7
      %v1979 = vsub.s32 0, %v1978
      %v1980 = vrot.slane %v1926, %v1979
      %v1981 = vlaneseq
      %v1982 = vshrl.u32 %v1981, 7
      %v1983 = vsub.s32 0, %v1982
      %v1984 = vrot.slane %v1927, %v1983
      %v1985 = vlaneseq
      %v1986 = vshrl.u32 %v1985, 7
      %v1987 = vsub.s32 0, %v1986
      %v1988 = vrot.slane %v1928, %v1987
      %v1989 = vlaneseq
      %v1990 = vshrl.u32 %v1989, 7
      %v1991 = vsub.s32 0, %v1990
      %v1992 = vrot.slane %v1929, %v1991
      %v1993 = vlaneseq
      %v1994 = vshrl.u32 %v1993, 7
      %v1995 = vsub.s32 0, %v1994
      %v1996 = vrot.slane %v1930, %v1995
      %v1997 = vlaneseq
      %v1998 = vshrl.u32 %v1997, 7
      %v1999 = vsub.s32 0, %v1998
      %v2000 = vrot.slane %v1931, %v1999
      %v2001 = vlaneseq
      %v2002 = vshrl.u32 %v2001, 7
      %v2003 = vsub.s32 0, %v2002
      %v2004 = vrot.slane %v1932, %v2003
      %v2005 = vlaneseq
      %v2006 = vshrl.u32 %v2005, 7
      %v2007 = vsub.s32 0, %v2006
      %v2008 = vrot.slane %v1933, %v2007
      %v2009 = vlaneseq
      %v2010 = vshrl.u32 %v2009, 7
      %v2011 = vsub.s32 0, %v2010
      %v2012 = vrot.slane %v1934, %v2011
      %v2013 = vlaneseq
      %v2014 = vshrl.u32 %v2013, 7
      %v2015 = vsub.s32 0, %v2014
      %v2016 = vrot.slane %v1935, %v2015
      %v2017 = vlaneseq
      %v2018 = vshrl.u32 %v2017, 7
      %v2019 = vsub.s32 0, %v2018
      %v2020 = vrot.slane %v1936, %v2019
      %v2021 = vlaneseq
      %v2022 = vshrl.u32 %v2021, 7
      %v2023 = vsub.s32 0, %v2022
      %v2024 = vrot.slane %v1937, %v2023
      %v2025 = vlaneseq
      %v2026 = vshrl.u32 %v2025, 7
      %v2027 = vsub.s32 0, %v2026
      %v2028 = vrot.slane %v1938, %v2027
      %v2029 = vlaneseq
      %v2030 = vshrl.u32 %v2029, 7
      %v2031 = vsub.s32 0, %v2030
      %v2032 = vrot.slane %v1939, %v2031
      %v2033 = vlaneseq
      %v2034 = vshrl.u32 %v2033, 7
      %v2035 = vsub.s32 0, %v2034
      %v2036 = vrot.slane %v1940, %v2035
      %v2037 = vlaneseq
      %v2038 = vshrl.u32 %v2037, 7
      %v2039 = vsub.s32 0, %v2038
      %v2040 = vrot.slane %v1941, %v2039
      %v2041 = vlaneseq
      %v2042 = vshrl.u32 %v2041, 7
      %v2043 = vsub.s32 0, %v2042
      %v2044 = vrot.slane %v1942, %v2043
      %v2045 = vlaneseq
      %v2046 = vshrl.u32 %v2045, 7
      %v2047 = vsub.s32 0, %v2046
      %v2048 = vrot.slane %v1943, %v2047
      %v2049 = vlaneseq
      %v2050 = vshrl.u32 %v2049, 7
      %v2051 = vsub.s32 0, %v2050
      %v2052 = vrot.slane %v1944, %v2051
      %v2053 = vlaneseq
      %v2054 = vshrl.u32 %v2053, 7
      %v2055 = vsub.s32 0, %v2054
      %v2056 = vrot.slane %v1945, %v2055
      %v2057 = vlaneseq
      %v2058 = vshrl.u32 %v2057, 7
      %v2059 = vsub.s32 0, %v2058
      %v2060 = vrot.slane %v1946, %v2059
      %v2061 = vlaneseq
      %v2062 = vshrl.u32 %v2061, 7
      %v2063 = vsub.s32 0, %v2062
      %v2064 = vrot.slane %v1947, %v2063
      %v2065 = vlaneseq
      %v2066 = vshrl.u32 %v2065, 7
      %v2067 = vsub.s32 0, %v2066
      %v2068 = vrot.slane %v1948, %v2067
      %2069 = vset.pattern.permute.xlu0 0
      %2070 = vperm.xlu0 %2069, %v1976
      %v2071 = vpop.permute.xlu0 %2070
      %2073 = vset.pattern.permute.xlu0 0
      %2074 = vperm.xlu0 %2073, %v1980
      %v2075 = vpop.permute.xlu0 %2074
      %2077 = vset.pattern.permute.xlu0 0
      %2078 = vperm.xlu0 %2077, %v1984
      %v2079 = vpop.permute.xlu0 %2078
      %2081 = vset.pattern.permute.xlu0 0
      %2082 = vperm.xlu0 %2081, %v1988
      %v2083 = vpop.permute.xlu0 %2082
      %2085 = vset.pattern.permute.xlu0 0
      %2086 = vperm.xlu0 %2085, %v1992
      %v2087 = vpop.permute.xlu0 %2086
      %2089 = vset.pattern.permute.xlu0 0
      %2090 = vperm.xlu0 %2089, %v1996
      %v2091 = vpop.permute.xlu0 %2090
      %2093 = vset.pattern.permute.xlu0 0
      %2094 = vperm.xlu0 %2093, %v2000
      %v2095 = vpop.permute.xlu0 %2094
      %2097 = vset.pattern.permute.xlu0 0
      %2098 = vperm.xlu0 %2097, %v2004
      %v2099 = vpop.permute.xlu0 %2098
      %2101 = vset.pattern.permute.xlu0 0
      %2102 = vperm.xlu0 %2101, %v2008
      %v2103 = vpop.permute.xlu0 %2102
      %2105 = vset.pattern.permute.xlu0 0
      %2106 = vperm.xlu0 %2105, %v2012
      %v2107 = vpop.permute.xlu0 %2106
      %2109 = vset.pattern.permute.xlu0 0
      %2110 = vperm.xlu0 %2109, %v2016
      %v2111 = vpop.permute.xlu0 %2110
      %2113 = vset.pattern.permute.xlu0 0
      %2114 = vperm.xlu0 %2113, %v2020
      %v2115 = vpop.permute.xlu0 %2114
      %2117 = vset.pattern.permute.xlu0 0
      %2118 = vperm.xlu0 %2117, %v2024
      %v2119 = vpop.permute.xlu0 %2118
      %2121 = vset.pattern.permute.xlu0 0
      %2122 = vperm.xlu0 %2121, %v2028
      %v2123 = vpop.permute.xlu0 %2122
      %2125 = vset.pattern.permute.xlu0 0
      %2126 = vperm.xlu0 %2125, %v2032
      %v2127 = vpop.permute.xlu0 %2126
      %2129 = vset.pattern.permute.xlu0 0
      %2130 = vperm.xlu0 %2129, %v2036
      %v2131 = vpop.permute.xlu0 %2130
      %2133 = vset.pattern.permute.xlu0 0
      %2134 = vperm.xlu0 %2133, %v2040
      %v2135 = vpop.permute.xlu0 %2134
      %2137 = vset.pattern.permute.xlu0 0
      %2138 = vperm.xlu0 %2137, %v2044
      %v2139 = vpop.permute.xlu0 %2138
      %2141 = vset.pattern.permute.xlu0 0
      %2142 = vperm.xlu0 %2141, %v2048
      %v2143 = vpop.permute.xlu0 %2142
      %2145 = vset.pattern.permute.xlu0 0
      %2146 = vperm.xlu0 %2145, %v2052
      %v2147 = vpop.permute.xlu0 %2146
      %2149 = vset.pattern.permute.xlu0 0
      %2150 = vperm.xlu0 %2149, %v2056
      %v2151 = vpop.permute.xlu0 %2150
      %2153 = vset.pattern.permute.xlu0 0
      %2154 = vperm.xlu0 %2153, %v2060
      %v2155 = vpop.permute.xlu0 %2154
      %2157 = vset.pattern.permute.xlu0 0
      %2158 = vperm.xlu0 %2157, %v2064
      %v2159 = vpop.permute.xlu0 %2158
      %2161 = vset.pattern.permute.xlu0 0
      %2162 = vperm.xlu0 %2161, %v2068
      %v2163 = vpop.permute.xlu0 %2162
      %v2165 = vmul.f32 %v2071, %v1906
      %v2166 = vmul.f32 %v2075, %v1911
      %v2167 = vmul.f32 %v2079, %v1916
      %v2168 = vmul.f32 %v2083, %v1921
      %v2169 = vmul.f32 %v2087, %v1906
      %v2170 = vmul.f32 %v2091, %v1911
      %v2171 = vmul.f32 %v2095, %v1916
      %v2172 = vmul.f32 %v2099, %v1921
      %v2173 = vmul.f32 %v2103, %v1906
      %v2174 = vmul.f32 %v2107, %v1911
      %v2175 = vmul.f32 %v2111, %v1916
      %v2176 = vmul.f32 %v2115, %v1921
      %v2177 = vmul.f32 %v2119, %v1906
      %v2178 = vmul.f32 %v2123, %v1911
      %v2179 = vmul.f32 %v2127, %v1916
      %v2180 = vmul.f32 %v2131, %v1921
      %v2181 = vmul.f32 %v2135, %v1906
      %v2182 = vmul.f32 %v2139, %v1911
      %v2183 = vmul.f32 %v2143, %v1916
      %v2184 = vmul.f32 %v2147, %v1921
      %v2185 = vmul.f32 %v2151, %v1906
      %v2186 = vmul.f32 %v2155, %v1911
      %v2187 = vmul.f32 %v2159, %v1916
      %v2188 = vmul.f32 %v2163, %v1921
      %v2189 = vsel %vm927, %v2165, 0.0
      %v2190 = vsel %vm927, %v2166, 0.0
      %v2191 = vadd.f32 %v2189, %v2190
      %v2192 = vsel %vm927, %v2167, 0.0
      %v2193 = vadd.f32 %v2191, %v2192
      %v2194 = vsel %vm927, %v2168, 0.0
      %v2195 = vadd.f32 %v2193, %v2194
      %v2196 = vsel %vm927, %v2169, 0.0
      %v2197 = vsel %vm927, %v2170, 0.0
      %v2198 = vadd.f32 %v2196, %v2197
      %v2199 = vsel %vm927, %v2171, 0.0
      %v2200 = vadd.f32 %v2198, %v2199
      %v2201 = vsel %vm927, %v2172, 0.0
      %v2202 = vadd.f32 %v2200, %v2201
      %v2203 = vsel %vm927, %v2173, 0.0
      %v2204 = vsel %vm927, %v2174, 0.0
      %v2205 = vadd.f32 %v2203, %v2204
      %v2206 = vsel %vm927, %v2175, 0.0
      %v2207 = vadd.f32 %v2205, %v2206
      %v2208 = vsel %vm927, %v2176, 0.0
      %v2209 = vadd.f32 %v2207, %v2208
      %v2210 = vsel %vm927, %v2177, 0.0
      %v2211 = vsel %vm927, %v2178, 0.0
      %v2212 = vadd.f32 %v2210, %v2211
      %v2213 = vsel %vm927, %v2179, 0.0
      %v2214 = vadd.f32 %v2212, %v2213
      %v2215 = vsel %vm927, %v2180, 0.0
      %v2216 = vadd.f32 %v2214, %v2215
      %v2217 = vsel %vm927, %v2181, 0.0
      %v2218 = vsel %vm927, %v2182, 0.0
      %v2219 = vadd.f32 %v2217, %v2218
      %v2220 = vsel %vm927, %v2183, 0.0
      %v2221 = vadd.f32 %v2219, %v2220
      %v2222 = vsel %vm927, %v2184, 0.0
      %v2223 = vadd.f32 %v2221, %v2222
      %v2224 = vsel %vm927, %v2185, 0.0
      %v2225 = vsel %vm927, %v2186, 0.0
      %v2226 = vadd.f32 %v2224, %v2225
      %v2227 = vsel %vm927, %v2187, 0.0
      %v2228 = vadd.f32 %v2226, %v2227
      %v2229 = vsel %vm927, %v2188, 0.0
      %v2230 = vadd.f32 %v2228, %v2229
      %v2231 = vadd.f32 %v1833, %v2195
      %v2232 = vadd.f32 %v1834, %v2202
      %v2233 = vadd.f32 %v1835, %v2209
      %v2234 = vadd.f32 %v1836, %v2216
      %v2235 = vadd.f32 %v1837, %v2223
      %v2236 = vadd.f32 %v1838, %v2230
      %v2237 = vld [vmem:[%s427] sm:$0xf]
      %v2238 = vld [vmem:[%s427 + $0x4] sm:$0xf]
      %v2239 = vld [vmem:[%s427 + $0x8] sm:$0xf]
      %v2240 = vld [vmem:[%s427 + $0xc] sm:$0xf]
      %v2241 = vld [vmem:[%s427 + $0x10] sm:$0xf]
      %v2242 = vld [vmem:[%s427 + $0x14] sm:$0xf]
      %v2243 = vld [vmem:[%s427 + $0x18] sm:$0xf]
      %v2244 = vld [vmem:[%s427 + $0x1c] sm:$0xf]
      %v2245 = vld [vmem:[%s4] sm:$0x1]
      %v2246 = vld [vmem:[%s4 + $0x1] sm:$0x1]
      %v2247 = vld [vmem:[%s4 + $0x2] sm:$0x1]
      %v2248 = vld [vmem:[%s4 + $0x3] sm:$0x1]
      %v2249 = vld [vmem:[%s4 + $0x4] sm:$0x1]
      %v2250 = vld [vmem:[%s4 + $0x5] sm:$0x1]
      %v2251 = vld [vmem:[%s4 + $0x6] sm:$0x1]
      %v2252 = vld [vmem:[%s4 + $0x7] sm:$0x1]
      %v2253 = vld [vmem:[%s4 + $0x8] sm:$0x1]
      %v2254 = vld [vmem:[%s4 + $0x9] sm:$0x1]
      %v2255 = vld [vmem:[%s4 + $0xa] sm:$0x1]
      %v2256 = vld [vmem:[%s4 + $0xb] sm:$0x1]
      %v2257 = vld [vmem:[%s4 + $0xc] sm:$0x1]
      %v2258 = vld [vmem:[%s4 + $0xd] sm:$0x1]
      %v2259 = vld [vmem:[%s4 + $0xe] sm:$0x1]
      %v2260 = vld [vmem:[%s4 + $0xf] sm:$0x1]
      %v2261 = vld [vmem:[%s4 + $0x10] sm:$0x1]
      %v2262 = vld [vmem:[%s4 + $0x11] sm:$0x1]
      %v2263 = vld [vmem:[%s4 + $0x12] sm:$0x1]
      %v2264 = vld [vmem:[%s4 + $0x13] sm:$0x1]
      %v2265 = vld [vmem:[%s4 + $0x14] sm:$0x1]
      %v2266 = vld [vmem:[%s4 + $0x15] sm:$0x1]
      %v2267 = vld [vmem:[%s4 + $0x16] sm:$0x1]
      %v2268 = vld [vmem:[%s4 + $0x17] sm:$0x1]
      %v2269 = vld [vmem:[%s4 + $0x18] sm:$0x1]
      %v2270 = vld [vmem:[%s4 + $0x19] sm:$0x1]
      %v2271 = vld [vmem:[%s4 + $0x1a] sm:$0x1]
      %v2272 = vld [vmem:[%s4 + $0x1b] sm:$0x1]
      %v2273 = vld [vmem:[%s4 + $0x1c] sm:$0x1]
      %v2274 = vld [vmem:[%s4 + $0x1d] sm:$0x1]
      %v2275 = vld [vmem:[%s4 + $0x1e] sm:$0x1]
      %v2276 = vld [vmem:[%s4 + $0x1f] sm:$0x1]
      %v2277 = vld [vmem:[%s4 + $0x20] sm:$0x1]
      %v2278 = vld [vmem:[%s4 + $0x21] sm:$0x1]
      %v2279 = vld [vmem:[%s4 + $0x22] sm:$0x1]
      %v2280 = vld [vmem:[%s4 + $0x23] sm:$0x1]
      %v2281 = vld [vmem:[%s4 + $0x24] sm:$0x1]
      %v2282 = vld [vmem:[%s4 + $0x25] sm:$0x1]
      %v2283 = vld [vmem:[%s4 + $0x26] sm:$0x1]
      %v2284 = vld [vmem:[%s4 + $0x27] sm:$0x1]
      %v2285 = vld [vmem:[%s4 + $0x28] sm:$0x1]
      %v2286 = vld [vmem:[%s4 + $0x29] sm:$0x1]
      %v2287 = vld [vmem:[%s4 + $0x2a] sm:$0x1]
      %v2288 = vld [vmem:[%s4 + $0x2b] sm:$0x1]
      %v2289 = vld [vmem:[%s4 + $0x2c] sm:$0x1]
      %v2290 = vld [vmem:[%s4 + $0x2d] sm:$0x1]
      %v2291 = vld [vmem:[%s4 + $0x2e] sm:$0x1]
      %v2292 = vld [vmem:[%s4 + $0x2f] sm:$0x1]
      %v2341 = vlaneseq
      %v2342 = vshrl.u32 %v2341, 7
      %v2343 = vsub.s32 0, %v2342
      %v2344 = vrot.slane %v2245, %v2343
      %v2345 = vlaneseq
      %v2346 = vshrl.u32 %v2345, 7
      %v2347 = vsub.s32 0, %v2346
      %v2348 = vrot.slane %v2246, %v2347
      %v2349 = vlaneseq
      %v2350 = vshrl.u32 %v2349, 7
      %v2351 = vsub.s32 0, %v2350
      %v2352 = vrot.slane %v2247, %v2351
      %v2353 = vlaneseq
      %v2354 = vshrl.u32 %v2353, 7
      %v2355 = vsub.s32 0, %v2354
      %v2356 = vrot.slane %v2248, %v2355
      %v2357 = vlaneseq
      %v2358 = vshrl.u32 %v2357, 7
      %v2359 = vsub.s32 0, %v2358
      %v2360 = vrot.slane %v2249, %v2359
      %v2361 = vlaneseq
      %v2362 = vshrl.u32 %v2361, 7
      %v2363 = vsub.s32 0, %v2362
      %v2364 = vrot.slane %v2250, %v2363
      %v2365 = vlaneseq
      %v2366 = vshrl.u32 %v2365, 7
      %v2367 = vsub.s32 0, %v2366
      %v2368 = vrot.slane %v2251, %v2367
      %v2369 = vlaneseq
      %v2370 = vshrl.u32 %v2369, 7
      %v2371 = vsub.s32 0, %v2370
      %v2372 = vrot.slane %v2252, %v2371
      %v2373 = vlaneseq
      %v2374 = vshrl.u32 %v2373, 7
      %v2375 = vsub.s32 0, %v2374
      %v2376 = vrot.slane %v2253, %v2375
      %v2377 = vlaneseq
      %v2378 = vshrl.u32 %v2377, 7
      %v2379 = vsub.s32 0, %v2378
      %v2380 = vrot.slane %v2254, %v2379
      %v2381 = vlaneseq
      %v2382 = vshrl.u32 %v2381, 7
      %v2383 = vsub.s32 0, %v2382
      %v2384 = vrot.slane %v2255, %v2383
      %v2385 = vlaneseq
      %v2386 = vshrl.u32 %v2385, 7
      %v2387 = vsub.s32 0, %v2386
      %v2388 = vrot.slane %v2256, %v2387
      %v2389 = vlaneseq
      %v2390 = vshrl.u32 %v2389, 7
      %v2391 = vsub.s32 0, %v2390
      %v2392 = vrot.slane %v2257, %v2391
      %v2393 = vlaneseq
      %v2394 = vshrl.u32 %v2393, 7
      %v2395 = vsub.s32 0, %v2394
      %v2396 = vrot.slane %v2258, %v2395
      %v2397 = vlaneseq
      %v2398 = vshrl.u32 %v2397, 7
      %v2399 = vsub.s32 0, %v2398
      %v2400 = vrot.slane %v2259, %v2399
      %v2401 = vlaneseq
      %v2402 = vshrl.u32 %v2401, 7
      %v2403 = vsub.s32 0, %v2402
      %v2404 = vrot.slane %v2260, %v2403
      %v2405 = vlaneseq
      %v2406 = vshrl.u32 %v2405, 7
      %v2407 = vsub.s32 0, %v2406
      %v2408 = vrot.slane %v2261, %v2407
      %v2409 = vlaneseq
      %v2410 = vshrl.u32 %v2409, 7
      %v2411 = vsub.s32 0, %v2410
      %v2412 = vrot.slane %v2262, %v2411
      %v2413 = vlaneseq
      %v2414 = vshrl.u32 %v2413, 7
      %v2415 = vsub.s32 0, %v2414
      %v2416 = vrot.slane %v2263, %v2415
      %v2417 = vlaneseq
      %v2418 = vshrl.u32 %v2417, 7
      %v2419 = vsub.s32 0, %v2418
      %v2420 = vrot.slane %v2264, %v2419
      %v2421 = vlaneseq
      %v2422 = vshrl.u32 %v2421, 7
      %v2423 = vsub.s32 0, %v2422
      %v2424 = vrot.slane %v2265, %v2423
      %v2425 = vlaneseq
      %v2426 = vshrl.u32 %v2425, 7
      %v2427 = vsub.s32 0, %v2426
      %v2428 = vrot.slane %v2266, %v2427
      %v2429 = vlaneseq
      %v2430 = vshrl.u32 %v2429, 7
      %v2431 = vsub.s32 0, %v2430
      %v2432 = vrot.slane %v2267, %v2431
      %v2433 = vlaneseq
      %v2434 = vshrl.u32 %v2433, 7
      %v2435 = vsub.s32 0, %v2434
      %v2436 = vrot.slane %v2268, %v2435
      %v2437 = vlaneseq
      %v2438 = vshrl.u32 %v2437, 7
      %v2439 = vsub.s32 0, %v2438
      %v2440 = vrot.slane %v2269, %v2439
      %v2441 = vlaneseq
      %v2442 = vshrl.u32 %v2441, 7
      %v2443 = vsub.s32 0, %v2442
      %v2444 = vrot.slane %v2270, %v2443
      %v2445 = vlaneseq
      %v2446 = vshrl.u32 %v2445, 7
      %v2447 = vsub.s32 0, %v2446
      %v2448 = vrot.slane %v2271, %v2447
      %v2449 = vlaneseq
      %v2450 = vshrl.u32 %v2449, 7
      %v2451 = vsub.s32 0, %v2450
      %v2452 = vrot.slane %v2272, %v2451
      %v2453 = vlaneseq
      %v2454 = vshrl.u32 %v2453, 7
      %v2455 = vsub.s32 0, %v2454
      %v2456 = vrot.slane %v2273, %v2455
      %v2457 = vlaneseq
      %v2458 = vshrl.u32 %v2457, 7
      %v2459 = vsub.s32 0, %v2458
      %v2460 = vrot.slane %v2274, %v2459
      %v2461 = vlaneseq
      %v2462 = vshrl.u32 %v2461, 7
      %v2463 = vsub.s32 0, %v2462
      %v2464 = vrot.slane %v2275, %v2463
      %v2465 = vlaneseq
      %v2466 = vshrl.u32 %v2465, 7
      %v2467 = vsub.s32 0, %v2466
      %v2468 = vrot.slane %v2276, %v2467
      %v2469 = vlaneseq
      %v2470 = vshrl.u32 %v2469, 7
      %v2471 = vsub.s32 0, %v2470
      %v2472 = vrot.slane %v2277, %v2471
      %v2473 = vlaneseq
      %v2474 = vshrl.u32 %v2473, 7
      %v2475 = vsub.s32 0, %v2474
      %v2476 = vrot.slane %v2278, %v2475
      %v2477 = vlaneseq
      %v2478 = vshrl.u32 %v2477, 7
      %v2479 = vsub.s32 0, %v2478
      %v2480 = vrot.slane %v2279, %v2479
      %v2481 = vlaneseq
      %v2482 = vshrl.u32 %v2481, 7
      %v2483 = vsub.s32 0, %v2482
      %v2484 = vrot.slane %v2280, %v2483
      %v2485 = vlaneseq
      %v2486 = vshrl.u32 %v2485, 7
      %v2487 = vsub.s32 0, %v2486
      %v2488 = vrot.slane %v2281, %v2487
      %v2489 = vlaneseq
      %v2490 = vshrl.u32 %v2489, 7
      %v2491 = vsub.s32 0, %v2490
      %v2492 = vrot.slane %v2282, %v2491
      %v2493 = vlaneseq
      %v2494 = vshrl.u32 %v2493, 7
      %v2495 = vsub.s32 0, %v2494
      %v2496 = vrot.slane %v2283, %v2495
      %v2497 = vlaneseq
      %v2498 = vshrl.u32 %v2497, 7
      %v2499 = vsub.s32 0, %v2498
      %v2500 = vrot.slane %v2284, %v2499
      %v2501 = vlaneseq
      %v2502 = vshrl.u32 %v2501, 7
      %v2503 = vsub.s32 0, %v2502
      %v2504 = vrot.slane %v2285, %v2503
      %v2505 = vlaneseq
      %v2506 = vshrl.u32 %v2505, 7
      %v2507 = vsub.s32 0, %v2506
      %v2508 = vrot.slane %v2286, %v2507
      %v2509 = vlaneseq
      %v2510 = vshrl.u32 %v2509, 7
      %v2511 = vsub.s32 0, %v2510
      %v2512 = vrot.slane %v2287, %v2511
      %v2513 = vlaneseq
      %v2514 = vshrl.u32 %v2513, 7
      %v2515 = vsub.s32 0, %v2514
      %v2516 = vrot.slane %v2288, %v2515
      %v2517 = vlaneseq
      %v2518 = vshrl.u32 %v2517, 7
      %v2519 = vsub.s32 0, %v2518
      %v2520 = vrot.slane %v2289, %v2519
      %v2521 = vlaneseq
      %v2522 = vshrl.u32 %v2521, 7
      %v2523 = vsub.s32 0, %v2522
      %v2524 = vrot.slane %v2290, %v2523
      %v2525 = vlaneseq
      %v2526 = vshrl.u32 %v2525, 7
      %v2527 = vsub.s32 0, %v2526
      %v2528 = vrot.slane %v2291, %v2527
      %v2529 = vlaneseq
      %v2530 = vshrl.u32 %v2529, 7
      %v2531 = vsub.s32 0, %v2530
      %v2532 = vrot.slane %v2292, %v2531
      %2533 = vset.pattern.permute.xlu0 0
      %2534 = vperm.xlu0 %2533, %v2344
      %v2535 = vpop.permute.xlu0 %2534
      %2537 = vset.pattern.permute.xlu0 0
      %2538 = vperm.xlu0 %2537, %v2348
      %v2539 = vpop.permute.xlu0 %2538
      %2541 = vset.pattern.permute.xlu0 0
      %2542 = vperm.xlu0 %2541, %v2352
      %v2543 = vpop.permute.xlu0 %2542
      %2545 = vset.pattern.permute.xlu0 0
      %2546 = vperm.xlu0 %2545, %v2356
      %v2547 = vpop.permute.xlu0 %2546
      %2549 = vset.pattern.permute.xlu0 0
      %2550 = vperm.xlu0 %2549, %v2360
      %v2551 = vpop.permute.xlu0 %2550
      %2553 = vset.pattern.permute.xlu0 0
      %2554 = vperm.xlu0 %2553, %v2364
      %v2555 = vpop.permute.xlu0 %2554
      %2557 = vset.pattern.permute.xlu0 0
      %2558 = vperm.xlu0 %2557, %v2368
      %v2559 = vpop.permute.xlu0 %2558
      %2561 = vset.pattern.permute.xlu0 0
      %2562 = vperm.xlu0 %2561, %v2372
      %v2563 = vpop.permute.xlu0 %2562
      %2565 = vset.pattern.permute.xlu0 0
      %2566 = vperm.xlu0 %2565, %v2376
      %v2567 = vpop.permute.xlu0 %2566
      %2569 = vset.pattern.permute.xlu0 0
      %2570 = vperm.xlu0 %2569, %v2380
      %v2571 = vpop.permute.xlu0 %2570
      %2573 = vset.pattern.permute.xlu0 0
      %2574 = vperm.xlu0 %2573, %v2384
      %v2575 = vpop.permute.xlu0 %2574
      %2577 = vset.pattern.permute.xlu0 0
      %2578 = vperm.xlu0 %2577, %v2388
      %v2579 = vpop.permute.xlu0 %2578
      %2581 = vset.pattern.permute.xlu0 0
      %2582 = vperm.xlu0 %2581, %v2392
      %v2583 = vpop.permute.xlu0 %2582
      %2585 = vset.pattern.permute.xlu0 0
      %2586 = vperm.xlu0 %2585, %v2396
      %v2587 = vpop.permute.xlu0 %2586
      %2589 = vset.pattern.permute.xlu0 0
      %2590 = vperm.xlu0 %2589, %v2400
      %v2591 = vpop.permute.xlu0 %2590
      %2593 = vset.pattern.permute.xlu0 0
      %2594 = vperm.xlu0 %2593, %v2404
      %v2595 = vpop.permute.xlu0 %2594
      %2597 = vset.pattern.permute.xlu0 0
      %2598 = vperm.xlu0 %2597, %v2408
      %v2599 = vpop.permute.xlu0 %2598
      %2601 = vset.pattern.permute.xlu0 0
      %2602 = vperm.xlu0 %2601, %v2412
      %v2603 = vpop.permute.xlu0 %2602
      %2605 = vset.pattern.permute.xlu0 0
      %2606 = vperm.xlu0 %2605, %v2416
      %v2607 = vpop.permute.xlu0 %2606
      %2609 = vset.pattern.permute.xlu0 0
      %2610 = vperm.xlu0 %2609, %v2420
      %v2611 = vpop.permute.xlu0 %2610
      %2613 = vset.pattern.permute.xlu0 0
      %2614 = vperm.xlu0 %2613, %v2424
      %v2615 = vpop.permute.xlu0 %2614
      %2617 = vset.pattern.permute.xlu0 0
      %2618 = vperm.xlu0 %2617, %v2428
      %v2619 = vpop.permute.xlu0 %2618
      %2621 = vset.pattern.permute.xlu0 0
      %2622 = vperm.xlu0 %2621, %v2432
      %v2623 = vpop.permute.xlu0 %2622
      %2625 = vset.pattern.permute.xlu0 0
      %2626 = vperm.xlu0 %2625, %v2436
      %v2627 = vpop.permute.xlu0 %2626
      %2629 = vset.pattern.permute.xlu0 0
      %2630 = vperm.xlu0 %2629, %v2440
      %v2631 = vpop.permute.xlu0 %2630
      %2633 = vset.pattern.permute.xlu0 0
      %2634 = vperm.xlu0 %2633, %v2444
      %v2635 = vpop.permute.xlu0 %2634
      %2637 = vset.pattern.permute.xlu0 0
      %2638 = vperm.xlu0 %2637, %v2448
      %v2639 = vpop.permute.xlu0 %2638
      %2641 = vset.pattern.permute.xlu0 0
      %2642 = vperm.xlu0 %2641, %v2452
      %v2643 = vpop.permute.xlu0 %2642
      %2645 = vset.pattern.permute.xlu0 0
      %2646 = vperm.xlu0 %2645, %v2456
      %v2647 = vpop.permute.xlu0 %2646
      %2649 = vset.pattern.permute.xlu0 0
      %2650 = vperm.xlu0 %2649, %v2460
      %v2651 = vpop.permute.xlu0 %2650
      %2653 = vset.pattern.permute.xlu0 0
      %2654 = vperm.xlu0 %2653, %v2464
      %v2655 = vpop.permute.xlu0 %2654
      %2657 = vset.pattern.permute.xlu0 0
      %2658 = vperm.xlu0 %2657, %v2468
      %v2659 = vpop.permute.xlu0 %2658
      %2661 = vset.pattern.permute.xlu0 0
      %2662 = vperm.xlu0 %2661, %v2472
      %v2663 = vpop.permute.xlu0 %2662
      %2665 = vset.pattern.permute.xlu0 0
      %2666 = vperm.xlu0 %2665, %v2476
      %v2667 = vpop.permute.xlu0 %2666
      %2669 = vset.pattern.permute.xlu0 0
      %2670 = vperm.xlu0 %2669, %v2480
      %v2671 = vpop.permute.xlu0 %2670
      %2673 = vset.pattern.permute.xlu0 0
      %2674 = vperm.xlu0 %2673, %v2484
      %v2675 = vpop.permute.xlu0 %2674
      %2677 = vset.pattern.permute.xlu0 0
      %2678 = vperm.xlu0 %2677, %v2488
      %v2679 = vpop.permute.xlu0 %2678
      %2681 = vset.pattern.permute.xlu0 0
      %2682 = vperm.xlu0 %2681, %v2492
      %v2683 = vpop.permute.xlu0 %2682
      %2685 = vset.pattern.permute.xlu0 0
      %2686 = vperm.xlu0 %2685, %v2496
      %v2687 = vpop.permute.xlu0 %2686
      %2689 = vset.pattern.permute.xlu0 0
      %2690 = vperm.xlu0 %2689, %v2500
      %v2691 = vpop.permute.xlu0 %2690
      %2693 = vset.pattern.permute.xlu0 0
      %2694 = vperm.xlu0 %2693, %v2504
      %v2695 = vpop.permute.xlu0 %2694
      %2697 = vset.pattern.permute.xlu0 0
      %2698 = vperm.xlu0 %2697, %v2508
      %v2699 = vpop.permute.xlu0 %2698
      %2701 = vset.pattern.permute.xlu0 0
      %2702 = vperm.xlu0 %2701, %v2512
      %v2703 = vpop.permute.xlu0 %2702
      %2705 = vset.pattern.permute.xlu0 0
      %2706 = vperm.xlu0 %2705, %v2516
      %v2707 = vpop.permute.xlu0 %2706
      %2709 = vset.pattern.permute.xlu0 0
      %2710 = vperm.xlu0 %2709, %v2520
      %v2711 = vpop.permute.xlu0 %2710
      %2713 = vset.pattern.permute.xlu0 0
      %2714 = vperm.xlu0 %2713, %v2524
      %v2715 = vpop.permute.xlu0 %2714
      %2717 = vset.pattern.permute.xlu0 0
      %2718 = vperm.xlu0 %2717, %v2528
      %v2719 = vpop.permute.xlu0 %2718
      %2721 = vset.pattern.permute.xlu0 0
      %2722 = vperm.xlu0 %2721, %v2532
      %v2723 = vpop.permute.xlu0 %2722
      %v2725 = vmul.f32 %v2535, %v2237
      %v2726 = vmul.f32 %v2539, %v2238
      %v2727 = vmul.f32 %v2543, %v2239
      %v2728 = vmul.f32 %v2547, %v2240
      %v2729 = vmul.f32 %v2551, %v2241
      %v2730 = vmul.f32 %v2555, %v2242
      %v2731 = vmul.f32 %v2559, %v2243
      %v2732 = vmul.f32 %v2563, %v2244
      %v2733 = vmul.f32 %v2567, %v2237
      %v2734 = vmul.f32 %v2571, %v2238
      %v2735 = vmul.f32 %v2575, %v2239
      %v2736 = vmul.f32 %v2579, %v2240
      %v2737 = vmul.f32 %v2583, %v2241
      %v2738 = vmul.f32 %v2587, %v2242
      %v2739 = vmul.f32 %v2591, %v2243
      %v2740 = vmul.f32 %v2595, %v2244
      %v2741 = vmul.f32 %v2599, %v2237
      %v2742 = vmul.f32 %v2603, %v2238
      %v2743 = vmul.f32 %v2607, %v2239
      %v2744 = vmul.f32 %v2611, %v2240
      %v2745 = vmul.f32 %v2615, %v2241
      %v2746 = vmul.f32 %v2619, %v2242
      %v2747 = vmul.f32 %v2623, %v2243
      %v2748 = vmul.f32 %v2627, %v2244
      %v2749 = vmul.f32 %v2631, %v2237
      %v2750 = vmul.f32 %v2635, %v2238
      %v2751 = vmul.f32 %v2639, %v2239
      %v2752 = vmul.f32 %v2643, %v2240
      %v2753 = vmul.f32 %v2647, %v2241
      %v2754 = vmul.f32 %v2651, %v2242
      %v2755 = vmul.f32 %v2655, %v2243
      %v2756 = vmul.f32 %v2659, %v2244
      %v2757 = vmul.f32 %v2663, %v2237
      %v2758 = vmul.f32 %v2667, %v2238
      %v2759 = vmul.f32 %v2671, %v2239
      %v2760 = vmul.f32 %v2675, %v2240
      %v2761 = vmul.f32 %v2679, %v2241
      %v2762 = vmul.f32 %v2683, %v2242
      %v2763 = vmul.f32 %v2687, %v2243
      %v2764 = vmul.f32 %v2691, %v2244
      %v2765 = vmul.f32 %v2695, %v2237
      %v2766 = vmul.f32 %v2699, %v2238
      %v2767 = vmul.f32 %v2703, %v2239
      %v2768 = vmul.f32 %v2707, %v2240
      %v2769 = vmul.f32 %v2711, %v2241
      %v2770 = vmul.f32 %v2715, %v2242
      %v2771 = vmul.f32 %v2719, %v2243
      %v2772 = vmul.f32 %v2723, %v2244
      %vm2773 = vcmask 27648
      %v2774 = vsel %vm2773, %v2725, 0.0
      %v2775 = vsel %vm2773, %v2726, 0.0
      %v2776 = vadd.f32 %v2774, %v2775
      %v2777 = vsel %vm2773, %v2727, 0.0
      %v2778 = vadd.f32 %v2776, %v2777
      %v2779 = vsel %vm2773, %v2728, 0.0
      %v2780 = vadd.f32 %v2778, %v2779
      %v2781 = vsel %vm2773, %v2729, 0.0
      %v2782 = vadd.f32 %v2780, %v2781
      %v2783 = vsel %vm2773, %v2730, 0.0
      %v2784 = vadd.f32 %v2782, %v2783
      %v2785 = vsel %vm2773, %v2731, 0.0
      %v2786 = vadd.f32 %v2784, %v2785
      %v2787 = vsel %vm2773, %v2732, 0.0
      %v2788 = vadd.f32 %v2786, %v2787
      %v2789 = vsel %vm2773, %v2733, 0.0
      %v2790 = vsel %vm2773, %v2734, 0.0
      %v2791 = vadd.f32 %v2789, %v2790
      %v2792 = vsel %vm2773, %v2735, 0.0
      %v2793 = vadd.f32 %v2791, %v2792
      %v2794 = vsel %vm2773, %v2736, 0.0
      %v2795 = vadd.f32 %v2793, %v2794
      %v2796 = vsel %vm2773, %v2737, 0.0
      %v2797 = vadd.f32 %v2795, %v2796
      %v2798 = vsel %vm2773, %v2738, 0.0
      %v2799 = vadd.f32 %v2797, %v2798
      %v2800 = vsel %vm2773, %v2739, 0.0
      %v2801 = vadd.f32 %v2799, %v2800
      %v2802 = vsel %vm2773, %v2740, 0.0
      %v2803 = vadd.f32 %v2801, %v2802
      %v2804 = vsel %vm2773, %v2741, 0.0
      %v2805 = vsel %vm2773, %v2742, 0.0
      %v2806 = vadd.f32 %v2804, %v2805
      %v2807 = vsel %vm2773, %v2743, 0.0
      %v2808 = vadd.f32 %v2806, %v2807
      %v2809 = vsel %vm2773, %v2744, 0.0
      %v2810 = vadd.f32 %v2808, %v2809
      %v2811 = vsel %vm2773, %v2745, 0.0
      %v2812 = vadd.f32 %v2810, %v2811
      %v2813 = vsel %vm2773, %v2746, 0.0
      %v2814 = vadd.f32 %v2812, %v2813
      %v2815 = vsel %vm2773, %v2747, 0.0
      %v2816 = vadd.f32 %v2814, %v2815
      %v2817 = vsel %vm2773, %v2748, 0.0
      %v2818 = vadd.f32 %v2816, %v2817
      %v2819 = vsel %vm2773, %v2749, 0.0
      %v2820 = vsel %vm2773, %v2750, 0.0
      %v2821 = vadd.f32 %v2819, %v2820
      %v2822 = vsel %vm2773, %v2751, 0.0
      %v2823 = vadd.f32 %v2821, %v2822
      %v2824 = vsel %vm2773, %v2752, 0.0
      %v2825 = vadd.f32 %v2823, %v2824
      %v2826 = vsel %vm2773, %v2753, 0.0
      %v2827 = vadd.f32 %v2825, %v2826
      %v2828 = vsel %vm2773, %v2754, 0.0
      %v2829 = vadd.f32 %v2827, %v2828
      %v2830 = vsel %vm2773, %v2755, 0.0
      %v2831 = vadd.f32 %v2829, %v2830
      %v2832 = vsel %vm2773, %v2756, 0.0
      %v2833 = vadd.f32 %v2831, %v2832
      %v2834 = vsel %vm2773, %v2757, 0.0
      %v2835 = vsel %vm2773, %v2758, 0.0
      %v2836 = vadd.f32 %v2834, %v2835
      %v2837 = vsel %vm2773, %v2759, 0.0
      %v2838 = vadd.f32 %v2836, %v2837
      %v2839 = vsel %vm2773, %v2760, 0.0
      %v2840 = vadd.f32 %v2838, %v2839
      %v2841 = vsel %vm2773, %v2761, 0.0
      %v2842 = vadd.f32 %v2840, %v2841
      %v2843 = vsel %vm2773, %v2762, 0.0
      %v2844 = vadd.f32 %v2842, %v2843
      %v2845 = vsel %vm2773, %v2763, 0.0
      %v2846 = vadd.f32 %v2844, %v2845
      %v2847 = vsel %vm2773, %v2764, 0.0
      %v2848 = vadd.f32 %v2846, %v2847
      %v2849 = vsel %vm2773, %v2765, 0.0
      %v2850 = vsel %vm2773, %v2766, 0.0
      %v2851 = vadd.f32 %v2849, %v2850
      %v2852 = vsel %vm2773, %v2767, 0.0
      %v2853 = vadd.f32 %v2851, %v2852
      %v2854 = vsel %vm2773, %v2768, 0.0
      %v2855 = vadd.f32 %v2853, %v2854
      %v2856 = vsel %vm2773, %v2769, 0.0
      %v2857 = vadd.f32 %v2855, %v2856
      %v2858 = vsel %vm2773, %v2770, 0.0
      %v2859 = vadd.f32 %v2857, %v2858
      %v2860 = vsel %vm2773, %v2771, 0.0
      %v2861 = vadd.f32 %v2859, %v2860
      %v2862 = vsel %vm2773, %v2772, 0.0
      %v2863 = vadd.f32 %v2861, %v2862
      %v2864 = vld [vmem:[%s5] sm:$0x1]
      %v2865 = vld [vmem:[%s5 + $0x1] sm:$0x1]
      %v2866 = vld [vmem:[%s5 + $0x2] sm:$0x1]
      %v2867 = vld [vmem:[%s5 + $0x3] sm:$0x1]
      %v2868 = vld [vmem:[%s5 + $0x4] sm:$0x1]
      %v2869 = vld [vmem:[%s5 + $0x5] sm:$0x1]
      %v2876 = vlaneseq
      %v2877 = vshrl.u32 %v2876, 7
      %v2878 = vsub.s32 0, %v2877
      %v2879 = vrot.slane %v2864, %v2878
      %v2880 = vlaneseq
      %v2881 = vshrl.u32 %v2880, 7
      %v2882 = vsub.s32 0, %v2881
      %v2883 = vrot.slane %v2865, %v2882
      %v2884 = vlaneseq
      %v2885 = vshrl.u32 %v2884, 7
      %v2886 = vsub.s32 0, %v2885
      %v2887 = vrot.slane %v2866, %v2886
      %v2888 = vlaneseq
      %v2889 = vshrl.u32 %v2888, 7
      %v2890 = vsub.s32 0, %v2889
      %v2891 = vrot.slane %v2867, %v2890
      %v2892 = vlaneseq
      %v2893 = vshrl.u32 %v2892, 7
      %v2894 = vsub.s32 0, %v2893
      %v2895 = vrot.slane %v2868, %v2894
      %v2896 = vlaneseq
      %v2897 = vshrl.u32 %v2896, 7
      %v2898 = vsub.s32 0, %v2897
      %v2899 = vrot.slane %v2869, %v2898
      %2900 = vset.pattern.permute.xlu0 0
      %2901 = vperm.xlu0 %2900, %v2879
      %v2902 = vpop.permute.xlu0 %2901
      %2904 = vset.pattern.permute.xlu0 0
      %2905 = vperm.xlu0 %2904, %v2883
      %v2906 = vpop.permute.xlu0 %2905
      %2908 = vset.pattern.permute.xlu0 0
      %2909 = vperm.xlu0 %2908, %v2887
      %v2910 = vpop.permute.xlu0 %2909
      %2912 = vset.pattern.permute.xlu0 0
      %2913 = vperm.xlu0 %2912, %v2891
      %v2914 = vpop.permute.xlu0 %2913
      %2916 = vset.pattern.permute.xlu0 0
      %2917 = vperm.xlu0 %2916, %v2895
      %v2918 = vpop.permute.xlu0 %2917
      %2920 = vset.pattern.permute.xlu0 0
      %2921 = vperm.xlu0 %2920, %v2899
      %v2922 = vpop.permute.xlu0 %2921
      %v2924 = vadd.f32 %v2788, %v2902
      %v2925 = vadd.f32 %v2803, %v2906
      %v2926 = vadd.f32 %v2818, %v2910
      %v2927 = vadd.f32 %v2833, %v2914
      %v2928 = vadd.f32 %v2848, %v2918
      %v2929 = vadd.f32 %v2863, %v2922
      %v2930 = vld [vmem:[%s432] sm:$0xff]
      %v2931 = vld [vmem:[%s7] sm:$0xf]
      %vm2932 = vcmask 31744
      %v2934 = vsel %vm2932, %v2930, 0
      %vm2936 = vcmask 1043456
      %v2938 = vsel %vm2936, %v2924, 0
      %2940 = vmatprep.subr.mxu0 0.0
      %2941 = vmatpush1.msra.mxu0 %v2938
      %2942 = vmatprep.subr.mxu0 0.0
      %2943 = vmatpush1.msra.mxu0 0.0
      %2944 = vmatprep.subr.mxu0 0.0
      %2945 = vmatpush1.msra.mxu0 0.0
      %2946 = vmatprep.subr.mxu0 0.0
      %2947 = vmatpush1.msra.mxu0 0.0
      %2948 = vmatprep.subr.mxu0 0.0
      %2949 = vmatpush1.msra.mxu0 0.0
      %2950 = vmatprep.subr.mxu0 0.0
      %2951 = vmatpush1.msra.mxu0 0.0
      %2952 = vmatprep.subr.mxu0 0.0
      %2953 = vmatpush1.msra.mxu0 0.0
      %2954 = vmatprep.subr.mxu0 0.0
      %2955 = vmatpush1.msra.mxu0 0.0
      %2956 = vmatprep.subr.mxu0 0.0
      %2957 = vmatpush1.msra.mxu0 0.0
      %2958 = vmatprep.subr.mxu0 0.0
      %2959 = vmatpush1.msra.mxu0 0.0
      %2960 = vmatprep.subr.mxu0 0.0
      %2961 = vmatpush1.msra.mxu0 0.0
      %2962 = vmatprep.subr.mxu0 0.0
      %2963 = vmatpush1.msra.mxu0 0.0
      %2964 = vmatprep.subr.mxu0 0.0
      %2965 = vmatpush1.msra.mxu0 0.0
      %2966 = vmatprep.subr.mxu0 0.0
      %2967 = vmatpush1.msra.mxu0 0.0
      %2968 = vmatprep.subr.mxu0 0.0
      %2969 = vmatpush1.msra.mxu0 0.0
      %2970 = vmatprep.subr.mxu0 0.0
      %2971 = vmatpush1.msra.mxu0 0.0
      %2972 = vmatprep.subr.mxu0 0.0
      %2973 = vmatpush1.msra.mxu0 0.0
      %2974 = vmatprep.subr.mxu0 0.0
      %2975 = vmatpush1.msra.mxu0 0.0
      %2976 = vmatprep.subr.mxu0 0.0
      %2977 = vmatpush1.msra.mxu0 0.0
      %2978 = vmatprep.subr.mxu0 0.0
      %2979 = vmatpush1.msra.mxu0 0.0
      %2980 = vmatprep.subr.mxu0 0.0
      %2981 = vmatpush1.msra.mxu0 0.0
      %2982 = vmatprep.subr.mxu0 0.0
      %2983 = vmatpush1.msra.mxu0 0.0
      %2984 = vmatprep.subr.mxu0 0.0
      %2985 = vmatpush1.msra.mxu0 0.0
      %2986 = vmatprep.subr.mxu0 0.0
      %2987 = vmatpush1.msra.mxu0 0.0
      %2988 = vmatprep.subr.mxu0 0.0
      %2989 = vmatpush1.msra.mxu0 0.0
      %2990 = vmatprep.subr.mxu0 0.0
      %2991 = vmatpush1.msra.mxu0 0.0
      %2992 = vmatprep.subr.mxu0 0.0
      %2993 = vmatpush1.msra.mxu0 0.0
      %2994 = vmatprep.subr.mxu0 0.0
      %2995 = vmatpush1.msra.mxu0 0.0
      %2996 = vmatprep.subr.mxu0 0.0
      %2997 = vmatpush1.msra.mxu0 0.0
      %2998 = vmatprep.subr.mxu0 0.0
      %2999 = vmatpush1.msra.mxu0 0.0
      %3000 = vmatprep.subr.mxu0 0.0
      %3001 = vmatpush1.msra.mxu0 0.0
      %3002 = vmatprep.subr.mxu0 0.0
      %3003 = vmatpush1.msra.mxu0 0.0
      %3004 = vmatprep.mubr.f32.mxu0 0.0
      %3005 = vmatmul.mubr.f32.gmra.mrb[0].mxu0 %v2934
      %v3006 = vpop.f32.mrb[0].mxu0
      %v3007 = vadd.f32 0.0, %v3006
      %v3008 = vpop.f32.mrb[0].mxu0
      %3009 = vdwg.mxu0
      %v3011 = vsel %vm2932, %v3007, 0
      %v3014 = vsel %vm2936, %v2931, 0
      %3016 = vmatprep.subr.mxu0 0.0
      %3017 = vmatpush1.msra.mxu0 %v3014
      %3018 = vmatprep.subr.mxu0 0.0
      %3019 = vmatpush1.msra.mxu0 0.0
      %3020 = vmatprep.subr.mxu0 0.0
      %3021 = vmatpush1.msra.mxu0 0.0
      %3022 = vmatprep.subr.mxu0 0.0
      %3023 = vmatpush1.msra.mxu0 0.0
      %3024 = vmatprep.subr.mxu0 0.0
      %3025 = vmatpush1.msra.mxu0 0.0
      %3026 = vmatprep.subr.mxu0 0.0
      %3027 = vmatpush1.msra.mxu0 0.0
      %3028 = vmatprep.subr.mxu0 0.0
      %3029 = vmatpush1.msra.mxu0 0.0
      %3030 = vmatprep.subr.mxu0 0.0
      %3031 = vmatpush1.msra.mxu0 0.0
      %3032 = vmatprep.subr.mxu0 0.0
      %3033 = vmatpush1.msra.mxu0 0.0
      %3034 = vmatprep.subr.mxu0 0.0
      %3035 = vmatpush1.msra.mxu0 0.0
      %3036 = vmatprep.subr.mxu0 0.0
      %3037 = vmatpush1.msra.mxu0 0.0
      %3038 = vmatprep.subr.mxu0 0.0
      %3039 = vmatpush1.msra.mxu0 0.0
      %3040 = vmatprep.subr.mxu0 0.0
      %3041 = vmatpush1.msra.mxu0 0.0
      %3042 = vmatprep.subr.mxu0 0.0
      %3043 = vmatpush1.msra.mxu0 0.0
      %3044 = vmatprep.subr.mxu0 0.0
      %3045 = vmatpush1.msra.mxu0 0.0
      %3046 = vmatprep.subr.mxu0 0.0
      %3047 = vmatpush1.msra.mxu0 0.0
      %3048 = vmatprep.subr.mxu0 0.0
      %3049 = vmatpush1.msra.mxu0 0.0
      %3050 = vmatprep.subr.mxu0 0.0
      %3051 = vmatpush1.msra.mxu0 0.0
      %3052 = vmatprep.subr.mxu0 0.0
      %3053 = vmatpush1.msra.mxu0 0.0
      %3054 = vmatprep.subr.mxu0 0.0
      %3055 = vmatpush1.msra.mxu0 0.0
      %3056 = vmatprep.subr.mxu0 0.0
      %3057 = vmatpush1.msra.mxu0 0.0
      %3058 = vmatprep.subr.mxu0 0.0
      %3059 = vmatpush1.msra.mxu0 0.0
      %3060 = vmatprep.subr.mxu0 0.0
      %3061 = vmatpush1.msra.mxu0 0.0
      %3062 = vmatprep.subr.mxu0 0.0
      %3063 = vmatpush1.msra.mxu0 0.0
      %3064 = vmatprep.subr.mxu0 0.0
      %3065 = vmatpush1.msra.mxu0 0.0
      %3066 = vmatprep.subr.mxu0 0.0
      %3067 = vmatpush1.msra.mxu0 0.0
      %3068 = vmatprep.subr.mxu0 0.0
      %3069 = vmatpush1.msra.mxu0 0.0
      %3070 = vmatprep.subr.mxu0 0.0
      %3071 = vmatpush1.msra.mxu0 0.0
      %3072 = vmatprep.subr.mxu0 0.0
      %3073 = vmatpush1.msra.mxu0 0.0
      %3074 = vmatprep.subr.mxu0 0.0
      %3075 = vmatpush1.msra.mxu0 0.0
      %3076 = vmatprep.subr.mxu0 0.0
      %3077 = vmatpush1.msra.mxu0 0.0
      %3078 = vmatprep.subr.mxu0 0.0
      %3079 = vmatpush1.msra.mxu0 0.0
      %3080 = vmatprep.mubr.f32.mxu0 0.0
      %3081 = vmatmul.mubr.f32.gmra.mrb[0].mxu0 %v3011
      %v3082 = vpop.f32.mrb[0].mxu0
      %v3083 = vadd.f32 0.0, %v3082
      %v3084 = vpop.f32.mrb[0].mxu0
      %3085 = vdwg.mxu0
      %v3086 = vadd.f32 %v2231, %v3083
      %v3087 = vmax.f32 %v3086, 0.0
      %v3088 = vld [vmem:[%s8] sm:$0x1]
      %v3090 = vlaneseq
      %v3091 = vshrl.u32 %v3090, 7
      %v3092 = vsub.s32 0, %v3091
      %v3093 = vrot.slane %v3088, %v3092
      %3094 = vset.pattern.permute.xlu0 0
      %3095 = vperm.xlu0 %3094, %v3093
      %v3096 = vpop.permute.xlu0 %3095
      %v3098 = vmul.f32 %v3096, %v3087
      %v3099 = vadd.f32 %v3098, 0.0
      %v3101 = vsel %vm2936, %v2925, 0
      %3103 = vmatprep.subr.mxu0 0.0
      %3104 = vmatpush1.msra.mxu0 %v3101
      %3105 = vmatprep.subr.mxu0 0.0
      %3106 = vmatpush1.msra.mxu0 0.0
      %3107 = vmatprep.subr.mxu0 0.0
      %3108 = vmatpush1.msra.mxu0 0.0
      %3109 = vmatprep.subr.mxu0 0.0
      %3110 = vmatpush1.msra.mxu0 0.0
      %3111 = vmatprep.subr.mxu0 0.0
      %3112 = vmatpush1.msra.mxu0 0.0
      %3113 = vmatprep.subr.mxu0 0.0
      %3114 = vmatpush1.msra.mxu0 0.0
      %3115 = vmatprep.subr.mxu0 0.0
      %3116 = vmatpush1.msra.mxu0 0.0
      %3117 = vmatprep.subr.mxu0 0.0
      %3118 = vmatpush1.msra.mxu0 0.0
      %3119 = vmatprep.subr.mxu0 0.0
      %3120 = vmatpush1.msra.mxu0 0.0
      %3121 = vmatprep.subr.mxu0 0.0
      %3122 = vmatpush1.msra.mxu0 0.0
      %3123 = vmatprep.subr.mxu0 0.0
      %3124 = vmatpush1.msra.mxu0 0.0
      %3125 = vmatprep.subr.mxu0 0.0
      %3126 = vmatpush1.msra.mxu0 0.0
      %3127 = vmatprep.subr.mxu0 0.0
      %3128 = vmatpush1.msra.mxu0 0.0
      %3129 = vmatprep.subr.mxu0 0.0
      %3130 = vmatpush1.msra.mxu0 0.0
      %3131 = vmatprep.subr.mxu0 0.0
      %3132 = vmatpush1.msra.mxu0 0.0
      %3133 = vmatprep.subr.mxu0 0.0
      %3134 = vmatpush1.msra.mxu0 0.0
      %3135 = vmatprep.subr.mxu0 0.0
      %3136 = vmatpush1.msra.mxu0 0.0
      %3137 = vmatprep.subr.mxu0 0.0
      %3138 = vmatpush1.msra.mxu0 0.0
      %3139 = vmatprep.subr.mxu0 0.0
      %3140 = vmatpush1.msra.mxu0 0.0
      %3141 = vmatprep.subr.mxu0 0.0
      %3142 = vmatpush1.msra.mxu0 0.0
      %3143 = vmatprep.subr.mxu0 0.0
      %3144 = vmatpush1.msra.mxu0 0.0
      %3145 = vmatprep.subr.mxu0 0.0
      %3146 = vmatpush1.msra.mxu0 0.0
      %3147 = vmatprep.subr.mxu0 0.0
      %3148 = vmatpush1.msra.mxu0 0.0
      %3149 = vmatprep.subr.mxu0 0.0
      %3150 = vmatpush1.msra.mxu0 0.0
      %3151 = vmatprep.subr.mxu0 0.0
      %3152 = vmatpush1.msra.mxu0 0.0
      %3153 = vmatprep.subr.mxu0 0.0
      %3154 = vmatpush1.msra.mxu0 0.0
      %3155 = vmatprep.subr.mxu0 0.0
      %3156 = vmatpush1.msra.mxu0 0.0
      %3157 = vmatprep.subr.mxu0 0.0
      %3158 = vmatpush1.msra.mxu0 0.0
      %3159 = vmatprep.subr.mxu0 0.0
      %3160 = vmatpush1.msra.mxu0 0.0
      %3161 = vmatprep.subr.mxu0 0.0
      %3162 = vmatpush1.msra.mxu0 0.0
      %3163 = vmatprep.subr.mxu0 0.0
      %3164 = vmatpush1.msra.mxu0 0.0
      %3165 = vmatprep.subr.mxu0 0.0
      %3166 = vmatpush1.msra.mxu0 0.0
      %3167 = vmatprep.mubr.f32.mxu0 0.0
      %3168 = vmatmul.mubr.f32.gmra.mrb[0].mxu0 %v2934
      %v3169 = vpop.f32.mrb[0].mxu0
      %v3170 = vadd.f32 0.0, %v3169
      %v3171 = vpop.f32.mrb[0].mxu0
      %3172 = vdwg.mxu0
      %v3174 = vsel %vm2932, %v3170, 0
      %3176 = vmatprep.subr.mxu0 0.0
      %3177 = vmatpush1.msra.mxu0 %v3014
      %3178 = vmatprep.subr.mxu0 0.0
      %3179 = vmatpush1.msra.mxu0 0.0
      %3180 = vmatprep.subr.mxu0 0.0
      %3181 = vmatpush1.msra.mxu0 0.0
      %3182 = vmatprep.subr.mxu0 0.0
      %3183 = vmatpush1.msra.mxu0 0.0
      %3184 = vmatprep.subr.mxu0 0.0
      %3185 = vmatpush1.msra.mxu0 0.0
      %3186 = vmatprep.subr.mxu0 0.0
      %3187 = vmatpush1.msra.mxu0 0.0
      %3188 = vmatprep.subr.mxu0 0.0
      %3189 = vmatpush1.msra.mxu0 0.0
      %3190 = vmatprep.subr.mxu0 0.0
      %3191 = vmatpush1.msra.mxu0 0.0
      %3192 = vmatprep.subr.mxu0 0.0
      %3193 = vmatpush1.msra.mxu0 0.0
      %3194 = vmatprep.subr.mxu0 0.0
      %3195 = vmatpush1.msra.mxu0 0.0
      %3196 = vmatprep.subr.mxu0 0.0
      %3197 = vmatpush1.msra.mxu0 0.0
      %3198 = vmatprep.subr.mxu0 0.0
      %3199 = vmatpush1.msra.mxu0 0.0
      %3200 = vmatprep.subr.mxu0 0.0
      %3201 = vmatpush1.msra.mxu0 0.0
      %3202 = vmatprep.subr.mxu0 0.0
      %3203 = vmatpush1.msra.mxu0 0.0
      %3204 = vmatprep.subr.mxu0 0.0
      %3205 = vmatpush1.msra.mxu0 0.0
      %3206 = vmatprep.subr.mxu0 0.0
      %3207 = vmatpush1.msra.mxu0 0.0
      %3208 = vmatprep.subr.mxu0 0.0
      %3209 = vmatpush1.msra.mxu0 0.0
      %3210 = vmatprep.subr.mxu0 0.0
      %3211 = vmatpush1.msra.mxu0 0.0
      %3212 = vmatprep.subr.mxu0 0.0
      %3213 = vmatpush1.msra.mxu0 0.0
      %3214 = vmatprep.subr.mxu0 0.0
      %3215 = vmatpush1.msra.mxu0 0.0
      %3216 = vmatprep.subr.mxu0 0.0
      %3217 = vmatpush1.msra.mxu0 0.0
      %3218 = vmatprep.subr.mxu0 0.0
      %3219 = vmatpush1.msra.mxu0 0.0
      %3220 = vmatprep.subr.mxu0 0.0
      %3221 = vmatpush1.msra.mxu0 0.0
      %3222 = vmatprep.subr.mxu0 0.0
      %3223 = vmatpush1.msra.mxu0 0.0
      %3224 = vmatprep.subr.mxu0 0.0
      %3225 = vmatpush1.msra.mxu0 0.0
      %3226 = vmatprep.subr.mxu0 0.0
      %3227 = vmatpush1.msra.mxu0 0.0
      %3228 = vmatprep.subr.mxu0 0.0
      %3229 = vmatpush1.msra.mxu0 0.0
      %3230 = vmatprep.subr.mxu0 0.0
      %3231 = vmatpush1.msra.mxu0 0.0
      %3232 = vmatprep.subr.mxu0 0.0
      %3233 = vmatpush1.msra.mxu0 0.0
      %3234 = vmatprep.subr.mxu0 0.0
      %3235 = vmatpush1.msra.mxu0 0.0
      %3236 = vmatprep.subr.mxu0 0.0
      %3237 = vmatpush1.msra.mxu0 0.0
      %3238 = vmatprep.subr.mxu0 0.0
      %3239 = vmatpush1.msra.mxu0 0.0
      %3240 = vmatprep.mubr.f32.mxu0 0.0
      %3241 = vmatmul.mubr.f32.gmra.mrb[0].mxu0 %v3174
      %v3242 = vpop.f32.mrb[0].mxu0
      %v3243 = vadd.f32 0.0, %v3242
      %v3244 = vpop.f32.mrb[0].mxu0
      %3245 = vdwg.mxu0
      %v3246 = vadd.f32 %v2232, %v3243
      %v3247 = vmax.f32 %v3246, 0.0
      %s3248 = scalar_lea.vmem %s8, 1
      %v3249 = vld [vmem:[%s3248] sm:$0x1]
      %v3251 = vlaneseq
      %v3252 = vshrl.u32 %v3251, 7
      %v3253 = vsub.s32 0, %v3252
      %v3254 = vrot.slane %v3249, %v3253
      %3255 = vset.pattern.permute.xlu0 0
      %3256 = vperm.xlu0 %3255, %v3254
      %v3257 = vpop.permute.xlu0 %3256
      %v3259 = vmul.f32 %v3257, %v3247
      %v3260 = vadd.f32 %v3099, %v3259
      %v3262 = vsel %vm2936, %v2926, 0
      %3264 = vmatprep.subr.mxu0 0.0
      %3265 = vmatpush1.msra.mxu0 %v3262
      %3266 = vmatprep.subr.mxu0 0.0
      %3267 = vmatpush1.msra.mxu0 0.0
      %3268 = vmatprep.subr.mxu0 0.0
      %3269 = vmatpush1.msra.mxu0 0.0
      %3270 = vmatprep.subr.mxu0 0.0
      %3271 = vmatpush1.msra.mxu0 0.0
      %3272 = vmatprep.subr.mxu0 0.0
      %3273 = vmatpush1.msra.mxu0 0.0
      %3274 = vmatprep.subr.mxu0 0.0
      %3275 = vmatpush1.msra.mxu0 0.0
      %3276 = vmatprep.subr.mxu0 0.0
      %3277 = vmatpush1.msra.mxu0 0.0
      %3278 = vmatprep.subr.mxu0 0.0
      %3279 = vmatpush1.msra.mxu0 0.0
      %3280 = vmatprep.subr.mxu0 0.0
      %3281 = vmatpush1.msra.mxu0 0.0
      %3282 = vmatprep.subr.mxu0 0.0
      %3283 = vmatpush1.msra.mxu0 0.0
      %3284 = vmatprep.subr.mxu0 0.0
      %3285 = vmatpush1.msra.mxu0 0.0
      %3286 = vmatprep.subr.mxu0 0.0
      %3287 = vmatpush1.msra.mxu0 0.0
      %3288 = vmatprep.subr.mxu0 0.0
      %3289 = vmatpush1.msra.mxu0 0.0
      %3290 = vmatprep.subr.mxu0 0.0
      %3291 = vmatpush1.msra.mxu0 0.0
      %3292 = vmatprep.subr.mxu0 0.0
      %3293 = vmatpush1.msra.mxu0 0.0
      %3294 = vmatprep.subr.mxu0 0.0
      %3295 = vmatpush1.msra.mxu0 0.0
      %3296 = vmatprep.subr.mxu0 0.0
      %3297 = vmatpush1.msra.mxu0 0.0
      %3298 = vmatprep.subr.mxu0 0.0
      %3299 = vmatpush1.msra.mxu0 0.0
      %3300 = vmatprep.subr.mxu0 0.0
      %3301 = vmatpush1.msra.mxu0 0.0
      %3302 = vmatprep.subr.mxu0 0.0
      %3303 = vmatpush1.msra.mxu0 0.0
      %3304 = vmatprep.subr.mxu0 0.0
      %3305 = vmatpush1.msra.mxu0 0.0
      %3306 = vmatprep.subr.mxu0 0.0
      %3307 = vmatpush1.msra.mxu0 0.0
      %3308 = vmatprep.subr.mxu0 0.0
      %3309 = vmatpush1.msra.mxu0 0.0
      %3310 = vmatprep.subr.mxu0 0.0
      %3311 = vmatpush1.msra.mxu0 0.0
      %3312 = vmatprep.subr.mxu0 0.0
      %3313 = vmatpush1.msra.mxu0 0.0
      %3314 = vmatprep.subr.mxu0 0.0
      %3315 = vmatpush1.msra.mxu0 0.0
      %3316 = vmatprep.subr.mxu0 0.0
      %3317 = vmatpush1.msra.mxu0 0.0
      %3318 = vmatprep.subr.mxu0 0.0
      %3319 = vmatpush1.msra.mxu0 0.0
      %3320 = vmatprep.subr.mxu0 0.0
      %3321 = vmatpush1.msra.mxu0 0.0
      %3322 = vmatprep.subr.mxu0 0.0
      %3323 = vmatpush1.msra.mxu0 0.0
      %3324 = vmatprep.subr.mxu0 0.0
      %3325 = vmatpush1.msra.mxu0 0.0
      %3326 = vmatprep.subr.mxu0 0.0
      %3327 = vmatpush1.msra.mxu0 0.0
      %3328 = vmatprep.mubr.f32.mxu0 0.0
      %3329 = vmatmul.mubr.f32.gmra.mrb[0].mxu0 %v2934
      %v3330 = vpop.f32.mrb[0].mxu0
      %v3331 = vadd.f32 0.0, %v3330
      %v3332 = vpop.f32.mrb[0].mxu0
      %3333 = vdwg.mxu0
      %v3335 = vsel %vm2932, %v3331, 0
      %3337 = vmatprep.subr.mxu0 0.0
      %3338 = vmatpush1.msra.mxu0 %v3014
      %3339 = vmatprep.subr.mxu0 0.0
      %3340 = vmatpush1.msra.mxu0 0.0
      %3341 = vmatprep.subr.mxu0 0.0
      %3342 = vmatpush1.msra.mxu0 0.0
      %3343 = vmatprep.subr.mxu0 0.0
      %3344 = vmatpush1.msra.mxu0 0.0
      %3345 = vmatprep.subr.mxu0 0.0
      %3346 = vmatpush1.msra.mxu0 0.0
      %3347 = vmatprep.subr.mxu0 0.0
      %3348 = vmatpush1.msra.mxu0 0.0
      %3349 = vmatprep.subr.mxu0 0.0
      %3350 = vmatpush1.msra.mxu0 0.0
      %3351 = vmatprep.subr.mxu0 0.0
      %3352 = vmatpush1.msra.mxu0 0.0
      %3353 = vmatprep.subr.mxu0 0.0
      %3354 = vmatpush1.msra.mxu0 0.0
      %3355 = vmatprep.subr.mxu0 0.0
      %3356 = vmatpush1.msra.mxu0 0.0
      %3357 = vmatprep.subr.mxu0 0.0
      %3358 = vmatpush1.msra.mxu0 0.0
      %3359 = vmatprep.subr.mxu0 0.0
      %3360 = vmatpush1.msra.mxu0 0.0
      %3361 = vmatprep.subr.mxu0 0.0
      %3362 = vmatpush1.msra.mxu0 0.0
      %3363 = vmatprep.subr.mxu0 0.0
      %3364 = vmatpush1.msra.mxu0 0.0
      %3365 = vmatprep.subr.mxu0 0.0
      %3366 = vmatpush1.msra.mxu0 0.0
      %3367 = vmatprep.subr.mxu0 0.0
      %3368 = vmatpush1.msra.mxu0 0.0
      %3369 = vmatprep.subr.mxu0 0.0
      %3370 = vmatpush1.msra.mxu0 0.0
      %3371 = vmatprep.subr.mxu0 0.0
      %3372 = vmatpush1.msra.mxu0 0.0
      %3373 = vmatprep.subr.mxu0 0.0
      %3374 = vmatpush1.msra.mxu0 0.0
      %3375 = vmatprep.subr.mxu0 0.0
      %3376 = vmatpush1.msra.mxu0 0.0
      %3377 = vmatprep.subr.mxu0 0.0
      %3378 = vmatpush1.msra.mxu0 0.0
      %3379 = vmatprep.subr.mxu0 0.0
      %3380 = vmatpush1.msra.mxu0 0.0
      %3381 = vmatprep.subr.mxu0 0.0
      %3382 = vmatpush1.msra.mxu0 0.0
      %3383 = vmatprep.subr.mxu0 0.0
      %3384 = vmatpush1.msra.mxu0 0.0
      %3385 = vmatprep.subr.mxu0 0.0
      %3386 = vmatpush1.msra.mxu0 0.0
      %3387 = vmatprep.subr.mxu0 0.0
      %3388 = vmatpush1.msra.mxu0 0.0
      %3389 = vmatprep.subr.mxu0 0.0
      %3390 = vmatpush1.msra.mxu0 0.0
      %3391 = vmatprep.subr.mxu0 0.0
      %3392 = vmatpush1.msra.mxu0 0.0
      %3393 = vmatprep.subr.mxu0 0.0
      %3394 = vmatpush1.msra.mxu0 0.0
      %3395 = vmatprep.subr.mxu0 0.0
      %3396 = vmatpush1.msra.mxu0 0.0
      %3397 = vmatprep.subr.mxu0 0.0
      %3398 = vmatpush1.msra.mxu0 0.0
      %3399 = vmatprep.subr.mxu0 0.0
      %3400 = vmatpush1.msra.mxu0 0.0
      %3401 = vmatprep.mubr.f32.mxu0 0.0
      %3402 = vmatmul.mubr.f32.gmra.mrb[0].mxu0 %v3335
      %v3403 = vpop.f32.mrb[0].mxu0
      %v3404 = vadd.f32 0.0, %v3403
      %v3405 = vpop.f32.mrb[0].mxu0
      %3406 = vdwg.mxu0
      %v3407 = vadd.f32 %v2233, %v3404
      %v3408 = vmax.f32 %v3407, 0.0
      %s3409 = scalar_lea.vmem %s8, 2
      %v3410 = vld [vmem:[%s3409] sm:$0x1]
      %v3412 = vlaneseq
      %v3413 = vshrl.u32 %v3412, 7
      %v3414 = vsub.s32 0, %v3413
      %v3415 = vrot.slane %v3410, %v3414
      %3416 = vset.pattern.permute.xlu0 0
      %3417 = vperm.xlu0 %3416, %v3415
      %v3418 = vpop.permute.xlu0 %3417
      %v3420 = vmul.f32 %v3418, %v3408
      %v3421 = vadd.f32 %v3260, %v3420
      %v3423 = vsel %vm2936, %v2927, 0
      %3425 = vmatprep.subr.mxu0 0.0
      %3426 = vmatpush1.msra.mxu0 %v3423
      %3427 = vmatprep.subr.mxu0 0.0
      %3428 = vmatpush1.msra.mxu0 0.0
      %3429 = vmatprep.subr.mxu0 0.0
      %3430 = vmatpush1.msra.mxu0 0.0
      %3431 = vmatprep.subr.mxu0 0.0
      %3432 = vmatpush1.msra.mxu0 0.0
      %3433 = vmatprep.subr.mxu0 0.0
      %3434 = vmatpush1.msra.mxu0 0.0
      %3435 = vmatprep.subr.mxu0 0.0
      %3436 = vmatpush1.msra.mxu0 0.0
      %3437 = vmatprep.subr.mxu0 0.0
      %3438 = vmatpush1.msra.mxu0 0.0
      %3439 = vmatprep.subr.mxu0 0.0
      %3440 = vmatpush1.msra.mxu0 0.0
      %3441 = vmatprep.subr.mxu0 0.0
      %3442 = vmatpush1.msra.mxu0 0.0
      %3443 = vmatprep.subr.mxu0 0.0
      %3444 = vmatpush1.msra.mxu0 0.0
      %3445 = vmatprep.subr.mxu0 0.0
      %3446 = vmatpush1.msra.mxu0 0.0
      %3447 = vmatprep.subr.mxu0 0.0
      %3448 = vmatpush1.msra.mxu0 0.0
      %3449 = vmatprep.subr.mxu0 0.0
      %3450 = vmatpush1.msra.mxu0 0.0
      %3451 = vmatprep.subr.mxu0 0.0
      %3452 = vmatpush1.msra.mxu0 0.0
      %3453 = vmatprep.subr.mxu0 0.0
      %3454 = vmatpush1.msra.mxu0 0.0
      %3455 = vmatprep.subr.mxu0 0.0
      %3456 = vmatpush1.msra.mxu0 0.0
      %3457 = vmatprep.subr.mxu0 0.0
      %3458 = vmatpush1.msra.mxu0 0.0
      %3459 = vmatprep.subr.mxu0 0.0
      %3460 = vmatpush1.msra.mxu0 0.0
      %3461 = vmatprep.subr.mxu0 0.0
      %3462 = vmatpush1.msra.mxu0 0.0
      %3463 = vmatprep.subr.mxu0 0.0
      %3464 = vmatpush1.msra.mxu0 0.0
      %3465 = vmatprep.subr.mxu0 0.0
      %3466 = vmatpush1.msra.mxu0 0.0
      %3467 = vmatprep.subr.mxu0 0.0
      %3468 = vmatpush1.msra.mxu0 0.0
      %3469 = vmatprep.subr.mxu0 0.0
      %3470 = vmatpush1.msra.mxu0 0.0
      %3471 = vmatprep.subr.mxu0 0.0
      %3472 = vmatpush1.msra.mxu0 0.0
      %3473 = vmatprep.subr.mxu0 0.0
      %3474 = vmatpush1.msra.mxu0 0.0
      %3475 = vmatprep.subr.mxu0 0.0
      %3476 = vmatpush1.msra.mxu0 0.0
      %3477 = vmatprep.subr.mxu0 0.0
      %3478 = vmatpush1.msra.mxu0 0.0
      %3479 = vmatprep.subr.mxu0 0.0
      %3480 = vmatpush1.msra.mxu0 0.0
      %3481 = vmatprep.subr.mxu0 0.0
      %3482 = vmatpush1.msra.mxu0 0.0
      %3483 = vmatprep.subr.mxu0 0.0
      %3484 = vmatpush1.msra.mxu0 0.0
      %3485 = vmatprep.subr.mxu0 0.0
      %3486 = vmatpush1.msra.mxu0 0.0
      %3487 = vmatprep.subr.mxu0 0.0
      %3488 = vmatpush1.msra.mxu0 0.0
      %3489 = vmatprep.mubr.f32.mxu0 0.0
      %3490 = vmatmul.mubr.f32.gmra.mrb[0].mxu0 %v2934
      %v3491 = vpop.f32.mrb[0].mxu0
      %v3492 = vadd.f32 0.0, %v3491
      %v3493 = vpop.f32.mrb[0].mxu0
      %3494 = vdwg.mxu0
      %v3496 = vsel %vm2932, %v3492, 0
      %3498 = vmatprep.subr.mxu0 0.0
      %3499 = vmatpush1.msra.mxu0 %v3014
      %3500 = vmatprep.subr.mxu0 0.0
      %3501 = vmatpush1.msra.mxu0 0.0
      %3502 = vmatprep.subr.mxu0 0.0
      %3503 = vmatpush1.msra.mxu0 0.0
      %3504 = vmatprep.subr.mxu0 0.0
      %3505 = vmatpush1.msra.mxu0 0.0
      %3506 = vmatprep.subr.mxu0 0.0
      %3507 = vmatpush1.msra.mxu0 0.0
      %3508 = vmatprep.subr.mxu0 0.0
      %3509 = vmatpush1.msra.mxu0 0.0
      %3510 = vmatprep.subr.mxu0 0.0
      %3511 = vmatpush1.msra.mxu0 0.0
      %3512 = vmatprep.subr.mxu0 0.0
      %3513 = vmatpush1.msra.mxu0 0.0
      %3514 = vmatprep.subr.mxu0 0.0
      %3515 = vmatpush1.msra.mxu0 0.0
      %3516 = vmatprep.subr.mxu0 0.0
      %3517 = vmatpush1.msra.mxu0 0.0
      %3518 = vmatprep.subr.mxu0 0.0
      %3519 = vmatpush1.msra.mxu0 0.0
      %3520 = vmatprep.subr.mxu0 0.0
      %3521 = vmatpush1.msra.mxu0 0.0
      %3522 = vmatprep.subr.mxu0 0.0
      %3523 = vmatpush1.msra.mxu0 0.0
      %3524 = vmatprep.subr.mxu0 0.0
      %3525 = vmatpush1.msra.mxu0 0.0
      %3526 = vmatprep.subr.mxu0 0.0
      %3527 = vmatpush1.msra.mxu0 0.0
      %3528 = vmatprep.subr.mxu0 0.0
      %3529 = vmatpush1.msra.mxu0 0.0
      %3530 = vmatprep.subr.mxu0 0.0
      %3531 = vmatpush1.msra.mxu0 0.0
      %3532 = vmatprep.subr.mxu0 0.0
      %3533 = vmatpush1.msra.mxu0 0.0
      %3534 = vmatprep.subr.mxu0 0.0
      %3535 = vmatpush1.msra.mxu0 0.0
      %3536 = vmatprep.subr.mxu0 0.0
      %3537 = vmatpush1.msra.mxu0 0.0
      %3538 = vmatprep.subr.mxu0 0.0
      %3539 = vmatpush1.msra.mxu0 0.0
      %3540 = vmatprep.subr.mxu0 0.0
      %3541 = vmatpush1.msra.mxu0 0.0
      %3542 = vmatprep.subr.mxu0 0.0
      %3543 = vmatpush1.msra.mxu0 0.0
      %3544 = vmatprep.subr.mxu0 0.0
      %3545 = vmatpush1.msra.mxu0 0.0
      %3546 = vmatprep.subr.mxu0 0.0
      %3547 = vmatpush1.msra.mxu0 0.0
      %3548 = vmatprep.subr.mxu0 0.0
      %3549 = vmatpush1.msra.mxu0 0.0
      %3550 = vmatprep.subr.mxu0 0.0
      %3551 = vmatpush1.msra.mxu0 0.0
      %3552 = vmatprep.subr.mxu0 0.0
      %3553 = vmatpush1.msra.mxu0 0.0
      %3554 = vmatprep.subr.mxu0 0.0
      %3555 = vmatpush1.msra.mxu0 0.0
      %3556 = vmatprep.subr.mxu0 0.0
      %3557 = vmatpush1.msra.mxu0 0.0
      %3558 = vmatprep.subr.mxu0 0.0
      %3559 = vmatpush1.msra.mxu0 0.0
      %3560 = vmatprep.subr.mxu0 0.0
      %3561 = vmatpush1.msra.mxu0 0.0
      %3562 = vmatprep.mubr.f32.mxu0 0.0
      %3563 = vmatmul.mubr.f32.gmra.mrb[0].mxu0 %v3496
      %v3564 = vpop.f32.mrb[0].mxu0
      %v3565 = vadd.f32 0.0, %v3564
      %v3566 = vpop.f32.mrb[0].mxu0
      %3567 = vdwg.mxu0
      %v3568 = vadd.f32 %v2234, %v3565
      %v3569 = vmax.f32 %v3568, 0.0
      %s3570 = scalar_lea.vmem %s8, 3
      %v3571 = vld [vmem:[%s3570] sm:$0x1]
      %v3573 = vlaneseq
      %v3574 = vshrl.u32 %v3573, 7
      %v3575 = vsub.s32 0, %v3574
      %v3576 = vrot.slane %v3571, %v3575
      %3577 = vset.pattern.permute.xlu0 0
      %3578 = vperm.xlu0 %3577, %v3576
      %v3579 = vpop.permute.xlu0 %3578
      %v3581 = vmul.f32 %v3579, %v3569
      %v3582 = vadd.f32 %v3421, %v3581
      %v3584 = vsel %vm2936, %v2928, 0
      %3586 = vmatprep.subr.mxu0 0.0
      %3587 = vmatpush1.msra.mxu0 %v3584
      %3588 = vmatprep.subr.mxu0 0.0
      %3589 = vmatpush1.msra.mxu0 0.0
      %3590 = vmatprep.subr.mxu0 0.0
      %3591 = vmatpush1.msra.mxu0 0.0
      %3592 = vmatprep.subr.mxu0 0.0
      %3593 = vmatpush1.msra.mxu0 0.0
      %3594 = vmatprep.subr.mxu0 0.0
      %3595 = vmatpush1.msra.mxu0 0.0
      %3596 = vmatprep.subr.mxu0 0.0
      %3597 = vmatpush1.msra.mxu0 0.0
      %3598 = vmatprep.subr.mxu0 0.0
      %3599 = vmatpush1.msra.mxu0 0.0
      %3600 = vmatprep.subr.mxu0 0.0
      %3601 = vmatpush1.msra.mxu0 0.0
      %3602 = vmatprep.subr.mxu0 0.0
      %3603 = vmatpush1.msra.mxu0 0.0
      %3604 = vmatprep.subr.mxu0 0.0
      %3605 = vmatpush1.msra.mxu0 0.0
      %3606 = vmatprep.subr.mxu0 0.0
      %3607 = vmatpush1.msra.mxu0 0.0
      %3608 = vmatprep.subr.mxu0 0.0
      %3609 = vmatpush1.msra.mxu0 0.0
      %3610 = vmatprep.subr.mxu0 0.0
      %3611 = vmatpush1.msra.mxu0 0.0
      %3612 = vmatprep.subr.mxu0 0.0
      %3613 = vmatpush1.msra.mxu0 0.0
      %3614 = vmatprep.subr.mxu0 0.0
      %3615 = vmatpush1.msra.mxu0 0.0
      %3616 = vmatprep.subr.mxu0 0.0
      %3617 = vmatpush1.msra.mxu0 0.0
      %3618 = vmatprep.subr.mxu0 0.0
      %3619 = vmatpush1.msra.mxu0 0.0
      %3620 = vmatprep.subr.mxu0 0.0
      %3621 = vmatpush1.msra.mxu0 0.0
      %3622 = vmatprep.subr.mxu0 0.0
      %3623 = vmatpush1.msra.mxu0 0.0
      %3624 = vmatprep.subr.mxu0 0.0
      %3625 = vmatpush1.msra.mxu0 0.0
      %3626 = vmatprep.subr.mxu0 0.0
      %3627 = vmatpush1.msra.mxu0 0.0
      %3628 = vmatprep.subr.mxu0 0.0
      %3629 = vmatpush1.msra.mxu0 0.0
      %3630 = vmatprep.subr.mxu0 0.0
      %3631 = vmatpush1.msra.mxu0 0.0
      %3632 = vmatprep.subr.mxu0 0.0
      %3633 = vmatpush1.msra.mxu0 0.0
      %3634 = vmatprep.subr.mxu0 0.0
      %3635 = vmatpush1.msra.mxu0 0.0
      %3636 = vmatprep.subr.mxu0 0.0
      %3637 = vmatpush1.msra.mxu0 0.0
      %3638 = vmatprep.subr.mxu0 0.0
      %3639 = vmatpush1.msra.mxu0 0.0
      %3640 = vmatprep.subr.mxu0 0.0
      %3641 = vmatpush1.msra.mxu0 0.0
      %3642 = vmatprep.subr.mxu0 0.0
      %3643 = vmatpush1.msra.mxu0 0.0
      %3644 = vmatprep.subr.mxu0 0.0
      %3645 = vmatpush1.msra.mxu0 0.0
      %3646 = vmatprep.subr.mxu0 0.0
      %3647 = vmatpush1.msra.mxu0 0.0
      %3648 = vmatprep.subr.mxu0 0.0
      %3649 = vmatpush1.msra.mxu0 0.0
      %3650 = vmatprep.mubr.f32.mxu0 0.0
      %3651 = vmatmul.mubr.f32.gmra.mrb[0].mxu0 %v2934
      %v3652 = vpop.f32.mrb[0].mxu0
      %v3653 = vadd.f32 0.0, %v3652
      %v3654 = vpop.f32.mrb[0].mxu0
      %3655 = vdwg.mxu0
      %v3657 = vsel %vm2932, %v3653, 0
      %3659 = vmatprep.subr.mxu0 0.0
      %3660 = vmatpush1.msra.mxu0 %v3014
      %3661 = vmatprep.subr.mxu0 0.0
      %3662 = vmatpush1.msra.mxu0 0.0
      %3663 = vmatprep.subr.mxu0 0.0
      %3664 = vmatpush1.msra.mxu0 0.0
      %3665 = vmatprep.subr.mxu0 0.0
      %3666 = vmatpush1.msra.mxu0 0.0
      %3667 = vmatprep.subr.mxu0 0.0
      %3668 = vmatpush1.msra.mxu0 0.0
      %3669 = vmatprep.subr.mxu0 0.0
      %3670 = vmatpush1.msra.mxu0 0.0
      %3671 = vmatprep.subr.mxu0 0.0
      %3672 = vmatpush1.msra.mxu0 0.0
      %3673 = vmatprep.subr.mxu0 0.0
      %3674 = vmatpush1.msra.mxu0 0.0
      %3675 = vmatprep.subr.mxu0 0.0
      %3676 = vmatpush1.msra.mxu0 0.0
      %3677 = vmatprep.subr.mxu0 0.0
      %3678 = vmatpush1.msra.mxu0 0.0
      %3679 = vmatprep.subr.mxu0 0.0
      %3680 = vmatpush1.msra.mxu0 0.0
      %3681 = vmatprep.subr.mxu0 0.0
      %3682 = vmatpush1.msra.mxu0 0.0
      %3683 = vmatprep.subr.mxu0 0.0
      %3684 = vmatpush1.msra.mxu0 0.0
      %3685 = vmatprep.subr.mxu0 0.0
      %3686 = vmatpush1.msra.mxu0 0.0
      %3687 = vmatprep.subr.mxu0 0.0
      %3688 = vmatpush1.msra.mxu0 0.0
      %3689 = vmatprep.subr.mxu0 0.0
      %3690 = vmatpush1.msra.mxu0 0.0
      %3691 = vmatprep.subr.mxu0 0.0
      %3692 = vmatpush1.msra.mxu0 0.0
      %3693 = vmatprep.subr.mxu0 0.0
      %3694 = vmatpush1.msra.mxu0 0.0
      %3695 = vmatprep.subr.mxu0 0.0
      %3696 = vmatpush1.msra.mxu0 0.0
      %3697 = vmatprep.subr.mxu0 0.0
      %3698 = vmatpush1.msra.mxu0 0.0
      %3699 = vmatprep.subr.mxu0 0.0
      %3700 = vmatpush1.msra.mxu0 0.0
      %3701 = vmatprep.subr.mxu0 0.0
      %3702 = vmatpush1.msra.mxu0 0.0
      %3703 = vmatprep.subr.mxu0 0.0
      %3704 = vmatpush1.msra.mxu0 0.0
      %3705 = vmatprep.subr.mxu0 0.0
      %3706 = vmatpush1.msra.mxu0 0.0
      %3707 = vmatprep.subr.mxu0 0.0
      %3708 = vmatpush1.msra.mxu0 0.0
      %3709 = vmatprep.subr.mxu0 0.0
      %3710 = vmatpush1.msra.mxu0 0.0
      %3711 = vmatprep.subr.mxu0 0.0
      %3712 = vmatpush1.msra.mxu0 0.0
      %3713 = vmatprep.subr.mxu0 0.0
      %3714 = vmatpush1.msra.mxu0 0.0
      %3715 = vmatprep.subr.mxu0 0.0
      %3716 = vmatpush1.msra.mxu0 0.0
      %3717 = vmatprep.subr.mxu0 0.0
      %3718 = vmatpush1.msra.mxu0 0.0
      %3719 = vmatprep.subr.mxu0 0.0
      %3720 = vmatpush1.msra.mxu0 0.0
      %3721 = vmatprep.subr.mxu0 0.0
      %3722 = vmatpush1.msra.mxu0 0.0
      %3723 = vmatprep.mubr.f32.mxu0 0.0
      %3724 = vmatmul.mubr.f32.gmra.mrb[0].mxu0 %v3657
      %v3725 = vpop.f32.mrb[0].mxu0
      %v3726 = vadd.f32 0.0, %v3725
      %v3727 = vpop.f32.mrb[0].mxu0
      %3728 = vdwg.mxu0
      %v3729 = vadd.f32 %v2235, %v3726
      %v3730 = vmax.f32 %v3729, 0.0
      %s3731 = scalar_lea.vmem %s8, 4
      %v3732 = vld [vmem:[%s3731] sm:$0x1]
      %v3734 = vlaneseq
      %v3735 = vshrl.u32 %v3734, 7
      %v3736 = vsub.s32 0, %v3735
      %v3737 = vrot.slane %v3732, %v3736
      %3738 = vset.pattern.permute.xlu0 0
      %3739 = vperm.xlu0 %3738, %v3737
      %v3740 = vpop.permute.xlu0 %3739
      %v3742 = vmul.f32 %v3740, %v3730
      %v3743 = vadd.f32 %v3582, %v3742
      %v3745 = vsel %vm2936, %v2929, 0
      %3747 = vmatprep.subr.mxu0 0.0
      %3748 = vmatpush1.msra.mxu0 %v3745
      %3749 = vmatprep.subr.mxu0 0.0
      %3750 = vmatpush1.msra.mxu0 0.0
      %3751 = vmatprep.subr.mxu0 0.0
      %3752 = vmatpush1.msra.mxu0 0.0
      %3753 = vmatprep.subr.mxu0 0.0
      %3754 = vmatpush1.msra.mxu0 0.0
      %3755 = vmatprep.subr.mxu0 0.0
      %3756 = vmatpush1.msra.mxu0 0.0
      %3757 = vmatprep.subr.mxu0 0.0
      %3758 = vmatpush1.msra.mxu0 0.0
      %3759 = vmatprep.subr.mxu0 0.0
      %3760 = vmatpush1.msra.mxu0 0.0
      %3761 = vmatprep.subr.mxu0 0.0
      %3762 = vmatpush1.msra.mxu0 0.0
      %3763 = vmatprep.subr.mxu0 0.0
      %3764 = vmatpush1.msra.mxu0 0.0
      %3765 = vmatprep.subr.mxu0 0.0
      %3766 = vmatpush1.msra.mxu0 0.0
      %3767 = vmatprep.subr.mxu0 0.0
      %3768 = vmatpush1.msra.mxu0 0.0
      %3769 = vmatprep.subr.mxu0 0.0
      %3770 = vmatpush1.msra.mxu0 0.0
      %3771 = vmatprep.subr.mxu0 0.0
      %3772 = vmatpush1.msra.mxu0 0.0
      %3773 = vmatprep.subr.mxu0 0.0
      %3774 = vmatpush1.msra.mxu0 0.0
      %3775 = vmatprep.subr.mxu0 0.0
      %3776 = vmatpush1.msra.mxu0 0.0
      %3777 = vmatprep.subr.mxu0 0.0
      %3778 = vmatpush1.msra.mxu0 0.0
      %3779 = vmatprep.subr.mxu0 0.0
      %3780 = vmatpush1.msra.mxu0 0.0
      %3781 = vmatprep.subr.mxu0 0.0
      %3782 = vmatpush1.msra.mxu0 0.0
      %3783 = vmatprep.subr.mxu0 0.0
      %3784 = vmatpush1.msra.mxu0 0.0
      %3785 = vmatprep.subr.mxu0 0.0
      %3786 = vmatpush1.msra.mxu0 0.0
      %3787 = vmatprep.subr.mxu0 0.0
      %3788 = vmatpush1.msra.mxu0 0.0
      %3789 = vmatprep.subr.mxu0 0.0
      %3790 = vmatpush1.msra.mxu0 0.0
      %3791 = vmatprep.subr.mxu0 0.0
      %3792 = vmatpush1.msra.mxu0 0.0
      %3793 = vmatprep.subr.mxu0 0.0
      %3794 = vmatpush1.msra.mxu0 0.0
      %3795 = vmatprep.subr.mxu0 0.0
      %3796 = vmatpush1.msra.mxu0 0.0
      %3797 = vmatprep.subr.mxu0 0.0
      %3798 = vmatpush1.msra.mxu0 0.0
      %3799 = vmatprep.subr.mxu0 0.0
      %3800 = vmatpush1.msra.mxu0 0.0
      %3801 = vmatprep.subr.mxu0 0.0
      %3802 = vmatpush1.msra.mxu0 0.0
      %3803 = vmatprep.subr.mxu0 0.0
      %3804 = vmatpush1.msra.mxu0 0.0
      %3805 = vmatprep.subr.mxu0 0.0
      %3806 = vmatpush1.msra.mxu0 0.0
      %3807 = vmatprep.subr.mxu0 0.0
      %3808 = vmatpush1.msra.mxu0 0.0
      %3809 = vmatprep.subr.mxu0 0.0
      %3810 = vmatpush1.msra.mxu0 0.0
      %3811 = vmatprep.mubr.f32.mxu0 0.0
      %3812 = vmatmul.mubr.f32.gmra.mrb[0].mxu0 %v2934
      %v3813 = vpop.f32.mrb[0].mxu0
      %v3814 = vadd.f32 0.0, %v3813
      %v3815 = vpop.f32.mrb[0].mxu0
      %3816 = vdwg.mxu0
      %v3818 = vsel %vm2932, %v3814, 0
      %3820 = vmatprep.subr.mxu0 0.0
      %3821 = vmatpush1.msra.mxu0 %v3014
      %3822 = vmatprep.subr.mxu0 0.0
      %3823 = vmatpush1.msra.mxu0 0.0
      %3824 = vmatprep.subr.mxu0 0.0
      %3825 = vmatpush1.msra.mxu0 0.0
      %3826 = vmatprep.subr.mxu0 0.0
      %3827 = vmatpush1.msra.mxu0 0.0
      %3828 = vmatprep.subr.mxu0 0.0
      %3829 = vmatpush1.msra.mxu0 0.0
      %3830 = vmatprep.subr.mxu0 0.0
      %3831 = vmatpush1.msra.mxu0 0.0
      %3832 = vmatprep.subr.mxu0 0.0
      %3833 = vmatpush1.msra.mxu0 0.0
      %3834 = vmatprep.subr.mxu0 0.0
      %3835 = vmatpush1.msra.mxu0 0.0
      %3836 = vmatprep.subr.mxu0 0.0
      %3837 = vmatpush1.msra.mxu0 0.0
      %3838 = vmatprep.subr.mxu0 0.0
      %3839 = vmatpush1.msra.mxu0 0.0
      %3840 = vmatprep.subr.mxu0 0.0
      %3841 = vmatpush1.msra.mxu0 0.0
      %3842 = vmatprep.subr.mxu0 0.0
      %3843 = vmatpush1.msra.mxu0 0.0
      %3844 = vmatprep.subr.mxu0 0.0
      %3845 = vmatpush1.msra.mxu0 0.0
      %3846 = vmatprep.subr.mxu0 0.0
      %3847 = vmatpush1.msra.mxu0 0.0
      %3848 = vmatprep.subr.mxu0 0.0
      %3849 = vmatpush1.msra.mxu0 0.0
      %3850 = vmatprep.subr.mxu0 0.0
      %3851 = vmatpush1.msra.mxu0 0.0
      %3852 = vmatprep.subr.mxu0 0.0
      %3853 = vmatpush1.msra.mxu0 0.0
      %3854 = vmatprep.subr.mxu0 0.0
      %3855 = vmatpush1.msra.mxu0 0.0
      %3856 = vmatprep.subr.mxu0 0.0
      %3857 = vmatpush1.msra.mxu0 0.0
      %3858 = vmatprep.subr.mxu0 0.0
      %3859 = vmatpush1.msra.mxu0 0.0
      %3860 = vmatprep.subr.mxu0 0.0
      %3861 = vmatpush1.msra.mxu0 0.0
      %3862 = vmatprep.subr.mxu0 0.0
      %3863 = vmatpush1.msra.mxu0 0.0
      %3864 = vmatprep.subr.mxu0 0.0
      %3865 = vmatpush1.msra.mxu0 0.0
      %3866 = vmatprep.subr.mxu0 0.0
      %3867 = vmatpush1.msra.mxu0 0.0
      %3868 = vmatprep.subr.mxu0 0.0
      %3869 = vmatpush1.msra.mxu0 0.0
      %3870 = vmatprep.subr.mxu0 0.0
      %3871 = vmatpush1.msra.mxu0 0.0
      %3872 = vmatprep.subr.mxu0 0.0
      %3873 = vmatpush1.msra.mxu0 0.0
      %3874 = vmatprep.subr.mxu0 0.0
      %3875 = vmatpush1.msra.mxu0 0.0
      %3876 = vmatprep.subr.mxu0 0.0
      %3877 = vmatpush1.msra.mxu0 0.0
      %3878 = vmatprep.subr.mxu0 0.0
      %3879 = vmatpush1.msra.mxu0 0.0
      %3880 = vmatprep.subr.mxu0 0.0
      %3881 = vmatpush1.msra.mxu0 0.0
      %3882 = vmatprep.subr.mxu0 0.0
      %3883 = vmatpush1.msra.mxu0 0.0
      %3884 = vmatprep.mubr.f32.mxu0 0.0
      %3885 = vmatmul.mubr.f32.gmra.mrb[0].mxu0 %v3818
      %v3886 = vpop.f32.mrb[0].mxu0
      %v3887 = vadd.f32 0.0, %v3886
      %v3888 = vpop.f32.mrb[0].mxu0
      %3889 = vdwg.mxu0
      %v3890 = vadd.f32 %v2236, %v3887
      %v3891 = vmax.f32 %v3890, 0.0
      %s3892 = scalar_lea.vmem %s8, 5
      %v3893 = vld [vmem:[%s3892] sm:$0x1]
      %v3895 = vlaneseq
      %v3896 = vshrl.u32 %v3895, 7
      %v3897 = vsub.s32 0, %v3896
      %v3898 = vrot.slane %v3893, %v3897
      %3899 = vset.pattern.permute.xlu0 0
      %3900 = vperm.xlu0 %3899, %v3898
      %v3901 = vpop.permute.xlu0 %3900
      %v3903 = vmul.f32 %v3901, %v3891
      %v3904 = vadd.f32 %v3743, %v3903
      %v3905 = vld [vmem:[#allocation2] sm:$0x1]
      %v3907 = vlaneseq
      %v3908 = vshrl.u32 %v3907, 7
      %v3909 = vsub.s32 0, %v3908
      %v3910 = vrot.slane %v3905, %v3909
      %3911 = vset.pattern.permute.xlu0 0
      %3912 = vperm.xlu0 %3911, %v3910
      %v3913 = vpop.permute.xlu0 %3912
      %v3915 = vadd.f32 %v3904, %v3913
      %v3916 = vxor.u32 %v3915, 2147483648
      %v3917 = vmul.f32 %v3916, 1.442695
      %v3918 = vpow.pop %v3917
      %v3919 = vadd.f32 %v3918, 1.0
      %v3920 = vrcp.pop %v3919
      %v3921 = vmul.f32 1.0, %v3920
      %3922 = vst.msk [vmem:[%s439] sm:$0xff] %vm927, %v3921
      %p3923 = scmp.lt.s32.totalorder %s27, 1
      %s3924 = scalar_select %p3923, %s27, 1
      %p3925 = scmp.lt.s32.totalorder %s28, 0
      %s3926 = scalar_select %p3925, %s28, 0
      %s3927 = sadd.s32 %s3926, %s3924
      %s3928 = smul.addr %s3927, 8
      %s3929 = scalar_lea.vmem %s10, %s3928
      // Predicated region
      $region61: #{attention_block_forward.3} parent=59 // pred_check
        %p3930 = pneg %p282
      $region62: #{attention_block_forward.3} parent=59 // pred_check_branch
        %3932 = sbr.rel (%p3930) target = $region64
      $region63: #{attention_block_forward.3} parent=59 // pred_region
        _
      $region64: #{attention_block_forward.3} parent=59 // pred_fallthru
        _
    $region60: #{attention_block_forward.3} parent=5 // pred_fallthru
      _
    %p3933 = scmp.le.s32.totalorder 2, %s18
    // Predicated region
    $region65: #{attention_block_forward.3} parent=5 // pred_check
      %p3934 = pneg %p3933
    $region66: #{attention_block_forward.3} parent=5 // pred_check_branch
      %3936 = sbr.rel (%p3934) target = $region68
    $region67: #{attention_block_forward.3} parent=5 // pred_region
      %s3937 = ssub.s32 %s18, 2
      // Predicated region
      $region69: #{attention_block_forward.3} parent=67 // pred_check
        %p3938 = pneg %p288
      $region70: #{attention_block_forward.3} parent=67 // pred_check_branch
        %3940 = sbr.rel (%p3938) target = $region72
      $region71: #{attention_block_forward.3} parent=67 // pred_region
        %p3941 = scmp.lt.s32.totalorder %s29, 1
        %s3942 = scalar_select %p3941, %s29, 1
        %p3943 = scmp.lt.s32.totalorder %s30, 0
        %s3944 = scalar_select %p3943, %s30, 0
        %s3945 = sadd.s32 %s3944, %s3942
        %s3946 = smul.addr %s3945, 8
        %s3947 = scalar_lea.vmem %s10, %s3946
      $region72: #{attention_block_forward.3} parent=67 // pred_fallthru
        _
    $region68: #{attention_block_forward.3} parent=5 // pred_fallthru
      _
  $region6: #{attention_block_forward.3} parent=0 // loop_footer
    %s22 = sadd.s32 1, %s18
  $region7: #{attention_block_forward.3} parent=0 // loop_footer_branch
    %17 = sbr.rel target = $region3
  $region8: #{attention_block_forward.3} parent=0 // loop_exit
    _

</llo_original>
